<compile_context>
chip_gen: v6e
topology: v6e:2x2x1
jax: 0.10.0
libtpu: 0.0.40
codegen_flags: <defaults>
</compile_context>

<pallas_src>
import functools
import math

import jax
import jax.numpy as jnp
from jax.experimental import pallas as pl
from jax.experimental.pallas import tpu as pltpu


def find_multiple(n: int, k: int) -> int:
    if n % k == 0:
        return n
    return n + k - n % k


# ----------------------------------------------------------------------------
# Tile / VMEM sizing (generation-aware)
# ----------------------------------------------------------------------------
def _device_kind() -> str:
    try:
        return jax.devices()[0].device_kind.lower()
    except Exception:  # pragma: no cover - defensive
        return ""


def _working_set_bytes(D: int, tI: int, tm: int, out_bytes: int = 4) -> int:
    """Estimate of per-step VMEM usage with default double-buffering."""
    w = 12 * D * tI                       # [W1|W3] (2*D*2tI*2) + W2 (2*tI*D*2), bf16, x2 buffers
    a = 8 * tm * D + 2 * out_bytes * tm * D  # x (dbuf bf16) + f32 acc + o (dbuf)
    h = 12 * tm * tI                      # h f32 (tm,2tI) + gated temporaries
    return w + a + h


def select_tiles(D: int, I: int, T: int, *, tm_hint: int | None = None):
    """Pick (tm, tI, vmem_limit_bytes) from the TPU generation and the shapes."""
    kind = _device_kind()
    if "v7" in kind:                      # 64 MiB VMEM / TC, 2 TCs, ~310 flop/byte threshold
        cap, tm_target, cores = 56 << 20, 512, 2
    elif "v6" in kind:                    # 128 MiB VMEM, ~650 flop/byte threshold
        cap, tm_target, cores = 100 << 20, 512, 1
    elif "v5" in kind:                    # 128 MiB VMEM, ~240 flop/byte threshold
        cap, tm_target, cores = 100 << 20, 256, 1
    else:                                 # unknown: stay conservative
        cap, tm_target, cores = 64 << 20, 256, 1
    if tm_hint is not None:
        tm_target = tm_hint

    # Token tile: multiple of 16 (bf16 sublane packing), never larger than T.
    tm = min(tm_target, find_multiple(max(T, 1), 16))
    # Dual-TensorCore chips: make sure the "parallel" token axis has >= 2 tiles.
    if cores >= 2:
        while -(-T // tm) < 2 and tm > 16:
            tm = find_multiple(tm // 2, 16)

    budget = int(cap * 0.9)

    # I-chunk candidates: multiples of 128 that divide I (largest first).
    if I % 128 == 0:
        cands = sorted({c for c in range(128, I + 1, 128) if I % c == 0},
                       reverse=True)
    else:
        # Non-128-multiple I: only the full dim is legal (block == full array dim).
        cands = [I]

    tI = cands[-1]
    while True:
        fit = [c for c in cands if _working_set_bytes(D, c, tm) <= budget]
        if fit:
            tI = fit[0]
            break
        if tm > 16:
            tm = find_multiple(tm // 2, 16)   # shrink tokens before giving up
        else:
            tI = cands[-1]
            break

    ws = _working_set_bytes(D, tI, tm)
    vmem_limit = int(min(cap, max(int(ws * 1.2), 32 << 20)))
    return tm, tI, vmem_limit


# ----------------------------------------------------------------------------
# One-time weight packing (do this at weight-load time, NOT per forward call)
# ----------------------------------------------------------------------------
def pack_ffn_weights(w1, w3, w2, *, tI: int, dtype=jnp.bfloat16):
    """w1/w3: [D, I] ([in, out], i.e. transposed vs. PyTorch); w2: [I, D].

    Returns:
      w13: (nI, D, 2*tI) chunk-major -- chunk k's columns [0:tI]=W1, [tI:2tI]=W3,
           each chunk contiguous in HBM (single-burst DMA per k step).
      w2 : (I, D) in compute dtype (row blocks are already contiguous).
    """
    D, I = w1.shape
    assert I % tI == 0, "intermediate size must be a multiple of the I-chunk"
    nI = I // tI
    w13 = jnp.concatenate(
        [w1.reshape(D, nI, tI), w3.reshape(D, nI, tI)], axis=-1)   # (D, nI, 2*tI)
    w13 = jnp.transpose(w13, (1, 0, 2)).astype(dtype)              # (nI, D, 2*tI)
    return w13, w2.astype(dtype)


# ----------------------------------------------------------------------------
# Kernel
# ----------------------------------------------------------------------------
def ffn_kernel(x_ref, w13_ref, w2_ref, o_ref, acc_ref, *, tI: int):
    """One (token-tile i, I-chunk k) grid step.

    x_ref:   (tm, D)    bf16 activations (same block across the k axis)
    w13_ref: (D, 2*tI)  bf16; cols [0:tI] = W1 chunk, [tI:2*tI] = W3 chunk
    w2_ref:  (tI, D)    bf16 down-projection chunk
    o_ref:   (tm, D)    output tile (written only on the last k step)
    acc_ref: (tm, D)    f32 VMEM accumulator (resident across k)
    """
    k = pl.program_id(1)

    @pl.when(k == 0)
    def _():
        acc_ref[...] = jnp.zeros_like(acc_ref)

    x = x_ref[...]
    # Fused gate/up projection: one MXU pass over the (D, 2*tI) RHS.
    h = jnp.dot(x, w13_ref[...], preferred_element_type=jnp.float32)   # (tm, 2*tI) f32
    h1 = h[:, :tI]
    h3 = h[:, tI:]
    gated = (h1 * jax.nn.sigmoid(h1)) * h3                             # silu(h1) * h3
    acc_ref[...] += jnp.dot(gated.astype(w2_ref.dtype), w2_ref[...],
                            preferred_element_type=jnp.float32)        # (tm, D)

    @pl.when(k == pl.num_programs(1) - 1)
    def _():
        o_ref[...] = acc_ref[...].astype(o_ref.dtype)


def feed_forward(x, w13, w2, *, tm: int, tI: int, vmem_limit: int):
    """x: [..., D];  w13: (nI, D, 2*tI) packed (see pack_ffn_weights);  w2: (I, D)."""
    orig_shape = x.shape
    orig_dtype = x.dtype
    D = orig_shape[-1]
    nI = w13.shape[0]
    assert w13.shape == (nI, D, 2 * tI)
    assert w2.shape == (nI * tI, D)
    compute_dtype = w13.dtype

    x2 = x.reshape(-1, D).astype(compute_dtype)
    T = x2.shape[0]

    # Pad the token axis so every tile is full (zero rows are harmless).
    tm = min(tm, find_multiple(T, 16))
    Tp = find_multiple(T, tm)
    if Tp != T:
        x2 = jnp.pad(x2, ((0, Tp - T), (0, 0)))

    out = pl.pallas_call(
        functools.partial(ffn_kernel, tI=tI),
        out_shape=jax.ShapeDtypeStruct((Tp, D), orig_dtype),
        grid_spec=pltpu.PrefetchScalarGridSpec(
            num_scalar_prefetch=0,
            grid=(Tp // tm, nI),                                   # reduction axis last
            in_specs=[
                pl.BlockSpec((tm, D), lambda i, k: (i, 0)),        # x tile (constant over k)
                pl.BlockSpec((pl.Squeezed(), D, 2 * tI),
                             lambda i, k: (k, 0, 0)),              # contiguous [W1|W3] chunk k
                pl.BlockSpec((tI, D), lambda i, k: (k, 0)),        # W2 row-chunk k (contiguous)
            ],
            out_specs=pl.BlockSpec((tm, D), lambda i, k: (i, 0)),  # resident across k
            scratch_shapes=[pltpu.VMEM((tm, D), jnp.float32)],
        ),
        compiler_params=pltpu.CompilerParams(
            dimension_semantics=("parallel", "arbitrary"),
            vmem_limit_bytes=int(vmem_limit),
        ),
    )(x2, w13, w2)

    if Tp != T:
        out = out[:T]
    return out.reshape(orig_shape)


# ----------------------------------------------------------------------------
# Parameter init matching nn.Linear defaults (weights stored transposed)
# ----------------------------------------------------------------------------
def init_params(key, dim, intermediate_size, dtype=jnp.bfloat16):
    k1, k2, k3 = jax.random.split(key, 3)
    b1 = 1.0 / math.sqrt(dim)
    b2 = 1.0 / math.sqrt(intermediate_size)
    w1 = jax.random.uniform(k1, (dim, intermediate_size), jnp.float32, -b1, b1).astype(dtype)
    w3 = jax.random.uniform(k2, (dim, intermediate_size), jnp.float32, -b1, b1).astype(dtype)
    w2 = jax.random.uniform(k3, (intermediate_size, dim), jnp.float32, -b2, b2).astype(dtype)
    return w1, w3, w2


if __name__ == "__main__":
    # Small config consistent with ModelArgs.__post_init__:
    # dim=256 -> hidden=1024 -> n_hidden=682 -> intermediate_size=find_multiple(682,256)=768
    dim = 256
    intermediate_size = find_multiple(int(2 * (4 * dim) / 3), 256)  # 768
    batch, seq = 2, 128

    key = jax.random.PRNGKey(0)
    kx, kp = jax.random.split(key)
    x = jax.random.normal(kx, (batch, seq, dim), dtype=jnp.float32)
    w1, w3, w2 = init_params(kp, dim, intermediate_size, dtype=jnp.bfloat16)

    # Tile / VMEM sizing from the actual device generation and shapes.
    T = batch * seq
    tm, tI, vmem_limit = select_tiles(dim, intermediate_size, T)

    # Weight packing happens ONCE (weight-load time), outside the forward pass.
    w13, w2c = pack_ffn_weights(w1, w3, w2, tI=tI)

    ffn = jax.jit(functools.partial(feed_forward, tm=tm, tI=tI, vmem_limit=vmem_limit))
    y = jax.block_until_ready(ffn(x, w13, w2c))

    # Pure-JAX reference with the same bf16 inputs (kernel accumulates in f32;
    # tolerance loosened for the bf16 rounding of the gated intermediate).
    xb = x.astype(jnp.bfloat16).astype(jnp.float32).reshape(-1, dim)
    w1f, w3f, w2f = (w.astype(jnp.float32) for w in (w1, w3, w2))
    ref = ((jax.nn.silu(xb @ w1f) * (xb @ w3f)) @ w2f).reshape(batch, seq, dim)
    assert jnp.allclose(y.astype(jnp.float32), ref, atol=2e-2, rtol=2e-2), \
        "mismatch vs reference"

    print("KERNEL_OK")
</pallas_src>

<mosaic_0001>
module attributes {stable_mosaic.version = 11 : i64} {
  func.func @ffn_kernel(%arg0: i32, %arg1: i32, %arg2: memref<256x256xbf16, #tpu.memory_space<vmem>>, %arg3: memref<1x256x1536xbf16, #tpu.memory_space<vmem>>, %arg4: memref<768x256xbf16, #tpu.memory_space<vmem>>, %arg5: memref<256x256xf32, #tpu.memory_space<vmem>>, %arg6: memref<256x256xf32, #tpu.memory_space<vmem>>) attributes {dimension_semantics = [#tpu.dimension_semantics<parallel>, #tpu.dimension_semantics<arbitrary>], iteration_bounds = array<i64: 1, 1>, scalar_prefetch = 0 : i64, scratch_operands = 1 : i64, tpu.core_type = #tpu.core_type<tc>, window_params = [{transform_indices = @transform_0, window_bounds = array<i64: 256, 256>}, {transform_indices = @transform_1, window_bounds = array<i64: 1, 256, 1536>}, {transform_indices = @transform_2, window_bounds = array<i64: 768, 256>}, {transform_indices = @transform_3, window_bounds = array<i64: 256, 256>}]} {
    %c0_i32 = arith.constant 0 : i32
    %0 = arith.cmpi eq, %arg1, %c0_i32 : i32
    %1 = arith.extui %0 : i1 to i32
    %c0_i32_0 = arith.constant 0 : i32
    %2 = arith.cmpi ne, %1, %c0_i32_0 : i32
    scf.if %2 {
      %cst_15 = arith.constant 0.000000e+00 : f32
      %25 = vector.broadcast %cst_15 : f32 to vector<256x256xf32>
      %c0_16 = arith.constant 0 : index
      %c0_17 = arith.constant 0 : index
      %26 = vector.load %arg6[%c0_16, %c0_17] : memref<256x256xf32, #tpu.memory_space<vmem>>, vector<256x256xf32>
      tpu.vector_store %arg6[%c0_16, %c0_17], %25 {strides = array<i32>} : memref<256x256xf32, #tpu.memory_space<vmem>>, vector<256x256xf32>,
    } else {
    }
    %c0 = arith.constant 0 : index
    %c0_1 = arith.constant 0 : index
    %3 = vector.load %arg2[%c0, %c0_1] : memref<256x256xbf16, #tpu.memory_space<vmem>>, vector<256x256xbf16>
    %c0_2 = arith.constant 0 : index
    %c0_3 = arith.constant 0 : index
    %c0_4 = arith.constant 0 : index
    %4 = vector.load %arg3[%c0_2, %c0_3, %c0_4] : memref<1x256x1536xbf16, #tpu.memory_space<vmem>>, vector<1x256x1536xbf16>
    %5 = vector.shape_cast %4 : vector<1x256x1536xbf16> to vector<256x1536xbf16>
    %cst = arith.constant dense<0.000000e+00> : vector<256x1536xf32>
    %6 = tpu.matmul %3, %5, %cst {dimension_numbers = #tpu.dot_dimension_numbers<[1], [0], [0], [1], [0, 0, 1, 1], [], []>} : vector<256x256xbf16>, vector<256x1536xbf16>, vector<256x1536xf32> -> vector<256x1536xf32>
    %7 = vector.extract_strided_slice %6 {offsets = [0, 0], sizes = [256, 768], strides = [1, 1]} : vector<256x1536xf32> to vector<256x768xf32>
    %8 = vector.extract_strided_slice %6 {offsets = [0, 768], sizes = [256, 768], strides = [1, 1]} : vector<256x1536xf32> to vector<256x768xf32>
    %9 = arith.negf %7 : vector<256x768xf32>
    %10 = math.exp %9 : vector<256x768xf32>
    %cst_5 = arith.constant 1.000000e+00 : f32
    %11 = vector.broadcast %cst_5 : f32 to vector<256x768xf32>
    %12 = arith.addf %11, %10 : vector<256x768xf32>
    %13 = arith.divf %11, %12 : vector<256x768xf32>
    %14 = arith.mulf %7, %13 : vector<256x768xf32>
    %15 = arith.mulf %14, %8 : vector<256x768xf32>
    %c0_6 = arith.constant 0 : index
    %c0_7 = arith.constant 0 : index
    %16 = vector.load %arg6[%c0_6, %c0_7] : memref<256x256xf32, #tpu.memory_space<vmem>>, vector<256x256xf32>
    %17 = arith.truncf %15 : vector<256x768xf32> to vector<256x768xbf16>
    %c0_8 = arith.constant 0 : index
    %c0_9 = arith.constant 0 : index
    %18 = vector.load %arg4[%c0_8, %c0_9] : memref<768x256xbf16, #tpu.memory_space<vmem>>, vector<768x256xbf16>
    %cst_10 = arith.constant dense<0.000000e+00> : vector<256x256xf32>
    %19 = tpu.matmul %17, %18, %cst_10 {dimension_numbers = #tpu.dot_dimension_numbers<[1], [0], [0], [1], [0, 0, 1, 1], [], []>} : vector<256x768xbf16>, vector<768x256xbf16>, vector<256x256xf32> -> vector<256x256xf32>
    %20 = arith.addf %16, %19 : vector<256x256xf32>
    %c0_11 = arith.constant 0 : index
    %c0_12 = arith.constant 0 : index
    %21 = vector.load %arg6[%c0_11, %c0_12] : memref<256x256xf32, #tpu.memory_space<vmem>>, vector<256x256xf32>
    tpu.vector_store %arg6[%c0_11, %c0_12], %20 {strides = array<i32>} : memref<256x256xf32, #tpu.memory_space<vmem>>, vector<256x256xf32>,
    %c0_i32_13 = arith.constant 0 : i32
    %22 = arith.cmpi eq, %arg1, %c0_i32_13 : i32
    %23 = arith.extui %22 : i1 to i32
    %c0_i32_14 = arith.constant 0 : i32
    %24 = arith.cmpi ne, %23, %c0_i32_14 : i32
    scf.if %24 {
      %c0_15 = arith.constant 0 : index
      %c0_16 = arith.constant 0 : index
      %25 = vector.load %arg6[%c0_15, %c0_16] : memref<256x256xf32, #tpu.memory_space<vmem>>, vector<256x256xf32>
      %c0_17 = arith.constant 0 : index
      %c0_18 = arith.constant 0 : index
      %26 = vector.load %arg5[%c0_17, %c0_18] : memref<256x256xf32, #tpu.memory_space<vmem>>, vector<256x256xf32>
      tpu.vector_store %arg5[%c0_17, %c0_18], %25 {strides = array<i32>} : memref<256x256xf32, #tpu.memory_space<vmem>>, vector<256x256xf32>,
    } else {
    }
    return
  }
  func.func @transform_0(%arg0: i32, %arg1: i32) -> (i32, i32) {
    %c0_i32 = arith.constant 0 : i32
    %c0_i32_0 = arith.constant 0 : i32
    return %arg0, %c0_i32 : i32, i32
  }
  func.func @transform_1(%arg0: i32, %arg1: i32) -> (i32, i32, i32) {
    %c0_i32 = arith.constant 0 : i32
    %c0_i32_0 = arith.constant 0 : i32
    %c0_i32_1 = arith.constant 0 : i32
    return %arg1, %c0_i32, %c0_i32_0 : i32, i32, i32
  }
  func.func @transform_2(%arg0: i32, %arg1: i32) -> (i32, i32) {
    %c0_i32 = arith.constant 0 : i32
    %c0_i32_0 = arith.constant 0 : i32
    return %arg1, %c0_i32 : i32, i32
  }
  func.func @transform_3(%arg0: i32, %arg1: i32) -> (i32, i32) {
    %c0_i32 = arith.constant 0 : i32
    %c0_i32_0 = arith.constant 0 : i32
    return %arg0, %c0_i32 : i32, i32
  }
}

</mosaic_0001>

<llo_original>
// kernel: feed_forward.1
$region0: #{feed_forward.1}
  #allocation0 [shape = 'u32[]', space=smem, size = 0x4, offset = 0x4, fixed_abs, tag = 'smem constant byte address 0x4 - core index']
  #allocation1 [shape = 'u32[144,128]{1,0:T(1,128)}', space=vmem, size = 0x12000, scoped, tag = 'internal scratch']
  #allocation2 [shape = 'f32[256,256]{1,0:T(8,128)}', space=vmem, size = 0x40000, scoped, tag = 'scratch operand']
  %s0 = inlined_call_operand.vmem [shape: bf16[256,256], index: 0, kind: input, shape index: {}]
  %s1 = inlined_call_operand.hbm [shape: bf16[1,256,1536], index: 1, kind: input, shape index: {}]
  %s2 = inlined_call_operand.vmem [shape: bf16[768,256], index: 2, kind: input, shape index: {}]
  %s3 = inlined_call_operand.hbm [shape: f32[256,256], index: 3, kind: output, shape index: {}]
  %s4 = sld [smem:[#allocation0]]
  $region34: #{feed_forward.1} parent=0
    _
  %s6 = ssub.s32 1, %s4
  %s7 = scalar_select 0, %s6, %s4
  $region1: #{feed_forward.1} parent=0
    #allocation3 [shape = 'u8[786432]{0}', space=vmem, size = 0xc0000, scoped, tag = 'input window, operand 1, single buffered']
    #allocation4 [shape = 's32[1]{0}', space=sflag, size = 0x4, scoped, tag = 'scoped memory for feed_forward.1']
    #allocation5 [shape = 's32[1]{0}', space=sflag, size = 0x4, scoped, tag = 'scoped memory for feed_forward.1']
    #allocation6 [shape = 'u8[262144]{0}', space=vmem, size = 0x40000, scoped, tag = 'output window, operand 0, single buffered']
    %8 = vsyncpa [#allocation4], 0
    %9 = vsyncpa [#allocation5], 0
    // Predicated region
    $region2: #{feed_forward.1} parent=1 // pred_check
      _
    $region3: #{feed_forward.1} parent=1 // pred_check_branch
      %11 = sbr.rel (0) target = $region5
    $region4: #{feed_forward.1} parent=1 // pred_region
      _
    $region5: #{feed_forward.1} parent=1 // pred_fallthru
      _
    // Predicated region
    $region6: #{feed_forward.1} parent=1 // pred_check
      _
    $region7: #{feed_forward.1} parent=1 // pred_check_branch
      %13 = sbr.rel (0) target = $region9
    $region8: #{feed_forward.1} parent=1 // pred_region
      %s15 = ssub.s32 24576, 24576
      %16 = vsyncadd [#allocation4], %s15
      %s17 = sshll.u32 [#allocation3], 4
      %s18 = int_to_ptr.vmem [resolvable:$true] %s17
      %23 = dma.hbm_to_vmem [thread:$0]  %s1, 24576, %s18, [#allocation4], 768, 768, 48
    $region9: #{feed_forward.1} parent=1 // pred_fallthru
      _
    // Predicated region
    $region10: #{feed_forward.1} parent=1 // pred_check
      _
    $region11: #{feed_forward.1} parent=1 // pred_check_branch
      %25 = sbr.rel (0) target = $region13
    $region12: #{feed_forward.1} parent=1 // pred_region
      _
    $region13: #{feed_forward.1} parent=1 // pred_fallthru
      _
    // Predicated region
    $region14: #{feed_forward.1} parent=1 // pred_check
      _
    $region15: #{feed_forward.1} parent=1 // pred_check_branch
      %27 = sbr.rel (0) target = $region17
    $region16: #{feed_forward.1} parent=1 // pred_region
      %28 = dma.done [#allocation4], 24576
    $region17: #{feed_forward.1} parent=1 // pred_fallthru
      _
    %p29 = scmp.eq.s32.totalorder 0, 0
    // Predicated region
    $region18: #{feed_forward.1} parent=1 // pred_check
      %p30 = pneg %p29
    $region19: #{feed_forward.1} parent=1 // pred_check_branch
      %32 = sbr.rel (%p30) target = $region21
    $region20: #{feed_forward.1} parent=1 // pred_region
      %33 = vst [vmem:[#allocation2] sm:$0xff] 0.0
      %34 = vst [vmem:[#allocation2 + $0x8] sm:$0xff] 0.0
      %35 = vst [vmem:[#allocation2 + $0x10] sm:$0xff] 0.0
      %36 = vst [vmem:[#allocation2 + $0x18] sm:$0xff] 0.0
      %37 = vst [vmem:[#allocation2 + $0x20] sm:$0xff] 0.0
      %38 = vst [vmem:[#allocation2 + $0x28] sm:$0xff] 0.0
      %39 = vst [vmem:[#allocation2 + $0x30] sm:$0xff] 0.0
      %40 = vst [vmem:[#allocation2 + $0x38] sm:$0xff] 0.0
      %41 = vst [vmem:[#allocation2 + $0x40] sm:$0xff] 0.0
      %42 = vst [vmem:[#allocation2 + $0x48] sm:$0xff] 0.0
      %43 = vst [vmem:[#allocation2 + $0x50] sm:$0xff] 0.0
      %44 = vst [vmem:[#allocation2 + $0x58] sm:$0xff] 0.0
      %45 = vst [vmem:[#allocation2 + $0x60] sm:$0xff] 0.0
      %46 = vst [vmem:[#allocation2 + $0x68] sm:$0xff] 0.0
      %47 = vst [vmem:[#allocation2 + $0x70] sm:$0xff] 0.0
      %48 = vst [vmem:[#allocation2 + $0x78] sm:$0xff] 0.0
      %49 = vst [vmem:[#allocation2 + $0x80] sm:$0xff] 0.0
      %50 = vst [vmem:[#allocation2 + $0x88] sm:$0xff] 0.0
      %51 = vst [vmem:[#allocation2 + $0x90] sm:$0xff] 0.0
      %52 = vst [vmem:[#allocation2 + $0x98] sm:$0xff] 0.0
      %53 = vst [vmem:[#allocation2 + $0xa0] sm:$0xff] 0.0
      %54 = vst [vmem:[#allocation2 + $0xa8] sm:$0xff] 0.0
      %55 = vst [vmem:[#allocation2 + $0xb0] sm:$0xff] 0.0
      %56 = vst [vmem:[#allocation2 + $0xb8] sm:$0xff] 0.0
      %57 = vst [vmem:[#allocation2 + $0xc0] sm:$0xff] 0.0
      %58 = vst [vmem:[#allocation2 + $0xc8] sm:$0xff] 0.0
      %59 = vst [vmem:[#allocation2 + $0xd0] sm:$0xff] 0.0
      %60 = vst [vmem:[#allocation2 + $0xd8] sm:$0xff] 0.0
      %61 = vst [vmem:[#allocation2 + $0xe0] sm:$0xff] 0.0
      %62 = vst [vmem:[#allocation2 + $0xe8] sm:$0xff] 0.0
      %63 = vst [vmem:[#allocation2 + $0xf0] sm:$0xff] 0.0
      %64 = vst [vmem:[#allocation2 + $0xf8] sm:$0xff] 0.0
      %65 = vst [vmem:[#allocation2 + $0x100] sm:$0xff] 0.0
      %66 = vst [vmem:[#allocation2 + $0x108] sm:$0xff] 0.0
      %67 = vst [vmem:[#allocation2 + $0x110] sm:$0xff] 0.0
      %68 = vst [vmem:[#allocation2 + $0x118] sm:$0xff] 0.0
      %69 = vst [vmem:[#allocation2 + $0x120] sm:$0xff] 0.0
      %70 = vst [vmem:[#allocation2 + $0x128] sm:$0xff] 0.0
      %71 = vst [vmem:[#allocation2 + $0x130] sm:$0xff] 0.0
      %72 = vst [vmem:[#allocation2 + $0x138] sm:$0xff] 0.0
      %73 = vst [vmem:[#allocation2 + $0x140] sm:$0xff] 0.0
      %74 = vst [vmem:[#allocation2 + $0x148] sm:$0xff] 0.0
      %75 = vst [vmem:[#allocation2 + $0x150] sm:$0xff] 0.0
      %76 = vst [vmem:[#allocation2 + $0x158] sm:$0xff] 0.0
      %77 = vst [vmem:[#allocation2 + $0x160] sm:$0xff] 0.0
      %78 = vst [vmem:[#allocation2 + $0x168] sm:$0xff] 0.0
      %79 = vst [vmem:[#allocation2 + $0x170] sm:$0xff] 0.0
      %80 = vst [vmem:[#allocation2 + $0x178] sm:$0xff] 0.0
      %81 = vst [vmem:[#allocation2 + $0x180] sm:$0xff] 0.0
      %82 = vst [vmem:[#allocation2 + $0x188] sm:$0xff] 0.0
      %83 = vst [vmem:[#allocation2 + $0x190] sm:$0xff] 0.0
      %84 = vst [vmem:[#allocation2 + $0x198] sm:$0xff] 0.0
      %85 = vst [vmem:[#allocation2 + $0x1a0] sm:$0xff] 0.0
      %86 = vst [vmem:[#allocation2 + $0x1a8] sm:$0xff] 0.0
      %87 = vst [vmem:[#allocation2 + $0x1b0] sm:$0xff] 0.0
      %88 = vst [vmem:[#allocation2 + $0x1b8] sm:$0xff] 0.0
      %89 = vst [vmem:[#allocation2 + $0x1c0] sm:$0xff] 0.0
      %90 = vst [vmem:[#allocation2 + $0x1c8] sm:$0xff] 0.0
      %91 = vst [vmem:[#allocation2 + $0x1d0] sm:$0xff] 0.0
      %92 = vst [vmem:[#allocation2 + $0x1d8] sm:$0xff] 0.0
      %93 = vst [vmem:[#allocation2 + $0x1e0] sm:$0xff] 0.0
      %94 = vst [vmem:[#allocation2 + $0x1e8] sm:$0xff] 0.0
      %95 = vst [vmem:[#allocation2 + $0x1f0] sm:$0xff] 0.0
      %96 = vst [vmem:[#allocation2 + $0x1f8] sm:$0xff] 0.0
    $region21: #{feed_forward.1} parent=1 // pred_fallthru
      _
    %v97 = vld [vmem:[%s0] sm:$0xff]
    %v98 = vld [vmem:[%s0 + $0x8] sm:$0xff]
    %v99 = vld [vmem:[%s0 + $0x10] sm:$0xff]
    %v100 = vld [vmem:[%s0 + $0x18] sm:$0xff]
    %v101 = vld [vmem:[%s0 + $0x20] sm:$0xff]
    %v102 = vld [vmem:[%s0 + $0x28] sm:$0xff]
    %v103 = vld [vmem:[%s0 + $0x30] sm:$0xff]
    %v104 = vld [vmem:[%s0 + $0x38] sm:$0xff]
    %v105 = vld [vmem:[%s0 + $0x40] sm:$0xff]
    %v106 = vld [vmem:[%s0 + $0x48] sm:$0xff]
    %v107 = vld [vmem:[%s0 + $0x50] sm:$0xff]
    %v108 = vld [vmem:[%s0 + $0x58] sm:$0xff]
    %v109 = vld [vmem:[%s0 + $0x60] sm:$0xff]
    %v110 = vld [vmem:[%s0 + $0x68] sm:$0xff]
    %v111 = vld [vmem:[%s0 + $0x70] sm:$0xff]
    %v112 = vld [vmem:[%s0 + $0x78] sm:$0xff]
    %v113 = vld [vmem:[%s0 + $0x80] sm:$0xff]
    %v114 = vld [vmem:[%s0 + $0x88] sm:$0xff]
    %v115 = vld [vmem:[%s0 + $0x90] sm:$0xff]
    %v116 = vld [vmem:[%s0 + $0x98] sm:$0xff]
    %v117 = vld [vmem:[%s0 + $0xa0] sm:$0xff]
    %v118 = vld [vmem:[%s0 + $0xa8] sm:$0xff]
    %v119 = vld [vmem:[%s0 + $0xb0] sm:$0xff]
    %v120 = vld [vmem:[%s0 + $0xb8] sm:$0xff]
    %v121 = vld [vmem:[%s0 + $0xc0] sm:$0xff]
    %v122 = vld [vmem:[%s0 + $0xc8] sm:$0xff]
    %v123 = vld [vmem:[%s0 + $0xd0] sm:$0xff]
    %v124 = vld [vmem:[%s0 + $0xd8] sm:$0xff]
    %v125 = vld [vmem:[%s0 + $0xe0] sm:$0xff]
    %v126 = vld [vmem:[%s0 + $0xe8] sm:$0xff]
    %v127 = vld [vmem:[%s0 + $0xf0] sm:$0xff]
    %v128 = vld [vmem:[%s0 + $0xf8] sm:$0xff]
    %v129 = vld [vmem:[#allocation3] sm:$0xff]
    %v130 = vld [vmem:[#allocation3 + $0x8] sm:$0xff]
    %v131 = vld [vmem:[#allocation3 + $0x10] sm:$0xff]
    %v132 = vld [vmem:[#allocation3 + $0x18] sm:$0xff]
    %v133 = vld [vmem:[#allocation3 + $0x20] sm:$0xff]
    %v134 = vld [vmem:[#allocation3 + $0x28] sm:$0xff]
    %v135 = vld [vmem:[#allocation3 + $0x30] sm:$0xff]
    %v136 = vld [vmem:[#allocation3 + $0x38] sm:$0xff]
    %v137 = vld [vmem:[#allocation3 + $0x40] sm:$0xff]
    %v138 = vld [vmem:[#allocation3 + $0x48] sm:$0xff]
    %v139 = vld [vmem:[#allocation3 + $0x50] sm:$0xff]
    %v140 = vld [vmem:[#allocation3 + $0x58] sm:$0xff]
    %v141 = vld [vmem:[#allocation3 + $0x60] sm:$0xff]
    %v142 = vld [vmem:[#allocation3 + $0x68] sm:$0xff]
    %v143 = vld [vmem:[#allocation3 + $0x70] sm:$0xff]
    %v144 = vld [vmem:[#allocation3 + $0x78] sm:$0xff]
    %v145 = vld [vmem:[#allocation3 + $0x80] sm:$0xff]
    %v146 = vld [vmem:[#allocation3 + $0x88] sm:$0xff]
    %v147 = vld [vmem:[#allocation3 + $0x90] sm:$0xff]
    %v148 = vld [vmem:[#allocation3 + $0x98] sm:$0xff]
    %v149 = vld [vmem:[#allocation3 + $0xa0] sm:$0xff]
    %v150 = vld [vmem:[#allocation3 + $0xa8] sm:$0xff]
    %v151 = vld [vmem:[#allocation3 + $0xb0] sm:$0xff]
    %v152 = vld [vmem:[#allocation3 + $0xb8] sm:$0xff]
    %v153 = vld [vmem:[#allocation3 + $0xc0] sm:$0xff]
    %v154 = vld [vmem:[#allocation3 + $0xc8] sm:$0xff]
    %v155 = vld [vmem:[#allocation3 + $0xd0] sm:$0xff]
    %v156 = vld [vmem:[#allocation3 + $0xd8] sm:$0xff]
    %v157 = vld [vmem:[#allocation3 + $0xe0] sm:$0xff]
    %v158 = vld [vmem:[#allocation3 + $0xe8] sm:$0xff]
    %v159 = vld [vmem:[#allocation3 + $0xf0] sm:$0xff]
    %v160 = vld [vmem:[#allocation3 + $0xf8] sm:$0xff]
    %v161 = vld [vmem:[#allocation3 + $0x100] sm:$0xff]
    %v162 = vld [vmem:[#allocation3 + $0x108] sm:$0xff]
    %v163 = vld [vmem:[#allocation3 + $0x110] sm:$0xff]
    %v164 = vld [vmem:[#allocation3 + $0x118] sm:$0xff]
    %v165 = vld [vmem:[#allocation3 + $0x120] sm:$0xff]
    %v166 = vld [vmem:[#allocation3 + $0x128] sm:$0xff]
    %v167 = vld [vmem:[#allocation3 + $0x130] sm:$0xff]
    %v168 = vld [vmem:[#allocation3 + $0x138] sm:$0xff]
    %v169 = vld [vmem:[#allocation3 + $0x140] sm:$0xff]
    %v170 = vld [vmem:[#allocation3 + $0x148] sm:$0xff]
    %v171 = vld [vmem:[#allocation3 + $0x150] sm:$0xff]
    %v172 = vld [vmem:[#allocation3 + $0x158] sm:$0xff]
    %v173 = vld [vmem:[#allocation3 + $0x160] sm:$0xff]
    %v174 = vld [vmem:[#allocation3 + $0x168] sm:$0xff]
    %v175 = vld [vmem:[#allocation3 + $0x170] sm:$0xff]
    %v176 = vld [vmem:[#allocation3 + $0x178] sm:$0xff]
    %v177 = vld [vmem:[#allocation3 + $0x180] sm:$0xff]
    %v178 = vld [vmem:[#allocation3 + $0x188] sm:$0xff]
    %v179 = vld [vmem:[#allocation3 + $0x190] sm:$0xff]
    %v180 = vld [vmem:[#allocation3 + $0x198] sm:$0xff]
    %v181 = vld [vmem:[#allocation3 + $0x1a0] sm:$0xff]
    %v182 = vld [vmem:[#allocation3 + $0x1a8] sm:$0xff]
    %v183 = vld [vmem:[#allocation3 + $0x1b0] sm:$0xff]
    %v184 = vld [vmem:[#allocation3 + $0x1b8] sm:$0xff]
    %v185 = vld [vmem:[#allocation3 + $0x1c0] sm:$0xff]
    %v186 = vld [vmem:[#allocation3 + $0x1c8] sm:$0xff]
    %v187 = vld [vmem:[#allocation3 + $0x1d0] sm:$0xff]
    %v188 = vld [vmem:[#allocation3 + $0x1d8] sm:$0xff]
    %v189 = vld [vmem:[#allocation3 + $0x1e0] sm:$0xff]
    %v190 = vld [vmem:[#allocation3 + $0x1e8] sm:$0xff]
    %v191 = vld [vmem:[#allocation3 + $0x1f0] sm:$0xff]
    %v192 = vld [vmem:[#allocation3 + $0x1f8] sm:$0xff]
    %v193 = vld [vmem:[#allocation3 + $0x200] sm:$0xff]
    %v194 = vld [vmem:[#allocation3 + $0x208] sm:$0xff]
    %v195 = vld [vmem:[#allocation3 + $0x210] sm:$0xff]
    %v196 = vld [vmem:[#allocation3 + $0x218] sm:$0xff]
    %v197 = vld [vmem:[#allocation3 + $0x220] sm:$0xff]
    %v198 = vld [vmem:[#allocation3 + $0x228] sm:$0xff]
    %v199 = vld [vmem:[#allocation3 + $0x230] sm:$0xff]
    %v200 = vld [vmem:[#allocation3 + $0x238] sm:$0xff]
    %v201 = vld [vmem:[#allocation3 + $0x240] sm:$0xff]
    %v202 = vld [vmem:[#allocation3 + $0x248] sm:$0xff]
    %v203 = vld [vmem:[#allocation3 + $0x250] sm:$0xff]
    %v204 = vld [vmem:[#allocation3 + $0x258] sm:$0xff]
    %v205 = vld [vmem:[#allocation3 + $0x260] sm:$0xff]
    %v206 = vld [vmem:[#allocation3 + $0x268] sm:$0xff]
    %v207 = vld [vmem:[#allocation3 + $0x270] sm:$0xff]
    %v208 = vld [vmem:[#allocation3 + $0x278] sm:$0xff]
    %v209 = vld [vmem:[#allocation3 + $0x280] sm:$0xff]
    %v210 = vld [vmem:[#allocation3 + $0x288] sm:$0xff]
    %v211 = vld [vmem:[#allocation3 + $0x290] sm:$0xff]
    %v212 = vld [vmem:[#allocation3 + $0x298] sm:$0xff]
    %v213 = vld [vmem:[#allocation3 + $0x2a0] sm:$0xff]
    %v214 = vld [vmem:[#allocation3 + $0x2a8] sm:$0xff]
    %v215 = vld [vmem:[#allocation3 + $0x2b0] sm:$0xff]
    %v216 = vld [vmem:[#allocation3 + $0x2b8] sm:$0xff]
    %v217 = vld [vmem:[#allocation3 + $0x2c0] sm:$0xff]
    %v218 = vld [vmem:[#allocation3 + $0x2c8] sm:$0xff]
    %v219 = vld [vmem:[#allocation3 + $0x2d0] sm:$0xff]
    %v220 = vld [vmem:[#allocation3 + $0x2d8] sm:$0xff]
    %v221 = vld [vmem:[#allocation3 + $0x2e0] sm:$0xff]
    %v222 = vld [vmem:[#allocation3 + $0x2e8] sm:$0xff]
    %v223 = vld [vmem:[#allocation3 + $0x2f0] sm:$0xff]
    %v224 = vld [vmem:[#allocation3 + $0x2f8] sm:$0xff]
    %v225 = vld [vmem:[#allocation3 + $0x300] sm:$0xff]
    %v226 = vld [vmem:[#allocation3 + $0x308] sm:$0xff]
    %v227 = vld [vmem:[#allocation3 + $0x310] sm:$0xff]
    %v228 = vld [vmem:[#allocation3 + $0x318] sm:$0xff]
    %v229 = vld [vmem:[#allocation3 + $0x320] sm:$0xff]
    %v230 = vld [vmem:[#allocation3 + $0x328] sm:$0xff]
    %v231 = vld [vmem:[#allocation3 + $0x330] sm:$0xff]
    %v232 = vld [vmem:[#allocation3 + $0x338] sm:$0xff]
    %v233 = vld [vmem:[#allocation3 + $0x340] sm:$0xff]
    %v234 = vld [vmem:[#allocation3 + $0x348] sm:$0xff]
    %v235 = vld [vmem:[#allocation3 + $0x350] sm:$0xff]
    %v236 = vld [vmem:[#allocation3 + $0x358] sm:$0xff]
    %v237 = vld [vmem:[#allocation3 + $0x360] sm:$0xff]
    %v238 = vld [vmem:[#allocation3 + $0x368] sm:$0xff]
    %v239 = vld [vmem:[#allocation3 + $0x370] sm:$0xff]
    %v240 = vld [vmem:[#allocation3 + $0x378] sm:$0xff]
    %v241 = vld [vmem:[#allocation3 + $0x380] sm:$0xff]
    %v242 = vld [vmem:[#allocation3 + $0x388] sm:$0xff]
    %v243 = vld [vmem:[#allocation3 + $0x390] sm:$0xff]
    %v244 = vld [vmem:[#allocation3 + $0x398] sm:$0xff]
    %v245 = vld [vmem:[#allocation3 + $0x3a0] sm:$0xff]
    %v246 = vld [vmem:[#allocation3 + $0x3a8] sm:$0xff]
    %v247 = vld [vmem:[#allocation3 + $0x3b0] sm:$0xff]
    %v248 = vld [vmem:[#allocation3 + $0x3b8] sm:$0xff]
    %v249 = vld [vmem:[#allocation3 + $0x3c0] sm:$0xff]
    %v250 = vld [vmem:[#allocation3 + $0x3c8] sm:$0xff]
    %v251 = vld [vmem:[#allocation3 + $0x3d0] sm:$0xff]
    %v252 = vld [vmem:[#allocation3 + $0x3d8] sm:$0xff]
    %v253 = vld [vmem:[#allocation3 + $0x3e0] sm:$0xff]
    %v254 = vld [vmem:[#allocation3 + $0x3e8] sm:$0xff]
    %v255 = vld [vmem:[#allocation3 + $0x3f0] sm:$0xff]
    %v256 = vld [vmem:[#allocation3 + $0x3f8] sm:$0xff]
    %v257 = vld [vmem:[#allocation3 + $0x400] sm:$0xff]
    %v258 = vld [vmem:[#allocation3 + $0x408] sm:$0xff]
    %v259 = vld [vmem:[#allocation3 + $0x410] sm:$0xff]
    %v260 = vld [vmem:[#allocation3 + $0x418] sm:$0xff]
    %v261 = vld [vmem:[#allocation3 + $0x420] sm:$0xff]
    %v262 = vld [vmem:[#allocation3 + $0x428] sm:$0xff]
    %v263 = vld [vmem:[#allocation3 + $0x430] sm:$0xff]
    %v264 = vld [vmem:[#allocation3 + $0x438] sm:$0xff]
    %v265 = vld [vmem:[#allocation3 + $0x440] sm:$0xff]
    %v266 = vld [vmem:[#allocation3 + $0x448] sm:$0xff]
    %v267 = vld [vmem:[#allocation3 + $0x450] sm:$0xff]
    %v268 = vld [vmem:[#allocation3 + $0x458] sm:$0xff]
    %v269 = vld [vmem:[#allocation3 + $0x460] sm:$0xff]
    %v270 = vld [vmem:[#allocation3 + $0x468] sm:$0xff]
    %v271 = vld [vmem:[#allocation3 + $0x470] sm:$0xff]
    %v272 = vld [vmem:[#allocation3 + $0x478] sm:$0xff]
    %v273 = vld [vmem:[#allocation3 + $0x480] sm:$0xff]
    %v274 = vld [vmem:[#allocation3 + $0x488] sm:$0xff]
    %v275 = vld [vmem:[#allocation3 + $0x490] sm:$0xff]
    %v276 = vld [vmem:[#allocation3 + $0x498] sm:$0xff]
    %v277 = vld [vmem:[#allocation3 + $0x4a0] sm:$0xff]
    %v278 = vld [vmem:[#allocation3 + $0x4a8] sm:$0xff]
    %v279 = vld [vmem:[#allocation3 + $0x4b0] sm:$0xff]
    %v280 = vld [vmem:[#allocation3 + $0x4b8] sm:$0xff]
    %v281 = vld [vmem:[#allocation3 + $0x4c0] sm:$0xff]
    %v282 = vld [vmem:[#allocation3 + $0x4c8] sm:$0xff]
    %v283 = vld [vmem:[#allocation3 + $0x4d0] sm:$0xff]
    %v284 = vld [vmem:[#allocation3 + $0x4d8] sm:$0xff]
    %v285 = vld [vmem:[#allocation3 + $0x4e0] sm:$0xff]
    %v286 = vld [vmem:[#allocation3 + $0x4e8] sm:$0xff]
    %v287 = vld [vmem:[#allocation3 + $0x4f0] sm:$0xff]
    %v288 = vld [vmem:[#allocation3 + $0x4f8] sm:$0xff]
    %v289 = vld [vmem:[#allocation3 + $0x500] sm:$0xff]
    %v290 = vld [vmem:[#allocation3 + $0x508] sm:$0xff]
    %v291 = vld [vmem:[#allocation3 + $0x510] sm:$0xff]
    %v292 = vld [vmem:[#allocation3 + $0x518] sm:$0xff]
    %v293 = vld [vmem:[#allocation3 + $0x520] sm:$0xff]
    %v294 = vld [vmem:[#allocation3 + $0x528] sm:$0xff]
    %v295 = vld [vmem:[#allocation3 + $0x530] sm:$0xff]
    %v296 = vld [vmem:[#allocation3 + $0x538] sm:$0xff]
    %v297 = vld [vmem:[#allocation3 + $0x540] sm:$0xff]
    %v298 = vld [vmem:[#allocation3 + $0x548] sm:$0xff]
    %v299 = vld [vmem:[#allocation3 + $0x550] sm:$0xff]
    %v300 = vld [vmem:[#allocation3 + $0x558] sm:$0xff]
    %v301 = vld [vmem:[#allocation3 + $0x560] sm:$0xff]
    %v302 = vld [vmem:[#allocation3 + $0x568] sm:$0xff]
    %v303 = vld [vmem:[#allocation3 + $0x570] sm:$0xff]
    %v304 = vld [vmem:[#allocation3 + $0x578] sm:$0xff]
    %v305 = vld [vmem:[#allocation3 + $0x580] sm:$0xff]
    %v306 = vld [vmem:[#allocation3 + $0x588] sm:$0xff]
    %v307 = vld [vmem:[#allocation3 + $0x590] sm:$0xff]
    %v308 = vld [vmem:[#allocation3 + $0x598] sm:$0xff]
    %v309 = vld [vmem:[#allocation3 + $0x5a0] sm:$0xff]
    %v310 = vld [vmem:[#allocation3 + $0x5a8] sm:$0xff]
    %v311 = vld [vmem:[#allocation3 + $0x5b0] sm:$0xff]
    %v312 = vld [vmem:[#allocation3 + $0x5b8] sm:$0xff]
    %v313 = vld [vmem:[#allocation3 + $0x5c0] sm:$0xff]
    %v314 = vld [vmem:[#allocation3 + $0x5c8] sm:$0xff]
    %v315 = vld [vmem:[#allocation3 + $0x5d0] sm:$0xff]
    %v316 = vld [vmem:[#allocation3 + $0x5d8] sm:$0xff]
    %v317 = vld [vmem:[#allocation3 + $0x5e0] sm:$0xff]
    %v318 = vld [vmem:[#allocation3 + $0x5e8] sm:$0xff]
    %v319 = vld [vmem:[#allocation3 + $0x5f0] sm:$0xff]
    %v320 = vld [vmem:[#allocation3 + $0x5f8] sm:$0xff]
    %v353 = vunpack.c.l.b16 %v97
    %v354 = vunpack.c.h.b16 %v97
    %v355 = vunpack.c.l.b16 %v98
    %v356 = vunpack.c.h.b16 %v98
    %v357 = vunpack.c.l.b16 %v99
    %v358 = vunpack.c.h.b16 %v99
    %v359 = vunpack.c.l.b16 %v100
    %v360 = vunpack.c.h.b16 %v100
    %v361 = vunpack.c.l.b16 %v101
    %v362 = vunpack.c.h.b16 %v101
    %v363 = vunpack.c.l.b16 %v102
    %v364 = vunpack.c.h.b16 %v102
    %v365 = vunpack.c.l.b16 %v103
    %v366 = vunpack.c.h.b16 %v103
    %v367 = vunpack.c.l.b16 %v104
    %v368 = vunpack.c.h.b16 %v104
    %v369 = vunpack.c.l.b16 %v105
    %v370 = vunpack.c.h.b16 %v105
    %v371 = vunpack.c.l.b16 %v106
    %v372 = vunpack.c.h.b16 %v106
    %v373 = vunpack.c.l.b16 %v107
    %v374 = vunpack.c.h.b16 %v107
    %v375 = vunpack.c.l.b16 %v108
    %v376 = vunpack.c.h.b16 %v108
    %v377 = vunpack.c.l.b16 %v109
    %v378 = vunpack.c.h.b16 %v109
    %v379 = vunpack.c.l.b16 %v110
    %v380 = vunpack.c.h.b16 %v110
    %v381 = vunpack.c.l.b16 %v111
    %v382 = vunpack.c.h.b16 %v111
    %v383 = vunpack.c.l.b16 %v112
    %v384 = vunpack.c.h.b16 %v112
    %v385 = vunpack.c.l.b16 %v113
    %v386 = vunpack.c.h.b16 %v113
    %v387 = vunpack.c.l.b16 %v114
    %v388 = vunpack.c.h.b16 %v114
    %v389 = vunpack.c.l.b16 %v115
    %v390 = vunpack.c.h.b16 %v115
    %v391 = vunpack.c.l.b16 %v116
    %v392 = vunpack.c.h.b16 %v116
    %v393 = vunpack.c.l.b16 %v117
    %v394 = vunpack.c.h.b16 %v117
    %v395 = vunpack.c.l.b16 %v118
    %v396 = vunpack.c.h.b16 %v118
    %v397 = vunpack.c.l.b16 %v119
    %v398 = vunpack.c.h.b16 %v119
    %v399 = vunpack.c.l.b16 %v120
    %v400 = vunpack.c.h.b16 %v120
    %v401 = vunpack.c.l.b16 %v121
    %v402 = vunpack.c.h.b16 %v121
    %v403 = vunpack.c.l.b16 %v122
    %v404 = vunpack.c.h.b16 %v122
    %v405 = vunpack.c.l.b16 %v123
    %v406 = vunpack.c.h.b16 %v123
    %v407 = vunpack.c.l.b16 %v124
    %v408 = vunpack.c.h.b16 %v124
    %v409 = vunpack.c.l.b16 %v125
    %v410 = vunpack.c.h.b16 %v125
    %v411 = vunpack.c.l.b16 %v126
    %v412 = vunpack.c.h.b16 %v126
    %v413 = vunpack.c.l.b16 %v127
    %v414 = vunpack.c.h.b16 %v127
    %v415 = vunpack.c.l.b16 %v128
    %v416 = vunpack.c.h.b16 %v128
    %v417 = vpack.c.b16 %v355, %v353
    %v418 = vpack.c.b16 %v356, %v354
    %v419 = vpack.c.b16 %v359, %v357
    %v420 = vpack.c.b16 %v360, %v358
    %v421 = vpack.c.b16 %v363, %v361
    %v422 = vpack.c.b16 %v364, %v362
    %v423 = vpack.c.b16 %v367, %v365
    %v424 = vpack.c.b16 %v368, %v366
    %v425 = vpack.c.b16 %v371, %v369
    %v426 = vpack.c.b16 %v372, %v370
    %v427 = vpack.c.b16 %v375, %v373
    %v428 = vpack.c.b16 %v376, %v374
    %v429 = vpack.c.b16 %v379, %v377
    %v430 = vpack.c.b16 %v380, %v378
    %v431 = vpack.c.b16 %v383, %v381
    %v432 = vpack.c.b16 %v384, %v382
    %v433 = vpack.c.b16 %v387, %v385
    %v434 = vpack.c.b16 %v388, %v386
    %v435 = vpack.c.b16 %v391, %v389
    %v436 = vpack.c.b16 %v392, %v390
    %v437 = vpack.c.b16 %v395, %v393
    %v438 = vpack.c.b16 %v396, %v394
    %v439 = vpack.c.b16 %v399, %v397
    %v440 = vpack.c.b16 %v400, %v398
    %v441 = vpack.c.b16 %v403, %v401
    %v442 = vpack.c.b16 %v404, %v402
    %v443 = vpack.c.b16 %v407, %v405
    %v444 = vpack.c.b16 %v408, %v406
    %v445 = vpack.c.b16 %v411, %v409
    %v446 = vpack.c.b16 %v412, %v410
    %v447 = vpack.c.b16 %v415, %v413
    %v448 = vpack.c.b16 %v416, %v414
    %v673 = vunpack.c.l.b16 %v129
    %v674 = vunpack.c.h.b16 %v129
    %v675 = vunpack.c.l.b16 %v130
    %v676 = vunpack.c.h.b16 %v130
    %v677 = vunpack.c.l.b16 %v131
    %v678 = vunpack.c.h.b16 %v131
    %v679 = vunpack.c.l.b16 %v132
    %v680 = vunpack.c.h.b16 %v132
    %v681 = vunpack.c.l.b16 %v133
    %v682 = vunpack.c.h.b16 %v133
    %v683 = vunpack.c.l.b16 %v134
    %v684 = vunpack.c.h.b16 %v134
    %v685 = vunpack.c.l.b16 %v135
    %v686 = vunpack.c.h.b16 %v135
    %v687 = vunpack.c.l.b16 %v136
    %v688 = vunpack.c.h.b16 %v136
    %v689 = vunpack.c.l.b16 %v137
    %v690 = vunpack.c.h.b16 %v137
    %v691 = vunpack.c.l.b16 %v138
    %v692 = vunpack.c.h.b16 %v138
    %v693 = vunpack.c.l.b16 %v139
    %v694 = vunpack.c.h.b16 %v139
    %v695 = vunpack.c.l.b16 %v140
    %v696 = vunpack.c.h.b16 %v140
    %v697 = vunpack.c.l.b16 %v141
    %v698 = vunpack.c.h.b16 %v141
    %v699 = vunpack.c.l.b16 %v142
    %v700 = vunpack.c.h.b16 %v142
    %v701 = vunpack.c.l.b16 %v143
    %v702 = vunpack.c.h.b16 %v143
    %v703 = vunpack.c.l.b16 %v144
    %v704 = vunpack.c.h.b16 %v144
    %v705 = vunpack.c.l.b16 %v145
    %v706 = vunpack.c.h.b16 %v145
    %v707 = vunpack.c.l.b16 %v146
    %v708 = vunpack.c.h.b16 %v146
    %v709 = vunpack.c.l.b16 %v147
    %v710 = vunpack.c.h.b16 %v147
    %v711 = vunpack.c.l.b16 %v148
    %v712 = vunpack.c.h.b16 %v148
    %v713 = vunpack.c.l.b16 %v149
    %v714 = vunpack.c.h.b16 %v149
    %v715 = vunpack.c.l.b16 %v150
    %v716 = vunpack.c.h.b16 %v150
    %v717 = vunpack.c.l.b16 %v151
    %v718 = vunpack.c.h.b16 %v151
    %v719 = vunpack.c.l.b16 %v152
    %v720 = vunpack.c.h.b16 %v152
    %v721 = vunpack.c.l.b16 %v153
    %v722 = vunpack.c.h.b16 %v153
    %v723 = vunpack.c.l.b16 %v154
    %v724 = vunpack.c.h.b16 %v154
    %v725 = vunpack.c.l.b16 %v155
    %v726 = vunpack.c.h.b16 %v155
    %v727 = vunpack.c.l.b16 %v156
    %v728 = vunpack.c.h.b16 %v156
    %v729 = vunpack.c.l.b16 %v157
    %v730 = vunpack.c.h.b16 %v157
    %v731 = vunpack.c.l.b16 %v158
    %v732 = vunpack.c.h.b16 %v158
    %v733 = vunpack.c.l.b16 %v159
    %v734 = vunpack.c.h.b16 %v159
    %v735 = vunpack.c.l.b16 %v160
    %v736 = vunpack.c.h.b16 %v160
    %v737 = vunpack.c.l.b16 %v161
    %v738 = vunpack.c.h.b16 %v161
    %v739 = vunpack.c.l.b16 %v162
    %v740 = vunpack.c.h.b16 %v162
    %v741 = vunpack.c.l.b16 %v163
    %v742 = vunpack.c.h.b16 %v163
    %v743 = vunpack.c.l.b16 %v164
    %v744 = vunpack.c.h.b16 %v164
    %v745 = vunpack.c.l.b16 %v165
    %v746 = vunpack.c.h.b16 %v165
    %v747 = vunpack.c.l.b16 %v166
    %v748 = vunpack.c.h.b16 %v166
    %v749 = vunpack.c.l.b16 %v167
    %v750 = vunpack.c.h.b16 %v167
    %v751 = vunpack.c.l.b16 %v168
    %v752 = vunpack.c.h.b16 %v168
    %v753 = vunpack.c.l.b16 %v169
    %v754 = vunpack.c.h.b16 %v169
    %v755 = vunpack.c.l.b16 %v170
    %v756 = vunpack.c.h.b16 %v170
    %v757 = vunpack.c.l.b16 %v171
    %v758 = vunpack.c.h.b16 %v171
    %v759 = vunpack.c.l.b16 %v172
    %v760 = vunpack.c.h.b16 %v172
    %v761 = vunpack.c.l.b16 %v173
    %v762 = vunpack.c.h.b16 %v173
    %v763 = vunpack.c.l.b16 %v174
    %v764 = vunpack.c.h.b16 %v174
    %v765 = vunpack.c.l.b16 %v175
    %v766 = vunpack.c.h.b16 %v175
    %v767 = vunpack.c.l.b16 %v176
    %v768 = vunpack.c.h.b16 %v176
    %v769 = vunpack.c.l.b16 %v177
    %v770 = vunpack.c.h.b16 %v177
    %v771 = vunpack.c.l.b16 %v178
    %v772 = vunpack.c.h.b16 %v178
    %v773 = vunpack.c.l.b16 %v179
    %v774 = vunpack.c.h.b16 %v179
    %v775 = vunpack.c.l.b16 %v180
    %v776 = vunpack.c.h.b16 %v180
    %v777 = vunpack.c.l.b16 %v181
    %v778 = vunpack.c.h.b16 %v181
    %v779 = vunpack.c.l.b16 %v182
    %v780 = vunpack.c.h.b16 %v182
    %v781 = vunpack.c.l.b16 %v183
    %v782 = vunpack.c.h.b16 %v183
    %v783 = vunpack.c.l.b16 %v184
    %v784 = vunpack.c.h.b16 %v184
    %v785 = vunpack.c.l.b16 %v185
    %v786 = vunpack.c.h.b16 %v185
    %v787 = vunpack.c.l.b16 %v186
    %v788 = vunpack.c.h.b16 %v186
    %v789 = vunpack.c.l.b16 %v187
    %v790 = vunpack.c.h.b16 %v187
    %v791 = vunpack.c.l.b16 %v188
    %v792 = vunpack.c.h.b16 %v188
    %v793 = vunpack.c.l.b16 %v189
    %v794 = vunpack.c.h.b16 %v189
    %v795 = vunpack.c.l.b16 %v190
    %v796 = vunpack.c.h.b16 %v190
    %v797 = vunpack.c.l.b16 %v191
    %v798 = vunpack.c.h.b16 %v191
    %v799 = vunpack.c.l.b16 %v192
    %v800 = vunpack.c.h.b16 %v192
    %v801 = vunpack.c.l.b16 %v193
    %v802 = vunpack.c.h.b16 %v193
    %v803 = vunpack.c.l.b16 %v194
    %v804 = vunpack.c.h.b16 %v194
    %v805 = vunpack.c.l.b16 %v195
    %v806 = vunpack.c.h.b16 %v195
    %v807 = vunpack.c.l.b16 %v196
    %v808 = vunpack.c.h.b16 %v196
    %v809 = vunpack.c.l.b16 %v197
    %v810 = vunpack.c.h.b16 %v197
    %v811 = vunpack.c.l.b16 %v198
    %v812 = vunpack.c.h.b16 %v198
    %v813 = vunpack.c.l.b16 %v199
    %v814 = vunpack.c.h.b16 %v199
    %v815 = vunpack.c.l.b16 %v200
    %v816 = vunpack.c.h.b16 %v200
    %v817 = vunpack.c.l.b16 %v201
    %v818 = vunpack.c.h.b16 %v201
    %v819 = vunpack.c.l.b16 %v202
    %v820 = vunpack.c.h.b16 %v202
    %v821 = vunpack.c.l.b16 %v203
    %v822 = vunpack.c.h.b16 %v203
    %v823 = vunpack.c.l.b16 %v204
    %v824 = vunpack.c.h.b16 %v204
    %v825 = vunpack.c.l.b16 %v205
    %v826 = vunpack.c.h.b16 %v205
    %v827 = vunpack.c.l.b16 %v206
    %v828 = vunpack.c.h.b16 %v206
    %v829 = vunpack.c.l.b16 %v207
    %v830 = vunpack.c.h.b16 %v207
    %v831 = vunpack.c.l.b16 %v208
    %v832 = vunpack.c.h.b16 %v208
    %v833 = vunpack.c.l.b16 %v209
    %v834 = vunpack.c.h.b16 %v209
    %v835 = vunpack.c.l.b16 %v210
    %v836 = vunpack.c.h.b16 %v210
    %v837 = vunpack.c.l.b16 %v211
    %v838 = vunpack.c.h.b16 %v211
    %v839 = vunpack.c.l.b16 %v212
    %v840 = vunpack.c.h.b16 %v212
    %v841 = vunpack.c.l.b16 %v213
    %v842 = vunpack.c.h.b16 %v213
    %v843 = vunpack.c.l.b16 %v214
    %v844 = vunpack.c.h.b16 %v214
    %v845 = vunpack.c.l.b16 %v215
    %v846 = vunpack.c.h.b16 %v215
    %v847 = vunpack.c.l.b16 %v216
    %v848 = vunpack.c.h.b16 %v216
    %v849 = vunpack.c.l.b16 %v217
    %v850 = vunpack.c.h.b16 %v217
    %v851 = vunpack.c.l.b16 %v218
    %v852 = vunpack.c.h.b16 %v218
    %v853 = vunpack.c.l.b16 %v219
    %v854 = vunpack.c.h.b16 %v219
    %v855 = vunpack.c.l.b16 %v220
    %v856 = vunpack.c.h.b16 %v220
    %v857 = vunpack.c.l.b16 %v221
    %v858 = vunpack.c.h.b16 %v221
    %v859 = vunpack.c.l.b16 %v222
    %v860 = vunpack.c.h.b16 %v222
    %v861 = vunpack.c.l.b16 %v223
    %v862 = vunpack.c.h.b16 %v223
    %v863 = vunpack.c.l.b16 %v224
    %v864 = vunpack.c.h.b16 %v224
    %v865 = vunpack.c.l.b16 %v225
    %v866 = vunpack.c.h.b16 %v225
    %v867 = vunpack.c.l.b16 %v226
    %v868 = vunpack.c.h.b16 %v226
    %v869 = vunpack.c.l.b16 %v227
    %v870 = vunpack.c.h.b16 %v227
    %v871 = vunpack.c.l.b16 %v228
    %v872 = vunpack.c.h.b16 %v228
    %v873 = vunpack.c.l.b16 %v229
    %v874 = vunpack.c.h.b16 %v229
    %v875 = vunpack.c.l.b16 %v230
    %v876 = vunpack.c.h.b16 %v230
    %v877 = vunpack.c.l.b16 %v231
    %v878 = vunpack.c.h.b16 %v231
    %v879 = vunpack.c.l.b16 %v232
    %v880 = vunpack.c.h.b16 %v232
    %v881 = vunpack.c.l.b16 %v233
    %v882 = vunpack.c.h.b16 %v233
    %v883 = vunpack.c.l.b16 %v234
    %v884 = vunpack.c.h.b16 %v234
    %v885 = vunpack.c.l.b16 %v235
    %v886 = vunpack.c.h.b16 %v235
    %v887 = vunpack.c.l.b16 %v236
    %v888 = vunpack.c.h.b16 %v236
    %v889 = vunpack.c.l.b16 %v237
    %v890 = vunpack.c.h.b16 %v237
    %v891 = vunpack.c.l.b16 %v238
    %v892 = vunpack.c.h.b16 %v238
    %v893 = vunpack.c.l.b16 %v239
    %v894 = vunpack.c.h.b16 %v239
    %v895 = vunpack.c.l.b16 %v240
    %v896 = vunpack.c.h.b16 %v240
    %v897 = vunpack.c.l.b16 %v241
    %v898 = vunpack.c.h.b16 %v241
    %v899 = vunpack.c.l.b16 %v242
    %v900 = vunpack.c.h.b16 %v242
    %v901 = vunpack.c.l.b16 %v243
    %v902 = vunpack.c.h.b16 %v243
    %v903 = vunpack.c.l.b16 %v244
    %v904 = vunpack.c.h.b16 %v244
    %v905 = vunpack.c.l.b16 %v245
    %v906 = vunpack.c.h.b16 %v245
    %v907 = vunpack.c.l.b16 %v246
    %v908 = vunpack.c.h.b16 %v246
    %v909 = vunpack.c.l.b16 %v247
    %v910 = vunpack.c.h.b16 %v247
    %v911 = vunpack.c.l.b16 %v248
    %v912 = vunpack.c.h.b16 %v248
    %v913 = vunpack.c.l.b16 %v249
    %v914 = vunpack.c.h.b16 %v249
    %v915 = vunpack.c.l.b16 %v250
    %v916 = vunpack.c.h.b16 %v250
    %v917 = vunpack.c.l.b16 %v251
    %v918 = vunpack.c.h.b16 %v251
    %v919 = vunpack.c.l.b16 %v252
    %v920 = vunpack.c.h.b16 %v252
    %v921 = vunpack.c.l.b16 %v253
    %v922 = vunpack.c.h.b16 %v253
    %v923 = vunpack.c.l.b16 %v254
    %v924 = vunpack.c.h.b16 %v254
    %v925 = vunpack.c.l.b16 %v255
    %v926 = vunpack.c.h.b16 %v255
    %v927 = vunpack.c.l.b16 %v256
    %v928 = vunpack.c.h.b16 %v256
    %v929 = vunpack.c.l.b16 %v257
    %v930 = vunpack.c.h.b16 %v257
    %v931 = vunpack.c.l.b16 %v258
    %v932 = vunpack.c.h.b16 %v258
    %v933 = vunpack.c.l.b16 %v259
    %v934 = vunpack.c.h.b16 %v259
    %v935 = vunpack.c.l.b16 %v260
    %v936 = vunpack.c.h.b16 %v260
    %v937 = vunpack.c.l.b16 %v261
    %v938 = vunpack.c.h.b16 %v261
    %v939 = vunpack.c.l.b16 %v262
    %v940 = vunpack.c.h.b16 %v262
    %v941 = vunpack.c.l.b16 %v263
    %v942 = vunpack.c.h.b16 %v263
    %v943 = vunpack.c.l.b16 %v264
    %v944 = vunpack.c.h.b16 %v264
    %v945 = vunpack.c.l.b16 %v265
    %v946 = vunpack.c.h.b16 %v265
    %v947 = vunpack.c.l.b16 %v266
    %v948 = vunpack.c.h.b16 %v266
    %v949 = vunpack.c.l.b16 %v267
    %v950 = vunpack.c.h.b16 %v267
    %v951 = vunpack.c.l.b16 %v268
    %v952 = vunpack.c.h.b16 %v268
    %v953 = vunpack.c.l.b16 %v269
    %v954 = vunpack.c.h.b16 %v269
    %v955 = vunpack.c.l.b16 %v270
    %v956 = vunpack.c.h.b16 %v270
    %v957 = vunpack.c.l.b16 %v271
    %v958 = vunpack.c.h.b16 %v271
    %v959 = vunpack.c.l.b16 %v272
    %v960 = vunpack.c.h.b16 %v272
    %v961 = vunpack.c.l.b16 %v273
    %v962 = vunpack.c.h.b16 %v273
    %v963 = vunpack.c.l.b16 %v274
    %v964 = vunpack.c.h.b16 %v274
    %v965 = vunpack.c.l.b16 %v275
    %v966 = vunpack.c.h.b16 %v275
    %v967 = vunpack.c.l.b16 %v276
    %v968 = vunpack.c.h.b16 %v276
    %v969 = vunpack.c.l.b16 %v277
    %v970 = vunpack.c.h.b16 %v277
    %v971 = vunpack.c.l.b16 %v278
    %v972 = vunpack.c.h.b16 %v278
    %v973 = vunpack.c.l.b16 %v279
    %v974 = vunpack.c.h.b16 %v279
    %v975 = vunpack.c.l.b16 %v280
    %v976 = vunpack.c.h.b16 %v280
    %v977 = vunpack.c.l.b16 %v281
    %v978 = vunpack.c.h.b16 %v281
    %v979 = vunpack.c.l.b16 %v282
    %v980 = vunpack.c.h.b16 %v282
    %v981 = vunpack.c.l.b16 %v283
    %v982 = vunpack.c.h.b16 %v283
    %v983 = vunpack.c.l.b16 %v284
    %v984 = vunpack.c.h.b16 %v284
    %v985 = vunpack.c.l.b16 %v285
    %v986 = vunpack.c.h.b16 %v285
    %v987 = vunpack.c.l.b16 %v286
    %v988 = vunpack.c.h.b16 %v286
    %v989 = vunpack.c.l.b16 %v287
    %v990 = vunpack.c.h.b16 %v287
    %v991 = vunpack.c.l.b16 %v288
    %v992 = vunpack.c.h.b16 %v288
    %v993 = vunpack.c.l.b16 %v289
    %v994 = vunpack.c.h.b16 %v289
    %v995 = vunpack.c.l.b16 %v290
    %v996 = vunpack.c.h.b16 %v290
    %v997 = vunpack.c.l.b16 %v291
    %v998 = vunpack.c.h.b16 %v291
    %v999 = vunpack.c.l.b16 %v292
    %v1000 = vunpack.c.h.b16 %v292
    %v1001 = vunpack.c.l.b16 %v293
    %v1002 = vunpack.c.h.b16 %v293
    %v1003 = vunpack.c.l.b16 %v294
    %v1004 = vunpack.c.h.b16 %v294
    %v1005 = vunpack.c.l.b16 %v295
    %v1006 = vunpack.c.h.b16 %v295
    %v1007 = vunpack.c.l.b16 %v296
    %v1008 = vunpack.c.h.b16 %v296
    %v1009 = vunpack.c.l.b16 %v297
    %v1010 = vunpack.c.h.b16 %v297
    %v1011 = vunpack.c.l.b16 %v298
    %v1012 = vunpack.c.h.b16 %v298
    %v1013 = vunpack.c.l.b16 %v299
    %v1014 = vunpack.c.h.b16 %v299
    %v1015 = vunpack.c.l.b16 %v300
    %v1016 = vunpack.c.h.b16 %v300
    %v1017 = vunpack.c.l.b16 %v301
    %v1018 = vunpack.c.h.b16 %v301
    %v1019 = vunpack.c.l.b16 %v302
    %v1020 = vunpack.c.h.b16 %v302
    %v1021 = vunpack.c.l.b16 %v303
    %v1022 = vunpack.c.h.b16 %v303
    %v1023 = vunpack.c.l.b16 %v304
    %v1024 = vunpack.c.h.b16 %v304
    %v1025 = vunpack.c.l.b16 %v305
    %v1026 = vunpack.c.h.b16 %v305
    %v1027 = vunpack.c.l.b16 %v306
    %v1028 = vunpack.c.h.b16 %v306
    %v1029 = vunpack.c.l.b16 %v307
    %v1030 = vunpack.c.h.b16 %v307
    %v1031 = vunpack.c.l.b16 %v308
    %v1032 = vunpack.c.h.b16 %v308
    %v1033 = vunpack.c.l.b16 %v309
    %v1034 = vunpack.c.h.b16 %v309
    %v1035 = vunpack.c.l.b16 %v310
    %v1036 = vunpack.c.h.b16 %v310
    %v1037 = vunpack.c.l.b16 %v311
    %v1038 = vunpack.c.h.b16 %v311
    %v1039 = vunpack.c.l.b16 %v312
    %v1040 = vunpack.c.h.b16 %v312
    %v1041 = vunpack.c.l.b16 %v313
    %v1042 = vunpack.c.h.b16 %v313
    %v1043 = vunpack.c.l.b16 %v314
    %v1044 = vunpack.c.h.b16 %v314
    %v1045 = vunpack.c.l.b16 %v315
    %v1046 = vunpack.c.h.b16 %v315
    %v1047 = vunpack.c.l.b16 %v316
    %v1048 = vunpack.c.h.b16 %v316
    %v1049 = vunpack.c.l.b16 %v317
    %v1050 = vunpack.c.h.b16 %v317
    %v1051 = vunpack.c.l.b16 %v318
    %v1052 = vunpack.c.h.b16 %v318
    %v1053 = vunpack.c.l.b16 %v319
    %v1054 = vunpack.c.h.b16 %v319
    %v1055 = vunpack.c.l.b16 %v320
    %v1056 = vunpack.c.h.b16 %v320
    %v1057 = vpack.c.b16 %v685, %v673
    %v1058 = vpack.c.b16 %v686, %v674
    %v1059 = vpack.c.b16 %v687, %v675
    %v1060 = vpack.c.b16 %v688, %v676
    %v1061 = vpack.c.b16 %v689, %v677
    %v1062 = vpack.c.b16 %v690, %v678
    %v1063 = vpack.c.b16 %v691, %v679
    %v1064 = vpack.c.b16 %v692, %v680
    %v1065 = vpack.c.b16 %v693, %v681
    %v1066 = vpack.c.b16 %v694, %v682
    %v1067 = vpack.c.b16 %v695, %v683
    %v1068 = vpack.c.b16 %v696, %v684
    %v1069 = vpack.c.b16 %v709, %v697
    %v1070 = vpack.c.b16 %v710, %v698
    %v1071 = vpack.c.b16 %v711, %v699
    %v1072 = vpack.c.b16 %v712, %v700
    %v1073 = vpack.c.b16 %v713, %v701
    %v1074 = vpack.c.b16 %v714, %v702
    %v1075 = vpack.c.b16 %v715, %v703
    %v1076 = vpack.c.b16 %v716, %v704
    %v1077 = vpack.c.b16 %v717, %v705
    %v1078 = vpack.c.b16 %v718, %v706
    %v1079 = vpack.c.b16 %v719, %v707
    %v1080 = vpack.c.b16 %v720, %v708
    %v1081 = vpack.c.b16 %v733, %v721
    %v1082 = vpack.c.b16 %v734, %v722
    %v1083 = vpack.c.b16 %v735, %v723
    %v1084 = vpack.c.b16 %v736, %v724
    %v1085 = vpack.c.b16 %v737, %v725
    %v1086 = vpack.c.b16 %v738, %v726
    %v1087 = vpack.c.b16 %v739, %v727
    %v1088 = vpack.c.b16 %v740, %v728
    %v1089 = vpack.c.b16 %v741, %v729
    %v1090 = vpack.c.b16 %v742, %v730
    %v1091 = vpack.c.b16 %v743, %v731
    %v1092 = vpack.c.b16 %v744, %v732
    %v1093 = vpack.c.b16 %v757, %v745
    %v1094 = vpack.c.b16 %v758, %v746
    %v1095 = vpack.c.b16 %v759, %v747
    %v1096 = vpack.c.b16 %v760, %v748
    %v1097 = vpack.c.b16 %v761, %v749
    %v1098 = vpack.c.b16 %v762, %v750
    %v1099 = vpack.c.b16 %v763, %v751
    %v1100 = vpack.c.b16 %v764, %v752
    %v1101 = vpack.c.b16 %v765, %v753
    %v1102 = vpack.c.b16 %v766, %v754
    %v1103 = vpack.c.b16 %v767, %v755
    %v1104 = vpack.c.b16 %v768, %v756
    %v1105 = vpack.c.b16 %v781, %v769
    %v1106 = vpack.c.b16 %v782, %v770
    %v1107 = vpack.c.b16 %v783, %v771
    %v1108 = vpack.c.b16 %v784, %v772
    %v1109 = vpack.c.b16 %v785, %v773
    %v1110 = vpack.c.b16 %v786, %v774
    %v1111 = vpack.c.b16 %v787, %v775
    %v1112 = vpack.c.b16 %v788, %v776
    %v1113 = vpack.c.b16 %v789, %v777
    %v1114 = vpack.c.b16 %v790, %v778
    %v1115 = vpack.c.b16 %v791, %v779
    %v1116 = vpack.c.b16 %v792, %v780
    %v1117 = vpack.c.b16 %v805, %v793
    %v1118 = vpack.c.b16 %v806, %v794
    %v1119 = vpack.c.b16 %v807, %v795
    %v1120 = vpack.c.b16 %v808, %v796
    %v1121 = vpack.c.b16 %v809, %v797
    %v1122 = vpack.c.b16 %v810, %v798
    %v1123 = vpack.c.b16 %v811, %v799
    %v1124 = vpack.c.b16 %v812, %v800
    %v1125 = vpack.c.b16 %v813, %v801
    %v1126 = vpack.c.b16 %v814, %v802
    %v1127 = vpack.c.b16 %v815, %v803
    %v1128 = vpack.c.b16 %v816, %v804
    %v1129 = vpack.c.b16 %v829, %v817
    %v1130 = vpack.c.b16 %v830, %v818
    %v1131 = vpack.c.b16 %v831, %v819
    %v1132 = vpack.c.b16 %v832, %v820
    %v1133 = vpack.c.b16 %v833, %v821
    %v1134 = vpack.c.b16 %v834, %v822
    %v1135 = vpack.c.b16 %v835, %v823
    %v1136 = vpack.c.b16 %v836, %v824
    %v1137 = vpack.c.b16 %v837, %v825
    %v1138 = vpack.c.b16 %v838, %v826
    %v1139 = vpack.c.b16 %v839, %v827
    %v1140 = vpack.c.b16 %v840, %v828
    %v1141 = vpack.c.b16 %v853, %v841
    %v1142 = vpack.c.b16 %v854, %v842
    %v1143 = vpack.c.b16 %v855, %v843
    %v1144 = vpack.c.b16 %v856, %v844
    %v1145 = vpack.c.b16 %v857, %v845
    %v1146 = vpack.c.b16 %v858, %v846
    %v1147 = vpack.c.b16 %v859, %v847
    %v1148 = vpack.c.b16 %v860, %v848
    %v1149 = vpack.c.b16 %v861, %v849
    %v1150 = vpack.c.b16 %v862, %v850
    %v1151 = vpack.c.b16 %v863, %v851
    %v1152 = vpack.c.b16 %v864, %v852
    %v1153 = vpack.c.b16 %v877, %v865
    %v1154 = vpack.c.b16 %v878, %v866
    %v1155 = vpack.c.b16 %v879, %v867
    %v1156 = vpack.c.b16 %v880, %v868
    %v1157 = vpack.c.b16 %v881, %v869
    %v1158 = vpack.c.b16 %v882, %v870
    %v1159 = vpack.c.b16 %v883, %v871
    %v1160 = vpack.c.b16 %v884, %v872
    %v1161 = vpack.c.b16 %v885, %v873
    %v1162 = vpack.c.b16 %v886, %v874
    %v1163 = vpack.c.b16 %v887, %v875
    %v1164 = vpack.c.b16 %v888, %v876
    %v1165 = vpack.c.b16 %v901, %v889
    %v1166 = vpack.c.b16 %v902, %v890
    %v1167 = vpack.c.b16 %v903, %v891
    %v1168 = vpack.c.b16 %v904, %v892
    %v1169 = vpack.c.b16 %v905, %v893
    %v1170 = vpack.c.b16 %v906, %v894
    %v1171 = vpack.c.b16 %v907, %v895
    %v1172 = vpack.c.b16 %v908, %v896
    %v1173 = vpack.c.b16 %v909, %v897
    %v1174 = vpack.c.b16 %v910, %v898
    %v1175 = vpack.c.b16 %v911, %v899
    %v1176 = vpack.c.b16 %v912, %v900
    %v1177 = vpack.c.b16 %v925, %v913
    %v1178 = vpack.c.b16 %v926, %v914
    %v1179 = vpack.c.b16 %v927, %v915
    %v1180 = vpack.c.b16 %v928, %v916
    %v1181 = vpack.c.b16 %v929, %v917
    %v1182 = vpack.c.b16 %v930, %v918
    %v1183 = vpack.c.b16 %v931, %v919
    %v1184 = vpack.c.b16 %v932, %v920
    %v1185 = vpack.c.b16 %v933, %v921
    %v1186 = vpack.c.b16 %v934, %v922
    %v1187 = vpack.c.b16 %v935, %v923
    %v1188 = vpack.c.b16 %v936, %v924
    %v1189 = vpack.c.b16 %v949, %v937
    %v1190 = vpack.c.b16 %v950, %v938
    %v1191 = vpack.c.b16 %v951, %v939
    %v1192 = vpack.c.b16 %v952, %v940
    %v1193 = vpack.c.b16 %v953, %v941
    %v1194 = vpack.c.b16 %v954, %v942
    %v1195 = vpack.c.b16 %v955, %v943
    %v1196 = vpack.c.b16 %v956, %v944
    %v1197 = vpack.c.b16 %v957, %v945
    %v1198 = vpack.c.b16 %v958, %v946
    %v1199 = vpack.c.b16 %v959, %v947
    %v1200 = vpack.c.b16 %v960, %v948
    %v1201 = vpack.c.b16 %v973, %v961
    %v1202 = vpack.c.b16 %v974, %v962
    %v1203 = vpack.c.b16 %v975, %v963
    %v1204 = vpack.c.b16 %v976, %v964
    %v1205 = vpack.c.b16 %v977, %v965
    %v1206 = vpack.c.b16 %v978, %v966
    %v1207 = vpack.c.b16 %v979, %v967
    %v1208 = vpack.c.b16 %v980, %v968
    %v1209 = vpack.c.b16 %v981, %v969
    %v1210 = vpack.c.b16 %v982, %v970
    %v1211 = vpack.c.b16 %v983, %v971
    %v1212 = vpack.c.b16 %v984, %v972
    %v1213 = vpack.c.b16 %v997, %v985
    %v1214 = vpack.c.b16 %v998, %v986
    %v1215 = vpack.c.b16 %v999, %v987
    %v1216 = vpack.c.b16 %v1000, %v988
    %v1217 = vpack.c.b16 %v1001, %v989
    %v1218 = vpack.c.b16 %v1002, %v990
    %v1219 = vpack.c.b16 %v1003, %v991
    %v1220 = vpack.c.b16 %v1004, %v992
    %v1221 = vpack.c.b16 %v1005, %v993
    %v1222 = vpack.c.b16 %v1006, %v994
    %v1223 = vpack.c.b16 %v1007, %v995
    %v1224 = vpack.c.b16 %v1008, %v996
    %v1225 = vpack.c.b16 %v1021, %v1009
    %v1226 = vpack.c.b16 %v1022, %v1010
    %v1227 = vpack.c.b16 %v1023, %v1011
    %v1228 = vpack.c.b16 %v1024, %v1012
    %v1229 = vpack.c.b16 %v1025, %v1013
    %v1230 = vpack.c.b16 %v1026, %v1014
    %v1231 = vpack.c.b16 %v1027, %v1015
    %v1232 = vpack.c.b16 %v1028, %v1016
    %v1233 = vpack.c.b16 %v1029, %v1017
    %v1234 = vpack.c.b16 %v1030, %v1018
    %v1235 = vpack.c.b16 %v1031, %v1019
    %v1236 = vpack.c.b16 %v1032, %v1020
    %v1237 = vpack.c.b16 %v1045, %v1033
    %v1238 = vpack.c.b16 %v1046, %v1034
    %v1239 = vpack.c.b16 %v1047, %v1035
    %v1240 = vpack.c.b16 %v1048, %v1036
    %v1241 = vpack.c.b16 %v1049, %v1037
    %v1242 = vpack.c.b16 %v1050, %v1038
    %v1243 = vpack.c.b16 %v1051, %v1039
    %v1244 = vpack.c.b16 %v1052, %v1040
    %v1245 = vpack.c.b16 %v1053, %v1041
    %v1246 = vpack.c.b16 %v1054, %v1042
    %v1247 = vpack.c.b16 %v1055, %v1043
    %v1248 = vpack.c.b16 %v1056, %v1044
    %1441 = vmatprep.subr.bf16.mxu0 %v1142
    %1442 = vmatpush1.bf16.msra.mxu0 %v1141
    %1443 = vmatprep.subr.bf16.mxu0 %v1130
    %1444 = vmatpush1.bf16.msra.mxu0 %v1129
    %1445 = vmatprep.subr.bf16.mxu0 %v1118
    %1446 = vmatpush1.bf16.msra.mxu0 %v1117
    %1447 = vmatprep.subr.bf16.mxu0 %v1106
    %1448 = vmatpush1.bf16.msra.mxu0 %v1105
    %1449 = vmatprep.subr.bf16.mxu0 %v1094
    %1450 = vmatpush1.bf16.msra.mxu0 %v1093
    %1451 = vmatprep.subr.bf16.mxu0 %v1082
    %1452 = vmatpush1.bf16.msra.mxu0 %v1081
    %1453 = vmatprep.subr.bf16.mxu0 %v1070
    %1454 = vmatpush1.bf16.msra.mxu0 %v1069
    %1455 = vmatprep.subr.bf16.mxu0 %v1058
    %1456 = vmatpush1.bf16.msra.mxu0 %v1057
    %1457 = vmatprep.subr.bf16.mxu0 %v1238
    %1458 = vmatpush2.bf16.msra.mxu0 %v1237
    %1459 = vmatprep.subr.bf16.mxu0 %v1226
    %1460 = vmatpush2.bf16.msra.mxu0 %v1225
    %1461 = vmatprep.subr.bf16.mxu0 %v1214
    %1462 = vmatpush2.bf16.msra.mxu0 %v1213
    %1463 = vmatprep.subr.bf16.mxu0 %v1202
    %1464 = vmatpush2.bf16.msra.mxu0 %v1201
    %1465 = vmatprep.subr.bf16.mxu0 %v1190
    %1466 = vmatpush2.bf16.msra.mxu0 %v1189
    %1467 = vmatprep.subr.bf16.mxu0 %v1178
    %1468 = vmatpush2.bf16.msra.mxu0 %v1177
    %1469 = vmatprep.subr.bf16.mxu0 %v1166
    %1470 = vmatpush2.bf16.msra.mxu0 %v1165
    %1471 = vmatprep.subr.bf16.mxu0 %v1154
    %1472 = vmatpush2.bf16.msra.mxu0 %v1153
    %1473 = vmatprep.mubr.bf16.mxu0 %v418
    %1474 = vmatmul.mubr.bf16.gmra.mxu0 %v417
    %v1475 = vpop.f32.mrf.mxu0
    %v1476 = vadd.f32 0.0, %v1475
    %v1477 = vpop.f32.mrf.mxu0
    %v1478 = vadd.f32 0.0, %v1477
    %v1479 = vpop.f32.mrf.mxu0
    %v1480 = vadd.f32 0.0, %v1479
    %v1481 = vpop.f32.mrf.mxu0
    %v1482 = vadd.f32 0.0, %v1481
    %1483 = vmatprep.mubr.bf16.mxu0 %v420
    %1484 = vmatmul.mubr.bf16.gmra.mxu0 %v419
    %v1485 = vpop.f32.mrf.mxu0
    %v1486 = vadd.f32 0.0, %v1485
    %v1487 = vpop.f32.mrf.mxu0
    %v1488 = vadd.f32 0.0, %v1487
    %v1489 = vpop.f32.mrf.mxu0
    %v1490 = vadd.f32 0.0, %v1489
    %v1491 = vpop.f32.mrf.mxu0
    %v1492 = vadd.f32 0.0, %v1491
    %1493 = vmatprep.mubr.bf16.mxu0 %v422
    %1494 = vmatmul.mubr.bf16.gmra.mxu0 %v421
    %v1495 = vpop.f32.mrf.mxu0
    %v1496 = vadd.f32 0.0, %v1495
    %v1497 = vpop.f32.mrf.mxu0
    %v1498 = vadd.f32 0.0, %v1497
    %v1499 = vpop.f32.mrf.mxu0
    %v1500 = vadd.f32 0.0, %v1499
    %v1501 = vpop.f32.mrf.mxu0
    %v1502 = vadd.f32 0.0, %v1501
    %1503 = vmatprep.mubr.bf16.mxu0 %v424
    %1504 = vmatmul.mubr.bf16.gmra.mxu0 %v423
    %v1505 = vpop.f32.mrf.mxu0
    %v1506 = vadd.f32 0.0, %v1505
    %v1507 = vpop.f32.mrf.mxu0
    %v1508 = vadd.f32 0.0, %v1507
    %v1509 = vpop.f32.mrf.mxu0
    %v1510 = vadd.f32 0.0, %v1509
    %v1511 = vpop.f32.mrf.mxu0
    %v1512 = vadd.f32 0.0, %v1511
    %1513 = vmatprep.mubr.bf16.mxu0 %v426
    %1514 = vmatmul.mubr.bf16.gmra.mxu0 %v425
    %v1515 = vpop.f32.mrf.mxu0
    %v1516 = vadd.f32 0.0, %v1515
    %v1517 = vpop.f32.mrf.mxu0
    %v1518 = vadd.f32 0.0, %v1517
    %v1519 = vpop.f32.mrf.mxu0
    %v1520 = vadd.f32 0.0, %v1519
    %v1521 = vpop.f32.mrf.mxu0
    %v1522 = vadd.f32 0.0, %v1521
    %1523 = vmatprep.mubr.bf16.mxu0 %v428
    %1524 = vmatmul.mubr.bf16.gmra.mxu0 %v427
    %v1525 = vpop.f32.mrf.mxu0
    %v1526 = vadd.f32 0.0, %v1525
    %v1527 = vpop.f32.mrf.mxu0
    %v1528 = vadd.f32 0.0, %v1527
    %v1529 = vpop.f32.mrf.mxu0
    %v1530 = vadd.f32 0.0, %v1529
    %v1531 = vpop.f32.mrf.mxu0
    %v1532 = vadd.f32 0.0, %v1531
    %1533 = vmatprep.mubr.bf16.mxu0 %v430
    %1534 = vmatmul.mubr.bf16.gmra.mxu0 %v429
    %v1535 = vpop.f32.mrf.mxu0
    %v1536 = vadd.f32 0.0, %v1535
    %v1537 = vpop.f32.mrf.mxu0
    %v1538 = vadd.f32 0.0, %v1537
    %v1539 = vpop.f32.mrf.mxu0
    %v1540 = vadd.f32 0.0, %v1539
    %v1541 = vpop.f32.mrf.mxu0
    %v1542 = vadd.f32 0.0, %v1541
    %1543 = vmatprep.mubr.bf16.mxu0 %v432
    %1544 = vmatmul.mubr.bf16.gmra.mxu0 %v431
    %v1545 = vpop.f32.mrf.mxu0
    %v1546 = vadd.f32 0.0, %v1545
    %v1547 = vpop.f32.mrf.mxu0
    %v1548 = vadd.f32 0.0, %v1547
    %v1549 = vpop.f32.mrf.mxu0
    %v1550 = vadd.f32 0.0, %v1549
    %v1551 = vpop.f32.mrf.mxu0
    %v1552 = vadd.f32 0.0, %v1551
    %1553 = vmatprep.mubr.bf16.mxu0 %v434
    %1554 = vmatmul.mubr.bf16.gmra.mxu0 %v433
    %v1555 = vpop.f32.mrf.mxu0
    %v1556 = vadd.f32 0.0, %v1555
    %v1557 = vpop.f32.mrf.mxu0
    %v1558 = vadd.f32 0.0, %v1557
    %v1559 = vpop.f32.mrf.mxu0
    %v1560 = vadd.f32 0.0, %v1559
    %v1561 = vpop.f32.mrf.mxu0
    %v1562 = vadd.f32 0.0, %v1561
    %1563 = vmatprep.mubr.bf16.mxu0 %v436
    %1564 = vmatmul.mubr.bf16.gmra.mxu0 %v435
    %v1565 = vpop.f32.mrf.mxu0
    %v1566 = vadd.f32 0.0, %v1565
    %v1567 = vpop.f32.mrf.mxu0
    %v1568 = vadd.f32 0.0, %v1567
    %v1569 = vpop.f32.mrf.mxu0
    %v1570 = vadd.f32 0.0, %v1569
    %v1571 = vpop.f32.mrf.mxu0
    %v1572 = vadd.f32 0.0, %v1571
    %1573 = vmatprep.mubr.bf16.mxu0 %v438
    %1574 = vmatmul.mubr.bf16.gmra.mxu0 %v437
    %v1575 = vpop.f32.mrf.mxu0
    %v1576 = vadd.f32 0.0, %v1575
    %v1577 = vpop.f32.mrf.mxu0
    %v1578 = vadd.f32 0.0, %v1577
    %v1579 = vpop.f32.mrf.mxu0
    %v1580 = vadd.f32 0.0, %v1579
    %v1581 = vpop.f32.mrf.mxu0
    %v1582 = vadd.f32 0.0, %v1581
    %1583 = vmatprep.mubr.bf16.mxu0 %v440
    %1584 = vmatmul.mubr.bf16.gmra.mxu0 %v439
    %v1585 = vpop.f32.mrf.mxu0
    %v1586 = vadd.f32 0.0, %v1585
    %v1587 = vpop.f32.mrf.mxu0
    %v1588 = vadd.f32 0.0, %v1587
    %v1589 = vpop.f32.mrf.mxu0
    %v1590 = vadd.f32 0.0, %v1589
    %v1591 = vpop.f32.mrf.mxu0
    %v1592 = vadd.f32 0.0, %v1591
    %1593 = vmatprep.mubr.bf16.mxu0 %v442
    %1594 = vmatmul.mubr.bf16.gmra.mxu0 %v441
    %v1595 = vpop.f32.mrf.mxu0
    %v1596 = vadd.f32 0.0, %v1595
    %v1597 = vpop.f32.mrf.mxu0
    %v1598 = vadd.f32 0.0, %v1597
    %v1599 = vpop.f32.mrf.mxu0
    %v1600 = vadd.f32 0.0, %v1599
    %v1601 = vpop.f32.mrf.mxu0
    %v1602 = vadd.f32 0.0, %v1601
    %1603 = vmatprep.mubr.bf16.mxu0 %v444
    %1604 = vmatmul.mubr.bf16.gmra.mxu0 %v443
    %v1605 = vpop.f32.mrf.mxu0
    %v1606 = vadd.f32 0.0, %v1605
    %v1607 = vpop.f32.mrf.mxu0
    %v1608 = vadd.f32 0.0, %v1607
    %v1609 = vpop.f32.mrf.mxu0
    %v1610 = vadd.f32 0.0, %v1609
    %v1611 = vpop.f32.mrf.mxu0
    %v1612 = vadd.f32 0.0, %v1611
    %1613 = vmatprep.mubr.bf16.mxu0 %v446
    %1614 = vmatmul.mubr.bf16.gmra.mxu0 %v445
    %v1615 = vpop.f32.mrf.mxu0
    %v1616 = vadd.f32 0.0, %v1615
    %v1617 = vpop.f32.mrf.mxu0
    %v1618 = vadd.f32 0.0, %v1617
    %v1619 = vpop.f32.mrf.mxu0
    %v1620 = vadd.f32 0.0, %v1619
    %v1621 = vpop.f32.mrf.mxu0
    %v1622 = vadd.f32 0.0, %v1621
    %1623 = vmatprep.mubr.bf16.mxu0 %v448
    %1624 = vmatmul.mubr.bf16.gmra.mxu0 %v447
    %v1625 = vpop.f32.mrf.mxu0
    %v1626 = vadd.f32 0.0, %v1625
    %v1627 = vpop.f32.mrf.mxu0
    %v1628 = vadd.f32 0.0, %v1627
    %v1629 = vpop.f32.mrf.mxu0
    %v1630 = vadd.f32 0.0, %v1629
    %v1631 = vpop.f32.mrf.mxu0
    %v1632 = vadd.f32 0.0, %v1631
    %1633 = vdwg.mxu0
    %1634 = vmatprep.subr.bf16.mxu0 %v1144
    %1635 = vmatpush1.bf16.msra.mxu0 %v1143
    %1636 = vmatprep.subr.bf16.mxu0 %v1132
    %1637 = vmatpush1.bf16.msra.mxu0 %v1131
    %1638 = vmatprep.subr.bf16.mxu0 %v1120
    %1639 = vmatpush1.bf16.msra.mxu0 %v1119
    %1640 = vmatprep.subr.bf16.mxu0 %v1108
    %1641 = vmatpush1.bf16.msra.mxu0 %v1107
    %1642 = vmatprep.subr.bf16.mxu0 %v1096
    %1643 = vmatpush1.bf16.msra.mxu0 %v1095
    %1644 = vmatprep.subr.bf16.mxu0 %v1084
    %1645 = vmatpush1.bf16.msra.mxu0 %v1083
    %1646 = vmatprep.subr.bf16.mxu0 %v1072
    %1647 = vmatpush1.bf16.msra.mxu0 %v1071
    %1648 = vmatprep.subr.bf16.mxu0 %v1060
    %1649 = vmatpush1.bf16.msra.mxu0 %v1059
    %1650 = vmatprep.subr.bf16.mxu0 %v1240
    %1651 = vmatpush2.bf16.msra.mxu0 %v1239
    %1652 = vmatprep.subr.bf16.mxu0 %v1228
    %1653 = vmatpush2.bf16.msra.mxu0 %v1227
    %1654 = vmatprep.subr.bf16.mxu0 %v1216
    %1655 = vmatpush2.bf16.msra.mxu0 %v1215
    %1656 = vmatprep.subr.bf16.mxu0 %v1204
    %1657 = vmatpush2.bf16.msra.mxu0 %v1203
    %1658 = vmatprep.subr.bf16.mxu0 %v1192
    %1659 = vmatpush2.bf16.msra.mxu0 %v1191
    %1660 = vmatprep.subr.bf16.mxu0 %v1180
    %1661 = vmatpush2.bf16.msra.mxu0 %v1179
    %1662 = vmatprep.subr.bf16.mxu0 %v1168
    %1663 = vmatpush2.bf16.msra.mxu0 %v1167
    %1664 = vmatprep.subr.bf16.mxu0 %v1156
    %1665 = vmatpush2.bf16.msra.mxu0 %v1155
    %1666 = vmatprep.mubr.bf16.mxu0 %v418
    %1667 = vmatmul.mubr.bf16.gmra.mxu0 %v417
    %v1668 = vpop.f32.mrf.mxu0
    %v1669 = vadd.f32 0.0, %v1668
    %v1670 = vpop.f32.mrf.mxu0
    %v1671 = vadd.f32 0.0, %v1670
    %v1672 = vpop.f32.mrf.mxu0
    %v1673 = vadd.f32 0.0, %v1672
    %v1674 = vpop.f32.mrf.mxu0
    %v1675 = vadd.f32 0.0, %v1674
    %1676 = vmatprep.mubr.bf16.mxu0 %v420
    %1677 = vmatmul.mubr.bf16.gmra.mxu0 %v419
    %v1678 = vpop.f32.mrf.mxu0
    %v1679 = vadd.f32 0.0, %v1678
    %v1680 = vpop.f32.mrf.mxu0
    %v1681 = vadd.f32 0.0, %v1680
    %v1682 = vpop.f32.mrf.mxu0
    %v1683 = vadd.f32 0.0, %v1682
    %v1684 = vpop.f32.mrf.mxu0
    %v1685 = vadd.f32 0.0, %v1684
    %1686 = vmatprep.mubr.bf16.mxu0 %v422
    %1687 = vmatmul.mubr.bf16.gmra.mxu0 %v421
    %v1688 = vpop.f32.mrf.mxu0
    %v1689 = vadd.f32 0.0, %v1688
    %v1690 = vpop.f32.mrf.mxu0
    %v1691 = vadd.f32 0.0, %v1690
    %v1692 = vpop.f32.mrf.mxu0
    %v1693 = vadd.f32 0.0, %v1692
    %v1694 = vpop.f32.mrf.mxu0
    %v1695 = vadd.f32 0.0, %v1694
    %1696 = vmatprep.mubr.bf16.mxu0 %v424
    %1697 = vmatmul.mubr.bf16.gmra.mxu0 %v423
    %v1698 = vpop.f32.mrf.mxu0
    %v1699 = vadd.f32 0.0, %v1698
    %v1700 = vpop.f32.mrf.mxu0
    %v1701 = vadd.f32 0.0, %v1700
    %v1702 = vpop.f32.mrf.mxu0
    %v1703 = vadd.f32 0.0, %v1702
    %v1704 = vpop.f32.mrf.mxu0
    %v1705 = vadd.f32 0.0, %v1704
    %1706 = vmatprep.mubr.bf16.mxu0 %v426
    %1707 = vmatmul.mubr.bf16.gmra.mxu0 %v425
    %v1708 = vpop.f32.mrf.mxu0
    %v1709 = vadd.f32 0.0, %v1708
    %v1710 = vpop.f32.mrf.mxu0
    %v1711 = vadd.f32 0.0, %v1710
    %v1712 = vpop.f32.mrf.mxu0
    %v1713 = vadd.f32 0.0, %v1712
    %v1714 = vpop.f32.mrf.mxu0
    %v1715 = vadd.f32 0.0, %v1714
    %1716 = vmatprep.mubr.bf16.mxu0 %v428
    %1717 = vmatmul.mubr.bf16.gmra.mxu0 %v427
    %v1718 = vpop.f32.mrf.mxu0
    %v1719 = vadd.f32 0.0, %v1718
    %v1720 = vpop.f32.mrf.mxu0
    %v1721 = vadd.f32 0.0, %v1720
    %v1722 = vpop.f32.mrf.mxu0
    %v1723 = vadd.f32 0.0, %v1722
    %v1724 = vpop.f32.mrf.mxu0
    %v1725 = vadd.f32 0.0, %v1724
    %1726 = vmatprep.mubr.bf16.mxu0 %v430
    %1727 = vmatmul.mubr.bf16.gmra.mxu0 %v429
    %v1728 = vpop.f32.mrf.mxu0
    %v1729 = vadd.f32 0.0, %v1728
    %v1730 = vpop.f32.mrf.mxu0
    %v1731 = vadd.f32 0.0, %v1730
    %v1732 = vpop.f32.mrf.mxu0
    %v1733 = vadd.f32 0.0, %v1732
    %v1734 = vpop.f32.mrf.mxu0
    %v1735 = vadd.f32 0.0, %v1734
    %1736 = vmatprep.mubr.bf16.mxu0 %v432
    %1737 = vmatmul.mubr.bf16.gmra.mxu0 %v431
    %v1738 = vpop.f32.mrf.mxu0
    %v1739 = vadd.f32 0.0, %v1738
    %v1740 = vpop.f32.mrf.mxu0
    %v1741 = vadd.f32 0.0, %v1740
    %v1742 = vpop.f32.mrf.mxu0
    %v1743 = vadd.f32 0.0, %v1742
    %v1744 = vpop.f32.mrf.mxu0
    %v1745 = vadd.f32 0.0, %v1744
    %1746 = vmatprep.mubr.bf16.mxu0 %v434
    %1747 = vmatmul.mubr.bf16.gmra.mxu0 %v433
    %v1748 = vpop.f32.mrf.mxu0
    %v1749 = vadd.f32 0.0, %v1748
    %v1750 = vpop.f32.mrf.mxu0
    %v1751 = vadd.f32 0.0, %v1750
    %v1752 = vpop.f32.mrf.mxu0
    %v1753 = vadd.f32 0.0, %v1752
    %v1754 = vpop.f32.mrf.mxu0
    %v1755 = vadd.f32 0.0, %v1754
    %1756 = vmatprep.mubr.bf16.mxu0 %v436
    %1757 = vmatmul.mubr.bf16.gmra.mxu0 %v435
    %v1758 = vpop.f32.mrf.mxu0
    %v1759 = vadd.f32 0.0, %v1758
    %v1760 = vpop.f32.mrf.mxu0
    %v1761 = vadd.f32 0.0, %v1760
    %v1762 = vpop.f32.mrf.mxu0
    %v1763 = vadd.f32 0.0, %v1762
    %v1764 = vpop.f32.mrf.mxu0
    %v1765 = vadd.f32 0.0, %v1764
    %1766 = vmatprep.mubr.bf16.mxu0 %v438
    %1767 = vmatmul.mubr.bf16.gmra.mxu0 %v437
    %v1768 = vpop.f32.mrf.mxu0
    %v1769 = vadd.f32 0.0, %v1768
    %v1770 = vpop.f32.mrf.mxu0
    %v1771 = vadd.f32 0.0, %v1770
    %v1772 = vpop.f32.mrf.mxu0
    %v1773 = vadd.f32 0.0, %v1772
    %v1774 = vpop.f32.mrf.mxu0
    %v1775 = vadd.f32 0.0, %v1774
    %1776 = vmatprep.mubr.bf16.mxu0 %v440
    %1777 = vmatmul.mubr.bf16.gmra.mxu0 %v439
    %v1778 = vpop.f32.mrf.mxu0
    %v1779 = vadd.f32 0.0, %v1778
    %v1780 = vpop.f32.mrf.mxu0
    %v1781 = vadd.f32 0.0, %v1780
    %v1782 = vpop.f32.mrf.mxu0
    %v1783 = vadd.f32 0.0, %v1782
    %v1784 = vpop.f32.mrf.mxu0
    %v1785 = vadd.f32 0.0, %v1784
    %1786 = vmatprep.mubr.bf16.mxu0 %v442
    %1787 = vmatmul.mubr.bf16.gmra.mxu0 %v441
    %v1788 = vpop.f32.mrf.mxu0
    %v1789 = vadd.f32 0.0, %v1788
    %v1790 = vpop.f32.mrf.mxu0
    %v1791 = vadd.f32 0.0, %v1790
    %v1792 = vpop.f32.mrf.mxu0
    %v1793 = vadd.f32 0.0, %v1792
    %v1794 = vpop.f32.mrf.mxu0
    %v1795 = vadd.f32 0.0, %v1794
    %1796 = vmatprep.mubr.bf16.mxu0 %v444
    %1797 = vmatmul.mubr.bf16.gmra.mxu0 %v443
    %v1798 = vpop.f32.mrf.mxu0
    %v1799 = vadd.f32 0.0, %v1798
    %v1800 = vpop.f32.mrf.mxu0
    %v1801 = vadd.f32 0.0, %v1800
    %v1802 = vpop.f32.mrf.mxu0
    %v1803 = vadd.f32 0.0, %v1802
    %v1804 = vpop.f32.mrf.mxu0
    %v1805 = vadd.f32 0.0, %v1804
    %1806 = vmatprep.mubr.bf16.mxu0 %v446
    %1807 = vmatmul.mubr.bf16.gmra.mxu0 %v445
    %v1808 = vpop.f32.mrf.mxu0
    %v1809 = vadd.f32 0.0, %v1808
    %v1810 = vpop.f32.mrf.mxu0
    %v1811 = vadd.f32 0.0, %v1810
    %v1812 = vpop.f32.mrf.mxu0
    %v1813 = vadd.f32 0.0, %v1812
    %v1814 = vpop.f32.mrf.mxu0
    %v1815 = vadd.f32 0.0, %v1814
    %1816 = vmatprep.mubr.bf16.mxu0 %v448
    %1817 = vmatmul.mubr.bf16.gmra.mxu0 %v447
    %v1818 = vpop.f32.mrf.mxu0
    %v1819 = vadd.f32 0.0, %v1818
    %v1820 = vpop.f32.mrf.mxu0
    %v1821 = vadd.f32 0.0, %v1820
    %v1822 = vpop.f32.mrf.mxu0
    %v1823 = vadd.f32 0.0, %v1822
    %v1824 = vpop.f32.mrf.mxu0
    %v1825 = vadd.f32 0.0, %v1824
    %1826 = vdwg.mxu0
    %1827 = vmatprep.subr.bf16.mxu0 %v1146
    %1828 = vmatpush1.bf16.msra.mxu0 %v1145
    %1829 = vmatprep.subr.bf16.mxu0 %v1134
    %1830 = vmatpush1.bf16.msra.mxu0 %v1133
    %1831 = vmatprep.subr.bf16.mxu0 %v1122
    %1832 = vmatpush1.bf16.msra.mxu0 %v1121
    %1833 = vmatprep.subr.bf16.mxu0 %v1110
    %1834 = vmatpush1.bf16.msra.mxu0 %v1109
    %1835 = vmatprep.subr.bf16.mxu0 %v1098
    %1836 = vmatpush1.bf16.msra.mxu0 %v1097
    %1837 = vmatprep.subr.bf16.mxu0 %v1086
    %1838 = vmatpush1.bf16.msra.mxu0 %v1085
    %1839 = vmatprep.subr.bf16.mxu0 %v1074
    %1840 = vmatpush1.bf16.msra.mxu0 %v1073
    %1841 = vmatprep.subr.bf16.mxu0 %v1062
    %1842 = vmatpush1.bf16.msra.mxu0 %v1061
    %1843 = vmatprep.subr.bf16.mxu0 %v1242
    %1844 = vmatpush2.bf16.msra.mxu0 %v1241
    %1845 = vmatprep.subr.bf16.mxu0 %v1230
    %1846 = vmatpush2.bf16.msra.mxu0 %v1229
    %1847 = vmatprep.subr.bf16.mxu0 %v1218
    %1848 = vmatpush2.bf16.msra.mxu0 %v1217
    %1849 = vmatprep.subr.bf16.mxu0 %v1206
    %1850 = vmatpush2.bf16.msra.mxu0 %v1205
    %1851 = vmatprep.subr.bf16.mxu0 %v1194
    %1852 = vmatpush2.bf16.msra.mxu0 %v1193
    %1853 = vmatprep.subr.bf16.mxu0 %v1182
    %1854 = vmatpush2.bf16.msra.mxu0 %v1181
    %1855 = vmatprep.subr.bf16.mxu0 %v1170
    %1856 = vmatpush2.bf16.msra.mxu0 %v1169
    %1857 = vmatprep.subr.bf16.mxu0 %v1158
    %1858 = vmatpush2.bf16.msra.mxu0 %v1157
    %1859 = vmatprep.mubr.bf16.mxu0 %v418
    %1860 = vmatmul.mubr.bf16.gmra.mxu0 %v417
    %v1861 = vpop.f32.mrf.mxu0
    %v1862 = vadd.f32 0.0, %v1861
    %v1863 = vpop.f32.mrf.mxu0
    %v1864 = vadd.f32 0.0, %v1863
    %v1865 = vpop.f32.mrf.mxu0
    %v1866 = vadd.f32 0.0, %v1865
    %v1867 = vpop.f32.mrf.mxu0
    %v1868 = vadd.f32 0.0, %v1867
    %1869 = vmatprep.mubr.bf16.mxu0 %v420
    %1870 = vmatmul.mubr.bf16.gmra.mxu0 %v419
    %v1871 = vpop.f32.mrf.mxu0
    %v1872 = vadd.f32 0.0, %v1871
    %v1873 = vpop.f32.mrf.mxu0
    %v1874 = vadd.f32 0.0, %v1873
    %v1875 = vpop.f32.mrf.mxu0
    %v1876 = vadd.f32 0.0, %v1875
    %v1877 = vpop.f32.mrf.mxu0
    %v1878 = vadd.f32 0.0, %v1877
    %1879 = vmatprep.mubr.bf16.mxu0 %v422
    %1880 = vmatmul.mubr.bf16.gmra.mxu0 %v421
    %v1881 = vpop.f32.mrf.mxu0
    %v1882 = vadd.f32 0.0, %v1881
    %v1883 = vpop.f32.mrf.mxu0
    %v1884 = vadd.f32 0.0, %v1883
    %v1885 = vpop.f32.mrf.mxu0
    %v1886 = vadd.f32 0.0, %v1885
    %v1887 = vpop.f32.mrf.mxu0
    %v1888 = vadd.f32 0.0, %v1887
    %1889 = vmatprep.mubr.bf16.mxu0 %v424
    %1890 = vmatmul.mubr.bf16.gmra.mxu0 %v423
    %v1891 = vpop.f32.mrf.mxu0
    %v1892 = vadd.f32 0.0, %v1891
    %v1893 = vpop.f32.mrf.mxu0
    %v1894 = vadd.f32 0.0, %v1893
    %v1895 = vpop.f32.mrf.mxu0
    %v1896 = vadd.f32 0.0, %v1895
    %v1897 = vpop.f32.mrf.mxu0
    %v1898 = vadd.f32 0.0, %v1897
    %1899 = vmatprep.mubr.bf16.mxu0 %v426
    %1900 = vmatmul.mubr.bf16.gmra.mxu0 %v425
    %v1901 = vpop.f32.mrf.mxu0
    %v1902 = vadd.f32 0.0, %v1901
    %v1903 = vpop.f32.mrf.mxu0
    %v1904 = vadd.f32 0.0, %v1903
    %v1905 = vpop.f32.mrf.mxu0
    %v1906 = vadd.f32 0.0, %v1905
    %v1907 = vpop.f32.mrf.mxu0
    %v1908 = vadd.f32 0.0, %v1907
    %1909 = vmatprep.mubr.bf16.mxu0 %v428
    %1910 = vmatmul.mubr.bf16.gmra.mxu0 %v427
    %v1911 = vpop.f32.mrf.mxu0
    %v1912 = vadd.f32 0.0, %v1911
    %v1913 = vpop.f32.mrf.mxu0
    %v1914 = vadd.f32 0.0, %v1913
    %v1915 = vpop.f32.mrf.mxu0
    %v1916 = vadd.f32 0.0, %v1915
    %v1917 = vpop.f32.mrf.mxu0
    %v1918 = vadd.f32 0.0, %v1917
    %1919 = vmatprep.mubr.bf16.mxu0 %v430
    %1920 = vmatmul.mubr.bf16.gmra.mxu0 %v429
    %v1921 = vpop.f32.mrf.mxu0
    %v1922 = vadd.f32 0.0, %v1921
    %v1923 = vpop.f32.mrf.mxu0
    %v1924 = vadd.f32 0.0, %v1923
    %v1925 = vpop.f32.mrf.mxu0
    %v1926 = vadd.f32 0.0, %v1925
    %v1927 = vpop.f32.mrf.mxu0
    %v1928 = vadd.f32 0.0, %v1927
    %1929 = vmatprep.mubr.bf16.mxu0 %v432
    %1930 = vmatmul.mubr.bf16.gmra.mxu0 %v431
    %v1931 = vpop.f32.mrf.mxu0
    %v1932 = vadd.f32 0.0, %v1931
    %v1933 = vpop.f32.mrf.mxu0
    %v1934 = vadd.f32 0.0, %v1933
    %v1935 = vpop.f32.mrf.mxu0
    %v1936 = vadd.f32 0.0, %v1935
    %v1937 = vpop.f32.mrf.mxu0
    %v1938 = vadd.f32 0.0, %v1937
    %1939 = vmatprep.mubr.bf16.mxu0 %v434
    %1940 = vmatmul.mubr.bf16.gmra.mxu0 %v433
    %v1941 = vpop.f32.mrf.mxu0
    %v1942 = vadd.f32 0.0, %v1941
    %v1943 = vpop.f32.mrf.mxu0
    %v1944 = vadd.f32 0.0, %v1943
    %v1945 = vpop.f32.mrf.mxu0
    %v1946 = vadd.f32 0.0, %v1945
    %v1947 = vpop.f32.mrf.mxu0
    %v1948 = vadd.f32 0.0, %v1947
    %1949 = vmatprep.mubr.bf16.mxu0 %v436
    %1950 = vmatmul.mubr.bf16.gmra.mxu0 %v435
    %v1951 = vpop.f32.mrf.mxu0
    %v1952 = vadd.f32 0.0, %v1951
    %v1953 = vpop.f32.mrf.mxu0
    %v1954 = vadd.f32 0.0, %v1953
    %v1955 = vpop.f32.mrf.mxu0
    %v1956 = vadd.f32 0.0, %v1955
    %v1957 = vpop.f32.mrf.mxu0
    %v1958 = vadd.f32 0.0, %v1957
    %1959 = vmatprep.mubr.bf16.mxu0 %v438
    %1960 = vmatmul.mubr.bf16.gmra.mxu0 %v437
    %v1961 = vpop.f32.mrf.mxu0
    %v1962 = vadd.f32 0.0, %v1961
    %v1963 = vpop.f32.mrf.mxu0
    %v1964 = vadd.f32 0.0, %v1963
    %v1965 = vpop.f32.mrf.mxu0
    %v1966 = vadd.f32 0.0, %v1965
    %v1967 = vpop.f32.mrf.mxu0
    %v1968 = vadd.f32 0.0, %v1967
    %1969 = vmatprep.mubr.bf16.mxu0 %v440
    %1970 = vmatmul.mubr.bf16.gmra.mxu0 %v439
    %v1971 = vpop.f32.mrf.mxu0
    %v1972 = vadd.f32 0.0, %v1971
    %v1973 = vpop.f32.mrf.mxu0
    %v1974 = vadd.f32 0.0, %v1973
    %v1975 = vpop.f32.mrf.mxu0
    %v1976 = vadd.f32 0.0, %v1975
    %v1977 = vpop.f32.mrf.mxu0
    %v1978 = vadd.f32 0.0, %v1977
    %1979 = vmatprep.mubr.bf16.mxu0 %v442
    %1980 = vmatmul.mubr.bf16.gmra.mxu0 %v441
    %v1981 = vpop.f32.mrf.mxu0
    %v1982 = vadd.f32 0.0, %v1981
    %v1983 = vpop.f32.mrf.mxu0
    %v1984 = vadd.f32 0.0, %v1983
    %v1985 = vpop.f32.mrf.mxu0
    %v1986 = vadd.f32 0.0, %v1985
    %v1987 = vpop.f32.mrf.mxu0
    %v1988 = vadd.f32 0.0, %v1987
    %1989 = vmatprep.mubr.bf16.mxu0 %v444
    %1990 = vmatmul.mubr.bf16.gmra.mxu0 %v443
    %v1991 = vpop.f32.mrf.mxu0
    %v1992 = vadd.f32 0.0, %v1991
    %v1993 = vpop.f32.mrf.mxu0
    %v1994 = vadd.f32 0.0, %v1993
    %v1995 = vpop.f32.mrf.mxu0
    %v1996 = vadd.f32 0.0, %v1995
    %v1997 = vpop.f32.mrf.mxu0
    %v1998 = vadd.f32 0.0, %v1997
    %1999 = vmatprep.mubr.bf16.mxu0 %v446
    %2000 = vmatmul.mubr.bf16.gmra.mxu0 %v445
    %v2001 = vpop.f32.mrf.mxu0
    %v2002 = vadd.f32 0.0, %v2001
    %v2003 = vpop.f32.mrf.mxu0
    %v2004 = vadd.f32 0.0, %v2003
    %v2005 = vpop.f32.mrf.mxu0
    %v2006 = vadd.f32 0.0, %v2005
    %v2007 = vpop.f32.mrf.mxu0
    %v2008 = vadd.f32 0.0, %v2007
    %2009 = vmatprep.mubr.bf16.mxu0 %v448
    %2010 = vmatmul.mubr.bf16.gmra.mxu0 %v447
    %v2011 = vpop.f32.mrf.mxu0
    %v2012 = vadd.f32 0.0, %v2011
    %v2013 = vpop.f32.mrf.mxu0
    %v2014 = vadd.f32 0.0, %v2013
    %v2015 = vpop.f32.mrf.mxu0
    %v2016 = vadd.f32 0.0, %v2015
    %v2017 = vpop.f32.mrf.mxu0
    %v2018 = vadd.f32 0.0, %v2017
    %2019 = vdwg.mxu0
    %2020 = vmatprep.subr.bf16.mxu0 %v1148
    %2021 = vmatpush1.bf16.msra.mxu0 %v1147
    %2022 = vmatprep.subr.bf16.mxu0 %v1136
    %2023 = vmatpush1.bf16.msra.mxu0 %v1135
    %2024 = vmatprep.subr.bf16.mxu0 %v1124
    %2025 = vmatpush1.bf16.msra.mxu0 %v1123
    %2026 = vmatprep.subr.bf16.mxu0 %v1112
    %2027 = vmatpush1.bf16.msra.mxu0 %v1111
    %2028 = vmatprep.subr.bf16.mxu0 %v1100
    %2029 = vmatpush1.bf16.msra.mxu0 %v1099
    %2030 = vmatprep.subr.bf16.mxu0 %v1088
    %2031 = vmatpush1.bf16.msra.mxu0 %v1087
    %2032 = vmatprep.subr.bf16.mxu0 %v1076
    %2033 = vmatpush1.bf16.msra.mxu0 %v1075
    %2034 = vmatprep.subr.bf16.mxu0 %v1064
    %2035 = vmatpush1.bf16.msra.mxu0 %v1063
    %2036 = vmatprep.subr.bf16.mxu0 %v1244
    %2037 = vmatpush2.bf16.msra.mxu0 %v1243
    %2038 = vmatprep.subr.bf16.mxu0 %v1232
    %2039 = vmatpush2.bf16.msra.mxu0 %v1231
    %2040 = vmatprep.subr.bf16.mxu0 %v1220
    %2041 = vmatpush2.bf16.msra.mxu0 %v1219
    %2042 = vmatprep.subr.bf16.mxu0 %v1208
    %2043 = vmatpush2.bf16.msra.mxu0 %v1207
    %2044 = vmatprep.subr.bf16.mxu0 %v1196
    %2045 = vmatpush2.bf16.msra.mxu0 %v1195
    %2046 = vmatprep.subr.bf16.mxu0 %v1184
    %2047 = vmatpush2.bf16.msra.mxu0 %v1183
    %2048 = vmatprep.subr.bf16.mxu0 %v1172
    %2049 = vmatpush2.bf16.msra.mxu0 %v1171
    %2050 = vmatprep.subr.bf16.mxu0 %v1160
    %2051 = vmatpush2.bf16.msra.mxu0 %v1159
    %2052 = vmatprep.mubr.bf16.mxu0 %v418
    %2053 = vmatmul.mubr.bf16.gmra.mxu0 %v417
    %v2054 = vpop.f32.mrf.mxu0
    %v2055 = vadd.f32 0.0, %v2054
    %v2056 = vpop.f32.mrf.mxu0
    %v2057 = vadd.f32 0.0, %v2056
    %v2058 = vpop.f32.mrf.mxu0
    %v2059 = vadd.f32 0.0, %v2058
    %v2060 = vpop.f32.mrf.mxu0
    %v2061 = vadd.f32 0.0, %v2060
    %2062 = vmatprep.mubr.bf16.mxu0 %v420
    %2063 = vmatmul.mubr.bf16.gmra.mxu0 %v419
    %v2064 = vpop.f32.mrf.mxu0
    %v2065 = vadd.f32 0.0, %v2064
    %v2066 = vpop.f32.mrf.mxu0
    %v2067 = vadd.f32 0.0, %v2066
    %v2068 = vpop.f32.mrf.mxu0
    %v2069 = vadd.f32 0.0, %v2068
    %v2070 = vpop.f32.mrf.mxu0
    %v2071 = vadd.f32 0.0, %v2070
    %2072 = vmatprep.mubr.bf16.mxu0 %v422
    %2073 = vmatmul.mubr.bf16.gmra.mxu0 %v421
    %v2074 = vpop.f32.mrf.mxu0
    %v2075 = vadd.f32 0.0, %v2074
    %v2076 = vpop.f32.mrf.mxu0
    %v2077 = vadd.f32 0.0, %v2076
    %v2078 = vpop.f32.mrf.mxu0
    %v2079 = vadd.f32 0.0, %v2078
    %v2080 = vpop.f32.mrf.mxu0
    %v2081 = vadd.f32 0.0, %v2080
    %2082 = vmatprep.mubr.bf16.mxu0 %v424
    %2083 = vmatmul.mubr.bf16.gmra.mxu0 %v423
    %v2084 = vpop.f32.mrf.mxu0
    %v2085 = vadd.f32 0.0, %v2084
    %v2086 = vpop.f32.mrf.mxu0
    %v2087 = vadd.f32 0.0, %v2086
    %v2088 = vpop.f32.mrf.mxu0
    %v2089 = vadd.f32 0.0, %v2088
    %v2090 = vpop.f32.mrf.mxu0
    %v2091 = vadd.f32 0.0, %v2090
    %2092 = vmatprep.mubr.bf16.mxu0 %v426
    %2093 = vmatmul.mubr.bf16.gmra.mxu0 %v425
    %v2094 = vpop.f32.mrf.mxu0
    %v2095 = vadd.f32 0.0, %v2094
    %v2096 = vpop.f32.mrf.mxu0
    %v2097 = vadd.f32 0.0, %v2096
    %v2098 = vpop.f32.mrf.mxu0
    %v2099 = vadd.f32 0.0, %v2098
    %v2100 = vpop.f32.mrf.mxu0
    %v2101 = vadd.f32 0.0, %v2100
    %2102 = vmatprep.mubr.bf16.mxu0 %v428
    %2103 = vmatmul.mubr.bf16.gmra.mxu0 %v427
    %v2104 = vpop.f32.mrf.mxu0
    %v2105 = vadd.f32 0.0, %v2104
    %v2106 = vpop.f32.mrf.mxu0
    %v2107 = vadd.f32 0.0, %v2106
    %v2108 = vpop.f32.mrf.mxu0
    %v2109 = vadd.f32 0.0, %v2108
    %v2110 = vpop.f32.mrf.mxu0
    %v2111 = vadd.f32 0.0, %v2110
    %2112 = vmatprep.mubr.bf16.mxu0 %v430
    %2113 = vmatmul.mubr.bf16.gmra.mxu0 %v429
    %v2114 = vpop.f32.mrf.mxu0
    %v2115 = vadd.f32 0.0, %v2114
    %v2116 = vpop.f32.mrf.mxu0
    %v2117 = vadd.f32 0.0, %v2116
    %v2118 = vpop.f32.mrf.mxu0
    %v2119 = vadd.f32 0.0, %v2118
    %v2120 = vpop.f32.mrf.mxu0
    %v2121 = vadd.f32 0.0, %v2120
    %2122 = vmatprep.mubr.bf16.mxu0 %v432
    %2123 = vmatmul.mubr.bf16.gmra.mxu0 %v431
    %v2124 = vpop.f32.mrf.mxu0
    %v2125 = vadd.f32 0.0, %v2124
    %v2126 = vpop.f32.mrf.mxu0
    %v2127 = vadd.f32 0.0, %v2126
    %v2128 = vpop.f32.mrf.mxu0
    %v2129 = vadd.f32 0.0, %v2128
    %v2130 = vpop.f32.mrf.mxu0
    %v2131 = vadd.f32 0.0, %v2130
    %2132 = vmatprep.mubr.bf16.mxu0 %v434
    %2133 = vmatmul.mubr.bf16.gmra.mxu0 %v433
    %v2134 = vpop.f32.mrf.mxu0
    %v2135 = vadd.f32 0.0, %v2134
    %v2136 = vpop.f32.mrf.mxu0
    %v2137 = vadd.f32 0.0, %v2136
    %v2138 = vpop.f32.mrf.mxu0
    %v2139 = vadd.f32 0.0, %v2138
    %v2140 = vpop.f32.mrf.mxu0
    %v2141 = vadd.f32 0.0, %v2140
    %2142 = vmatprep.mubr.bf16.mxu0 %v436
    %2143 = vmatmul.mubr.bf16.gmra.mxu0 %v435
    %v2144 = vpop.f32.mrf.mxu0
    %v2145 = vadd.f32 0.0, %v2144
    %v2146 = vpop.f32.mrf.mxu0
    %v2147 = vadd.f32 0.0, %v2146
    %v2148 = vpop.f32.mrf.mxu0
    %v2149 = vadd.f32 0.0, %v2148
    %v2150 = vpop.f32.mrf.mxu0
    %v2151 = vadd.f32 0.0, %v2150
    %2152 = vmatprep.mubr.bf16.mxu0 %v438
    %2153 = vmatmul.mubr.bf16.gmra.mxu0 %v437
    %v2154 = vpop.f32.mrf.mxu0
    %v2155 = vadd.f32 0.0, %v2154
    %v2156 = vpop.f32.mrf.mxu0
    %v2157 = vadd.f32 0.0, %v2156
    %v2158 = vpop.f32.mrf.mxu0
    %v2159 = vadd.f32 0.0, %v2158
    %v2160 = vpop.f32.mrf.mxu0
    %v2161 = vadd.f32 0.0, %v2160
    %2162 = vmatprep.mubr.bf16.mxu0 %v440
    %2163 = vmatmul.mubr.bf16.gmra.mxu0 %v439
    %v2164 = vpop.f32.mrf.mxu0
    %v2165 = vadd.f32 0.0, %v2164
    %v2166 = vpop.f32.mrf.mxu0
    %v2167 = vadd.f32 0.0, %v2166
    %v2168 = vpop.f32.mrf.mxu0
    %v2169 = vadd.f32 0.0, %v2168
    %v2170 = vpop.f32.mrf.mxu0
    %v2171 = vadd.f32 0.0, %v2170
    %2172 = vmatprep.mubr.bf16.mxu0 %v442
    %2173 = vmatmul.mubr.bf16.gmra.mxu0 %v441
    %v2174 = vpop.f32.mrf.mxu0
    %v2175 = vadd.f32 0.0, %v2174
    %v2176 = vpop.f32.mrf.mxu0
    %v2177 = vadd.f32 0.0, %v2176
    %v2178 = vpop.f32.mrf.mxu0
    %v2179 = vadd.f32 0.0, %v2178
    %v2180 = vpop.f32.mrf.mxu0
    %v2181 = vadd.f32 0.0, %v2180
    %2182 = vmatprep.mubr.bf16.mxu0 %v444
    %2183 = vmatmul.mubr.bf16.gmra.mxu0 %v443
    %v2184 = vpop.f32.mrf.mxu0
    %v2185 = vadd.f32 0.0, %v2184
    %v2186 = vpop.f32.mrf.mxu0
    %v2187 = vadd.f32 0.0, %v2186
    %v2188 = vpop.f32.mrf.mxu0
    %v2189 = vadd.f32 0.0, %v2188
    %v2190 = vpop.f32.mrf.mxu0
    %v2191 = vadd.f32 0.0, %v2190
    %2192 = vmatprep.mubr.bf16.mxu0 %v446
    %2193 = vmatmul.mubr.bf16.gmra.mxu0 %v445
    %v2194 = vpop.f32.mrf.mxu0
    %v2195 = vadd.f32 0.0, %v2194
    %v2196 = vpop.f32.mrf.mxu0
    %v2197 = vadd.f32 0.0, %v2196
    %v2198 = vpop.f32.mrf.mxu0
    %v2199 = vadd.f32 0.0, %v2198
    %v2200 = vpop.f32.mrf.mxu0
    %v2201 = vadd.f32 0.0, %v2200
    %2202 = vmatprep.mubr.bf16.mxu0 %v448
    %2203 = vmatmul.mubr.bf16.gmra.mxu0 %v447
    %v2204 = vpop.f32.mrf.mxu0
    %v2205 = vadd.f32 0.0, %v2204
    %v2206 = vpop.f32.mrf.mxu0
    %v2207 = vadd.f32 0.0, %v2206
    %v2208 = vpop.f32.mrf.mxu0
    %v2209 = vadd.f32 0.0, %v2208
    %v2210 = vpop.f32.mrf.mxu0
    %v2211 = vadd.f32 0.0, %v2210
    %2212 = vdwg.mxu0
    %2213 = vmatprep.subr.bf16.mxu0 %v1150
    %2214 = vmatpush1.bf16.msra.mxu0 %v1149
    %2215 = vmatprep.subr.bf16.mxu0 %v1138
    %2216 = vmatpush1.bf16.msra.mxu0 %v1137
    %2217 = vmatprep.subr.bf16.mxu0 %v1126
    %2218 = vmatpush1.bf16.msra.mxu0 %v1125
    %2219 = vmatprep.subr.bf16.mxu0 %v1114
    %2220 = vmatpush1.bf16.msra.mxu0 %v1113
    %2221 = vmatprep.subr.bf16.mxu0 %v1102
    %2222 = vmatpush1.bf16.msra.mxu0 %v1101
    %2223 = vmatprep.subr.bf16.mxu0 %v1090
    %2224 = vmatpush1.bf16.msra.mxu0 %v1089
    %2225 = vmatprep.subr.bf16.mxu0 %v1078
    %2226 = vmatpush1.bf16.msra.mxu0 %v1077
    %2227 = vmatprep.subr.bf16.mxu0 %v1066
    %2228 = vmatpush1.bf16.msra.mxu0 %v1065
    %2229 = vmatprep.subr.bf16.mxu0 %v1246
    %2230 = vmatpush2.bf16.msra.mxu0 %v1245
    %2231 = vmatprep.subr.bf16.mxu0 %v1234
    %2232 = vmatpush2.bf16.msra.mxu0 %v1233
    %2233 = vmatprep.subr.bf16.mxu0 %v1222
    %2234 = vmatpush2.bf16.msra.mxu0 %v1221
    %2235 = vmatprep.subr.bf16.mxu0 %v1210
    %2236 = vmatpush2.bf16.msra.mxu0 %v1209
    %2237 = vmatprep.subr.bf16.mxu0 %v1198
    %2238 = vmatpush2.bf16.msra.mxu0 %v1197
    %2239 = vmatprep.subr.bf16.mxu0 %v1186
    %2240 = vmatpush2.bf16.msra.mxu0 %v1185
    %2241 = vmatprep.subr.bf16.mxu0 %v1174
    %2242 = vmatpush2.bf16.msra.mxu0 %v1173
    %2243 = vmatprep.subr.bf16.mxu0 %v1162
    %2244 = vmatpush2.bf16.msra.mxu0 %v1161
    %2245 = vmatprep.mubr.bf16.mxu0 %v418
    %2246 = vmatmul.mubr.bf16.gmra.mxu0 %v417
    %v2247 = vpop.f32.mrf.mxu0
    %v2248 = vadd.f32 0.0, %v2247
    %v2249 = vpop.f32.mrf.mxu0
    %v2250 = vadd.f32 0.0, %v2249
    %v2251 = vpop.f32.mrf.mxu0
    %v2252 = vadd.f32 0.0, %v2251
    %v2253 = vpop.f32.mrf.mxu0
    %v2254 = vadd.f32 0.0, %v2253
    %2255 = vmatprep.mubr.bf16.mxu0 %v420
    %2256 = vmatmul.mubr.bf16.gmra.mxu0 %v419
    %v2257 = vpop.f32.mrf.mxu0
    %v2258 = vadd.f32 0.0, %v2257
    %v2259 = vpop.f32.mrf.mxu0
    %v2260 = vadd.f32 0.0, %v2259
    %v2261 = vpop.f32.mrf.mxu0
    %v2262 = vadd.f32 0.0, %v2261
    %v2263 = vpop.f32.mrf.mxu0
    %v2264 = vadd.f32 0.0, %v2263
    %2265 = vmatprep.mubr.bf16.mxu0 %v422
    %2266 = vmatmul.mubr.bf16.gmra.mxu0 %v421
    %v2267 = vpop.f32.mrf.mxu0
    %v2268 = vadd.f32 0.0, %v2267
    %v2269 = vpop.f32.mrf.mxu0
    %v2270 = vadd.f32 0.0, %v2269
    %v2271 = vpop.f32.mrf.mxu0
    %v2272 = vadd.f32 0.0, %v2271
    %v2273 = vpop.f32.mrf.mxu0
    %v2274 = vadd.f32 0.0, %v2273
    %2275 = vmatprep.mubr.bf16.mxu0 %v424
    %2276 = vmatmul.mubr.bf16.gmra.mxu0 %v423
    %v2277 = vpop.f32.mrf.mxu0
    %v2278 = vadd.f32 0.0, %v2277
    %v2279 = vpop.f32.mrf.mxu0
    %v2280 = vadd.f32 0.0, %v2279
    %v2281 = vpop.f32.mrf.mxu0
    %v2282 = vadd.f32 0.0, %v2281
    %v2283 = vpop.f32.mrf.mxu0
    %v2284 = vadd.f32 0.0, %v2283
    %2285 = vmatprep.mubr.bf16.mxu0 %v426
    %2286 = vmatmul.mubr.bf16.gmra.mxu0 %v425
    %v2287 = vpop.f32.mrf.mxu0
    %v2288 = vadd.f32 0.0, %v2287
    %v2289 = vpop.f32.mrf.mxu0
    %v2290 = vadd.f32 0.0, %v2289
    %v2291 = vpop.f32.mrf.mxu0
    %v2292 = vadd.f32 0.0, %v2291
    %v2293 = vpop.f32.mrf.mxu0
    %v2294 = vadd.f32 0.0, %v2293
    %2295 = vmatprep.mubr.bf16.mxu0 %v428
    %2296 = vmatmul.mubr.bf16.gmra.mxu0 %v427
    %v2297 = vpop.f32.mrf.mxu0
    %v2298 = vadd.f32 0.0, %v2297
    %v2299 = vpop.f32.mrf.mxu0
    %v2300 = vadd.f32 0.0, %v2299
    %v2301 = vpop.f32.mrf.mxu0
    %v2302 = vadd.f32 0.0, %v2301
    %v2303 = vpop.f32.mrf.mxu0
    %v2304 = vadd.f32 0.0, %v2303
    %2305 = vmatprep.mubr.bf16.mxu0 %v430
    %2306 = vmatmul.mubr.bf16.gmra.mxu0 %v429
    %v2307 = vpop.f32.mrf.mxu0
    %v2308 = vadd.f32 0.0, %v2307
    %v2309 = vpop.f32.mrf.mxu0
    %v2310 = vadd.f32 0.0, %v2309
    %v2311 = vpop.f32.mrf.mxu0
    %v2312 = vadd.f32 0.0, %v2311
    %v2313 = vpop.f32.mrf.mxu0
    %v2314 = vadd.f32 0.0, %v2313
    %2315 = vmatprep.mubr.bf16.mxu0 %v432
    %2316 = vmatmul.mubr.bf16.gmra.mxu0 %v431
    %v2317 = vpop.f32.mrf.mxu0
    %v2318 = vadd.f32 0.0, %v2317
    %v2319 = vpop.f32.mrf.mxu0
    %v2320 = vadd.f32 0.0, %v2319
    %v2321 = vpop.f32.mrf.mxu0
    %v2322 = vadd.f32 0.0, %v2321
    %v2323 = vpop.f32.mrf.mxu0
    %v2324 = vadd.f32 0.0, %v2323
    %2325 = vmatprep.mubr.bf16.mxu0 %v434
    %2326 = vmatmul.mubr.bf16.gmra.mxu0 %v433
    %v2327 = vpop.f32.mrf.mxu0
    %v2328 = vadd.f32 0.0, %v2327
    %v2329 = vpop.f32.mrf.mxu0
    %v2330 = vadd.f32 0.0, %v2329
    %v2331 = vpop.f32.mrf.mxu0
    %v2332 = vadd.f32 0.0, %v2331
    %v2333 = vpop.f32.mrf.mxu0
    %v2334 = vadd.f32 0.0, %v2333
    %2335 = vmatprep.mubr.bf16.mxu0 %v436
    %2336 = vmatmul.mubr.bf16.gmra.mxu0 %v435
    %v2337 = vpop.f32.mrf.mxu0
    %v2338 = vadd.f32 0.0, %v2337
    %v2339 = vpop.f32.mrf.mxu0
    %v2340 = vadd.f32 0.0, %v2339
    %v2341 = vpop.f32.mrf.mxu0
    %v2342 = vadd.f32 0.0, %v2341
    %v2343 = vpop.f32.mrf.mxu0
    %v2344 = vadd.f32 0.0, %v2343
    %2345 = vmatprep.mubr.bf16.mxu0 %v438
    %2346 = vmatmul.mubr.bf16.gmra.mxu0 %v437
    %v2347 = vpop.f32.mrf.mxu0
    %v2348 = vadd.f32 0.0, %v2347
    %v2349 = vpop.f32.mrf.mxu0
    %v2350 = vadd.f32 0.0, %v2349
    %v2351 = vpop.f32.mrf.mxu0
    %v2352 = vadd.f32 0.0, %v2351
    %v2353 = vpop.f32.mrf.mxu0
    %v2354 = vadd.f32 0.0, %v2353
    %2355 = vmatprep.mubr.bf16.mxu0 %v440
    %2356 = vmatmul.mubr.bf16.gmra.mxu0 %v439
    %v2357 = vpop.f32.mrf.mxu0
    %v2358 = vadd.f32 0.0, %v2357
    %v2359 = vpop.f32.mrf.mxu0
    %v2360 = vadd.f32 0.0, %v2359
    %v2361 = vpop.f32.mrf.mxu0
    %v2362 = vadd.f32 0.0, %v2361
    %v2363 = vpop.f32.mrf.mxu0
    %v2364 = vadd.f32 0.0, %v2363
    %2365 = vmatprep.mubr.bf16.mxu0 %v442
    %2366 = vmatmul.mubr.bf16.gmra.mxu0 %v441
    %v2367 = vpop.f32.mrf.mxu0
    %v2368 = vadd.f32 0.0, %v2367
    %v2369 = vpop.f32.mrf.mxu0
    %v2370 = vadd.f32 0.0, %v2369
    %v2371 = vpop.f32.mrf.mxu0
    %v2372 = vadd.f32 0.0, %v2371
    %v2373 = vpop.f32.mrf.mxu0
    %v2374 = vadd.f32 0.0, %v2373
    %2375 = vmatprep.mubr.bf16.mxu0 %v444
    %2376 = vmatmul.mubr.bf16.gmra.mxu0 %v443
    %v2377 = vpop.f32.mrf.mxu0
    %v2378 = vadd.f32 0.0, %v2377
    %v2379 = vpop.f32.mrf.mxu0
    %v2380 = vadd.f32 0.0, %v2379
    %v2381 = vpop.f32.mrf.mxu0
    %v2382 = vadd.f32 0.0, %v2381
    %v2383 = vpop.f32.mrf.mxu0
    %v2384 = vadd.f32 0.0, %v2383
    %2385 = vmatprep.mubr.bf16.mxu0 %v446
    %2386 = vmatmul.mubr.bf16.gmra.mxu0 %v445
    %v2387 = vpop.f32.mrf.mxu0
    %v2388 = vadd.f32 0.0, %v2387
    %v2389 = vpop.f32.mrf.mxu0
    %v2390 = vadd.f32 0.0, %v2389
    %v2391 = vpop.f32.mrf.mxu0
    %v2392 = vadd.f32 0.0, %v2391
    %v2393 = vpop.f32.mrf.mxu0
    %v2394 = vadd.f32 0.0, %v2393
    %2395 = vmatprep.mubr.bf16.mxu0 %v448
    %2396 = vmatmul.mubr.bf16.gmra.mxu0 %v447
    %v2397 = vpop.f32.mrf.mxu0
    %v2398 = vadd.f32 0.0, %v2397
    %v2399 = vpop.f32.mrf.mxu0
    %v2400 = vadd.f32 0.0, %v2399
    %v2401 = vpop.f32.mrf.mxu0
    %v2402 = vadd.f32 0.0, %v2401
    %v2403 = vpop.f32.mrf.mxu0
    %v2404 = vadd.f32 0.0, %v2403
    %2405 = vdwg.mxu0
    %2406 = vmatprep.subr.bf16.mxu0 %v1152
    %2407 = vmatpush1.bf16.msra.mxu0 %v1151
    %2408 = vmatprep.subr.bf16.mxu0 %v1140
    %2409 = vmatpush1.bf16.msra.mxu0 %v1139
    %2410 = vmatprep.subr.bf16.mxu0 %v1128
    %2411 = vmatpush1.bf16.msra.mxu0 %v1127
    %2412 = vmatprep.subr.bf16.mxu0 %v1116
    %2413 = vmatpush1.bf16.msra.mxu0 %v1115
    %2414 = vmatprep.subr.bf16.mxu0 %v1104
    %2415 = vmatpush1.bf16.msra.mxu0 %v1103
    %2416 = vmatprep.subr.bf16.mxu0 %v1092
    %2417 = vmatpush1.bf16.msra.mxu0 %v1091
    %2418 = vmatprep.subr.bf16.mxu0 %v1080
    %2419 = vmatpush1.bf16.msra.mxu0 %v1079
    %2420 = vmatprep.subr.bf16.mxu0 %v1068
    %2421 = vmatpush1.bf16.msra.mxu0 %v1067
    %2422 = vmatprep.subr.bf16.mxu0 %v1248
    %2423 = vmatpush2.bf16.msra.mxu0 %v1247
    %2424 = vmatprep.subr.bf16.mxu0 %v1236
    %2425 = vmatpush2.bf16.msra.mxu0 %v1235
    %2426 = vmatprep.subr.bf16.mxu0 %v1224
    %2427 = vmatpush2.bf16.msra.mxu0 %v1223
    %2428 = vmatprep.subr.bf16.mxu0 %v1212
    %2429 = vmatpush2.bf16.msra.mxu0 %v1211
    %2430 = vmatprep.subr.bf16.mxu0 %v1200
    %2431 = vmatpush2.bf16.msra.mxu0 %v1199
    %2432 = vmatprep.subr.bf16.mxu0 %v1188
    %2433 = vmatpush2.bf16.msra.mxu0 %v1187
    %2434 = vmatprep.subr.bf16.mxu0 %v1176
    %2435 = vmatpush2.bf16.msra.mxu0 %v1175
    %2436 = vmatprep.subr.bf16.mxu0 %v1164
    %2437 = vmatpush2.bf16.msra.mxu0 %v1163
    %2438 = vmatprep.mubr.bf16.mxu0 %v418
    %2439 = vmatmul.mubr.bf16.gmra.mxu0 %v417
    %v2440 = vpop.f32.mrf.mxu0
    %v2441 = vadd.f32 0.0, %v2440
    %v2442 = vpop.f32.mrf.mxu0
    %v2443 = vadd.f32 0.0, %v2442
    %v2444 = vpop.f32.mrf.mxu0
    %v2445 = vadd.f32 0.0, %v2444
    %v2446 = vpop.f32.mrf.mxu0
    %v2447 = vadd.f32 0.0, %v2446
    %2448 = vmatprep.mubr.bf16.mxu0 %v420
    %2449 = vmatmul.mubr.bf16.gmra.mxu0 %v419
    %v2450 = vpop.f32.mrf.mxu0
    %v2451 = vadd.f32 0.0, %v2450
    %v2452 = vpop.f32.mrf.mxu0
    %v2453 = vadd.f32 0.0, %v2452
    %v2454 = vpop.f32.mrf.mxu0
    %v2455 = vadd.f32 0.0, %v2454
    %v2456 = vpop.f32.mrf.mxu0
    %v2457 = vadd.f32 0.0, %v2456
    %2458 = vmatprep.mubr.bf16.mxu0 %v422
    %2459 = vmatmul.mubr.bf16.gmra.mxu0 %v421
    %v2460 = vpop.f32.mrf.mxu0
    %v2461 = vadd.f32 0.0, %v2460
    %v2462 = vpop.f32.mrf.mxu0
    %v2463 = vadd.f32 0.0, %v2462
    %v2464 = vpop.f32.mrf.mxu0
    %v2465 = vadd.f32 0.0, %v2464
    %v2466 = vpop.f32.mrf.mxu0
    %v2467 = vadd.f32 0.0, %v2466
    %2468 = vmatprep.mubr.bf16.mxu0 %v424
    %2469 = vmatmul.mubr.bf16.gmra.mxu0 %v423
    %v2470 = vpop.f32.mrf.mxu0
    %v2471 = vadd.f32 0.0, %v2470
    %v2472 = vpop.f32.mrf.mxu0
    %v2473 = vadd.f32 0.0, %v2472
    %v2474 = vpop.f32.mrf.mxu0
    %v2475 = vadd.f32 0.0, %v2474
    %v2476 = vpop.f32.mrf.mxu0
    %v2477 = vadd.f32 0.0, %v2476
    %2478 = vmatprep.mubr.bf16.mxu0 %v426
    %2479 = vmatmul.mubr.bf16.gmra.mxu0 %v425
    %v2480 = vpop.f32.mrf.mxu0
    %v2481 = vadd.f32 0.0, %v2480
    %v2482 = vpop.f32.mrf.mxu0
    %v2483 = vadd.f32 0.0, %v2482
    %v2484 = vpop.f32.mrf.mxu0
    %v2485 = vadd.f32 0.0, %v2484
    %v2486 = vpop.f32.mrf.mxu0
    %v2487 = vadd.f32 0.0, %v2486
    %2488 = vmatprep.mubr.bf16.mxu0 %v428
    %2489 = vmatmul.mubr.bf16.gmra.mxu0 %v427
    %v2490 = vpop.f32.mrf.mxu0
    %v2491 = vadd.f32 0.0, %v2490
    %v2492 = vpop.f32.mrf.mxu0
    %v2493 = vadd.f32 0.0, %v2492
    %v2494 = vpop.f32.mrf.mxu0
    %v2495 = vadd.f32 0.0, %v2494
    %v2496 = vpop.f32.mrf.mxu0
    %v2497 = vadd.f32 0.0, %v2496
    %2498 = vmatprep.mubr.bf16.mxu0 %v430
    %2499 = vmatmul.mubr.bf16.gmra.mxu0 %v429
    %v2500 = vpop.f32.mrf.mxu0
    %v2501 = vadd.f32 0.0, %v2500
    %v2502 = vpop.f32.mrf.mxu0
    %v2503 = vadd.f32 0.0, %v2502
    %v2504 = vpop.f32.mrf.mxu0
    %v2505 = vadd.f32 0.0, %v2504
    %v2506 = vpop.f32.mrf.mxu0
    %v2507 = vadd.f32 0.0, %v2506
    %2508 = vmatprep.mubr.bf16.mxu0 %v432
    %2509 = vmatmul.mubr.bf16.gmra.mxu0 %v431
    %v2510 = vpop.f32.mrf.mxu0
    %v2511 = vadd.f32 0.0, %v2510
    %v2512 = vpop.f32.mrf.mxu0
    %v2513 = vadd.f32 0.0, %v2512
    %v2514 = vpop.f32.mrf.mxu0
    %v2515 = vadd.f32 0.0, %v2514
    %v2516 = vpop.f32.mrf.mxu0
    %v2517 = vadd.f32 0.0, %v2516
    %2518 = vmatprep.mubr.bf16.mxu0 %v434
    %2519 = vmatmul.mubr.bf16.gmra.mxu0 %v433
    %v2520 = vpop.f32.mrf.mxu0
    %v2521 = vadd.f32 0.0, %v2520
    %v2522 = vpop.f32.mrf.mxu0
    %v2523 = vadd.f32 0.0, %v2522
    %v2524 = vpop.f32.mrf.mxu0
    %v2525 = vadd.f32 0.0, %v2524
    %v2526 = vpop.f32.mrf.mxu0
    %v2527 = vadd.f32 0.0, %v2526
    %2528 = vmatprep.mubr.bf16.mxu0 %v436
    %2529 = vmatmul.mubr.bf16.gmra.mxu0 %v435
    %v2530 = vpop.f32.mrf.mxu0
    %v2531 = vadd.f32 0.0, %v2530
    %v2532 = vpop.f32.mrf.mxu0
    %v2533 = vadd.f32 0.0, %v2532
    %v2534 = vpop.f32.mrf.mxu0
    %v2535 = vadd.f32 0.0, %v2534
    %v2536 = vpop.f32.mrf.mxu0
    %v2537 = vadd.f32 0.0, %v2536
    %2538 = vmatprep.mubr.bf16.mxu0 %v438
    %2539 = vmatmul.mubr.bf16.gmra.mxu0 %v437
    %v2540 = vpop.f32.mrf.mxu0
    %v2541 = vadd.f32 0.0, %v2540
    %v2542 = vpop.f32.mrf.mxu0
    %v2543 = vadd.f32 0.0, %v2542
    %v2544 = vpop.f32.mrf.mxu0
    %v2545 = vadd.f32 0.0, %v2544
    %v2546 = vpop.f32.mrf.mxu0
    %v2547 = vadd.f32 0.0, %v2546
    %2548 = vmatprep.mubr.bf16.mxu0 %v440
    %2549 = vmatmul.mubr.bf16.gmra.mxu0 %v439
    %v2550 = vpop.f32.mrf.mxu0
    %v2551 = vadd.f32 0.0, %v2550
    %v2552 = vpop.f32.mrf.mxu0
    %v2553 = vadd.f32 0.0, %v2552
    %v2554 = vpop.f32.mrf.mxu0
    %v2555 = vadd.f32 0.0, %v2554
    %v2556 = vpop.f32.mrf.mxu0
    %v2557 = vadd.f32 0.0, %v2556
    %2558 = vmatprep.mubr.bf16.mxu0 %v442
    %2559 = vmatmul.mubr.bf16.gmra.mxu0 %v441
    %v2560 = vpop.f32.mrf.mxu0
    %v2561 = vadd.f32 0.0, %v2560
    %v2562 = vpop.f32.mrf.mxu0
    %v2563 = vadd.f32 0.0, %v2562
    %v2564 = vpop.f32.mrf.mxu0
    %v2565 = vadd.f32 0.0, %v2564
    %v2566 = vpop.f32.mrf.mxu0
    %v2567 = vadd.f32 0.0, %v2566
    %2568 = vmatprep.mubr.bf16.mxu0 %v444
    %2569 = vmatmul.mubr.bf16.gmra.mxu0 %v443
    %v2570 = vpop.f32.mrf.mxu0
    %v2571 = vadd.f32 0.0, %v2570
    %v2572 = vpop.f32.mrf.mxu0
    %v2573 = vadd.f32 0.0, %v2572
    %v2574 = vpop.f32.mrf.mxu0
    %v2575 = vadd.f32 0.0, %v2574
    %v2576 = vpop.f32.mrf.mxu0
    %v2577 = vadd.f32 0.0, %v2576
    %2578 = vmatprep.mubr.bf16.mxu0 %v446
    %2579 = vmatmul.mubr.bf16.gmra.mxu0 %v445
    %v2580 = vpop.f32.mrf.mxu0
    %v2581 = vadd.f32 0.0, %v2580
    %v2582 = vpop.f32.mrf.mxu0
    %v2583 = vadd.f32 0.0, %v2582
    %v2584 = vpop.f32.mrf.mxu0
    %v2585 = vadd.f32 0.0, %v2584
    %v2586 = vpop.f32.mrf.mxu0
    %v2587 = vadd.f32 0.0, %v2586
    %2588 = vmatprep.mubr.bf16.mxu0 %v448
    %2589 = vmatmul.mubr.bf16.gmra.mxu0 %v447
    %v2590 = vpop.f32.mrf.mxu0
    %v2591 = vadd.f32 0.0, %v2590
    %v2592 = vpop.f32.mrf.mxu0
    %v2593 = vadd.f32 0.0, %v2592
    %v2594 = vpop.f32.mrf.mxu0
    %v2595 = vadd.f32 0.0, %v2594
    %v2596 = vpop.f32.mrf.mxu0
    %v2597 = vadd.f32 0.0, %v2596
    %2598 = vdwg.mxu0
    %v2599 = vxor.u32 %v1476, 2147483648
    %v2600 = vxor.u32 %v1478, 2147483648
    %v2601 = vxor.u32 %v1669, 2147483648
    %v2602 = vxor.u32 %v1671, 2147483648
    %v2603 = vxor.u32 %v1862, 2147483648
    %v2604 = vxor.u32 %v1864, 2147483648
    %v2605 = vxor.u32 %v1480, 2147483648
    %v2606 = vxor.u32 %v1482, 2147483648
    %v2607 = vxor.u32 %v1673, 2147483648
    %v2608 = vxor.u32 %v1675, 2147483648
    %v2609 = vxor.u32 %v1866, 2147483648
    %v2610 = vxor.u32 %v1868, 2147483648
    %v2611 = vxor.u32 %v1486, 2147483648
    %v2612 = vxor.u32 %v1488, 2147483648
    %v2613 = vxor.u32 %v1679, 2147483648
    %v2614 = vxor.u32 %v1681, 2147483648
    %v2615 = vxor.u32 %v1872, 2147483648
    %v2616 = vxor.u32 %v1874, 2147483648
    %v2617 = vxor.u32 %v1490, 2147483648
    %v2618 = vxor.u32 %v1492, 2147483648
    %v2619 = vxor.u32 %v1683, 2147483648
    %v2620 = vxor.u32 %v1685, 2147483648
    %v2621 = vxor.u32 %v1876, 2147483648
    %v2622 = vxor.u32 %v1878, 2147483648
    %v2623 = vxor.u32 %v1496, 2147483648
    %v2624 = vxor.u32 %v1498, 2147483648
    %v2625 = vxor.u32 %v1689, 2147483648
    %v2626 = vxor.u32 %v1691, 2147483648
    %v2627 = vxor.u32 %v1882, 2147483648
    %v2628 = vxor.u32 %v1884, 2147483648
    %v2629 = vxor.u32 %v1500, 2147483648
    %v2630 = vxor.u32 %v1502, 2147483648
    %v2631 = vxor.u32 %v1693, 2147483648
    %v2632 = vxor.u32 %v1695, 2147483648
    %v2633 = vxor.u32 %v1886, 2147483648
    %v2634 = vxor.u32 %v1888, 2147483648
    %v2635 = vxor.u32 %v1506, 2147483648
    %v2636 = vxor.u32 %v1508, 2147483648
    %v2637 = vxor.u32 %v1699, 2147483648
    %v2638 = vxor.u32 %v1701, 2147483648
    %v2639 = vxor.u32 %v1892, 2147483648
    %v2640 = vxor.u32 %v1894, 2147483648
    %v2641 = vxor.u32 %v1510, 2147483648
    %v2642 = vxor.u32 %v1512, 2147483648
    %v2643 = vxor.u32 %v1703, 2147483648
    %v2644 = vxor.u32 %v1705, 2147483648
    %v2645 = vxor.u32 %v1896, 2147483648
    %v2646 = vxor.u32 %v1898, 2147483648
    %v2647 = vxor.u32 %v1516, 2147483648
    %v2648 = vxor.u32 %v1518, 2147483648
    %v2649 = vxor.u32 %v1709, 2147483648
    %v2650 = vxor.u32 %v1711, 2147483648
    %v2651 = vxor.u32 %v1902, 2147483648
    %v2652 = vxor.u32 %v1904, 2147483648
    %v2653 = vxor.u32 %v1520, 2147483648
    %v2654 = vxor.u32 %v1522, 2147483648
    %v2655 = vxor.u32 %v1713, 2147483648
    %v2656 = vxor.u32 %v1715, 2147483648
    %v2657 = vxor.u32 %v1906, 2147483648
    %v2658 = vxor.u32 %v1908, 2147483648
    %v2659 = vxor.u32 %v1526, 2147483648
    %v2660 = vxor.u32 %v1528, 2147483648
    %v2661 = vxor.u32 %v1719, 2147483648
    %v2662 = vxor.u32 %v1721, 2147483648
    %v2663 = vxor.u32 %v1912, 2147483648
    %v2664 = vxor.u32 %v1914, 2147483648
    %v2665 = vxor.u32 %v1530, 2147483648
    %v2666 = vxor.u32 %v1532, 2147483648
    %v2667 = vxor.u32 %v1723, 2147483648
    %v2668 = vxor.u32 %v1725, 2147483648
    %v2669 = vxor.u32 %v1916, 2147483648
    %v2670 = vxor.u32 %v1918, 2147483648
    %v2671 = vxor.u32 %v1536, 2147483648
    %v2672 = vxor.u32 %v1538, 2147483648
    %v2673 = vxor.u32 %v1729, 2147483648
    %v2674 = vxor.u32 %v1731, 2147483648
    %v2675 = vxor.u32 %v1922, 2147483648
    %v2676 = vxor.u32 %v1924, 2147483648
    %v2677 = vxor.u32 %v1540, 2147483648
    %v2678 = vxor.u32 %v1542, 2147483648
    %v2679 = vxor.u32 %v1733, 2147483648
    %v2680 = vxor.u32 %v1735, 2147483648
    %v2681 = vxor.u32 %v1926, 2147483648
    %v2682 = vxor.u32 %v1928, 2147483648
    %v2683 = vxor.u32 %v1546, 2147483648
    %v2684 = vxor.u32 %v1548, 2147483648
    %v2685 = vxor.u32 %v1739, 2147483648
    %v2686 = vxor.u32 %v1741, 2147483648
    %v2687 = vxor.u32 %v1932, 2147483648
    %v2688 = vxor.u32 %v1934, 2147483648
    %v2689 = vxor.u32 %v1550, 2147483648
    %v2690 = vxor.u32 %v1552, 2147483648
    %v2691 = vxor.u32 %v1743, 2147483648
    %v2692 = vxor.u32 %v1745, 2147483648
    %v2693 = vxor.u32 %v1936, 2147483648
    %v2694 = vxor.u32 %v1938, 2147483648
    %v2695 = vxor.u32 %v1556, 2147483648
    %v2696 = vxor.u32 %v1558, 2147483648
    %v2697 = vxor.u32 %v1749, 2147483648
    %v2698 = vxor.u32 %v1751, 2147483648
    %v2699 = vxor.u32 %v1942, 2147483648
    %v2700 = vxor.u32 %v1944, 2147483648
    %v2701 = vxor.u32 %v1560, 2147483648
    %v2702 = vxor.u32 %v1562, 2147483648
    %v2703 = vxor.u32 %v1753, 2147483648
    %v2704 = vxor.u32 %v1755, 2147483648
    %v2705 = vxor.u32 %v1946, 2147483648
    %v2706 = vxor.u32 %v1948, 2147483648
    %v2707 = vxor.u32 %v1566, 2147483648
    %v2708 = vxor.u32 %v1568, 2147483648
    %v2709 = vxor.u32 %v1759, 2147483648
    %v2710 = vxor.u32 %v1761, 2147483648
    %v2711 = vxor.u32 %v1952, 2147483648
    %v2712 = vxor.u32 %v1954, 2147483648
    %v2713 = vxor.u32 %v1570, 2147483648
    %v2714 = vxor.u32 %v1572, 2147483648
    %v2715 = vxor.u32 %v1763, 2147483648
    %v2716 = vxor.u32 %v1765, 2147483648
    %v2717 = vxor.u32 %v1956, 2147483648
    %v2718 = vxor.u32 %v1958, 2147483648
    %v2719 = vxor.u32 %v1576, 2147483648
    %v2720 = vxor.u32 %v1578, 2147483648
    %v2721 = vxor.u32 %v1769, 2147483648
    %v2722 = vxor.u32 %v1771, 2147483648
    %v2723 = vxor.u32 %v1962, 2147483648
    %v2724 = vxor.u32 %v1964, 2147483648
    %v2725 = vxor.u32 %v1580, 2147483648
    %v2726 = vxor.u32 %v1582, 2147483648
    %v2727 = vxor.u32 %v1773, 2147483648
    %v2728 = vxor.u32 %v1775, 2147483648
    %v2729 = vxor.u32 %v1966, 2147483648
    %v2730 = vxor.u32 %v1968, 2147483648
    %v2731 = vxor.u32 %v1586, 2147483648
    %v2732 = vxor.u32 %v1588, 2147483648
    %v2733 = vxor.u32 %v1779, 2147483648
    %v2734 = vxor.u32 %v1781, 2147483648
    %v2735 = vxor.u32 %v1972, 2147483648
    %v2736 = vxor.u32 %v1974, 2147483648
    %v2737 = vxor.u32 %v1590, 2147483648
    %v2738 = vxor.u32 %v1592, 2147483648
    %v2739 = vxor.u32 %v1783, 2147483648
    %v2740 = vxor.u32 %v1785, 2147483648
    %v2741 = vxor.u32 %v1976, 2147483648
    %v2742 = vxor.u32 %v1978, 2147483648
    %v2743 = vxor.u32 %v1596, 2147483648
    %v2744 = vxor.u32 %v1598, 2147483648
    %v2745 = vxor.u32 %v1789, 2147483648
    %v2746 = vxor.u32 %v1791, 2147483648
    %v2747 = vxor.u32 %v1982, 2147483648
    %v2748 = vxor.u32 %v1984, 2147483648
    %v2749 = vxor.u32 %v1600, 2147483648
    %v2750 = vxor.u32 %v1602, 2147483648
    %v2751 = vxor.u32 %v1793, 2147483648
    %v2752 = vxor.u32 %v1795, 2147483648
    %v2753 = vxor.u32 %v1986, 2147483648
    %v2754 = vxor.u32 %v1988, 2147483648
    %v2755 = vxor.u32 %v1606, 2147483648
    %v2756 = vxor.u32 %v1608, 2147483648
    %v2757 = vxor.u32 %v1799, 2147483648
    %v2758 = vxor.u32 %v1801, 2147483648
    %v2759 = vxor.u32 %v1992, 2147483648
    %v2760 = vxor.u32 %v1994, 2147483648
    %v2761 = vxor.u32 %v1610, 2147483648
    %v2762 = vxor.u32 %v1612, 2147483648
    %v2763 = vxor.u32 %v1803, 2147483648
    %v2764 = vxor.u32 %v1805, 2147483648
    %v2765 = vxor.u32 %v1996, 2147483648
    %v2766 = vxor.u32 %v1998, 2147483648
    %v2767 = vxor.u32 %v1616, 2147483648
    %v2768 = vxor.u32 %v1618, 2147483648
    %v2769 = vxor.u32 %v1809, 2147483648
    %v2770 = vxor.u32 %v1811, 2147483648
    %v2771 = vxor.u32 %v2002, 2147483648
    %v2772 = vxor.u32 %v2004, 2147483648
    %v2773 = vxor.u32 %v1620, 2147483648
    %v2774 = vxor.u32 %v1622, 2147483648
    %v2775 = vxor.u32 %v1813, 2147483648
    %v2776 = vxor.u32 %v1815, 2147483648
    %v2777 = vxor.u32 %v2006, 2147483648
    %v2778 = vxor.u32 %v2008, 2147483648
    %v2779 = vxor.u32 %v1626, 2147483648
    %v2780 = vxor.u32 %v1628, 2147483648
    %v2781 = vxor.u32 %v1819, 2147483648
    %v2782 = vxor.u32 %v1821, 2147483648
    %v2783 = vxor.u32 %v2012, 2147483648
    %v2784 = vxor.u32 %v2014, 2147483648
    %v2785 = vxor.u32 %v1630, 2147483648
    %v2786 = vxor.u32 %v1632, 2147483648
    %v2787 = vxor.u32 %v1823, 2147483648
    %v2788 = vxor.u32 %v1825, 2147483648
    %v2789 = vxor.u32 %v2016, 2147483648
    %v2790 = vxor.u32 %v2018, 2147483648
    %v2791 = vmul.f32 %v2599, 1.442695
    %v2792 = vpow.pop %v2791
    %v2793 = vmul.f32 %v2600, 1.442695
    %v2794 = vpow.pop %v2793
    %v2795 = vmul.f32 %v2601, 1.442695
    %v2796 = vpow.pop %v2795
    %v2797 = vmul.f32 %v2602, 1.442695
    %v2798 = vpow.pop %v2797
    %v2799 = vmul.f32 %v2603, 1.442695
    %v2800 = vpow.pop %v2799
    %v2801 = vmul.f32 %v2604, 1.442695
    %v2802 = vpow.pop %v2801
    %v2803 = vmul.f32 %v2605, 1.442695
    %v2804 = vpow.pop %v2803
    %v2805 = vmul.f32 %v2606, 1.442695
    %v2806 = vpow.pop %v2805
    %v2807 = vmul.f32 %v2607, 1.442695
    %v2808 = vpow.pop %v2807
    %v2809 = vmul.f32 %v2608, 1.442695
    %v2810 = vpow.pop %v2809
    %v2811 = vmul.f32 %v2609, 1.442695
    %v2812 = vpow.pop %v2811
    %v2813 = vmul.f32 %v2610, 1.442695
    %v2814 = vpow.pop %v2813
    %v2815 = vmul.f32 %v2611, 1.442695
    %v2816 = vpow.pop %v2815
    %v2817 = vmul.f32 %v2612, 1.442695
    %v2818 = vpow.pop %v2817
    %v2819 = vmul.f32 %v2613, 1.442695
    %v2820 = vpow.pop %v2819
    %v2821 = vmul.f32 %v2614, 1.442695
    %v2822 = vpow.pop %v2821
    %v2823 = vmul.f32 %v2615, 1.442695
    %v2824 = vpow.pop %v2823
    %v2825 = vmul.f32 %v2616, 1.442695
    %v2826 = vpow.pop %v2825
    %v2827 = vmul.f32 %v2617, 1.442695
    %v2828 = vpow.pop %v2827
    %v2829 = vmul.f32 %v2618, 1.442695
    %v2830 = vpow.pop %v2829
    %v2831 = vmul.f32 %v2619, 1.442695
    %v2832 = vpow.pop %v2831
    %v2833 = vmul.f32 %v2620, 1.442695
    %v2834 = vpow.pop %v2833
    %v2835 = vmul.f32 %v2621, 1.442695
    %v2836 = vpow.pop %v2835
    %v2837 = vmul.f32 %v2622, 1.442695
    %v2838 = vpow.pop %v2837
    %v2839 = vmul.f32 %v2623, 1.442695
    %v2840 = vpow.pop %v2839
    %v2841 = vmul.f32 %v2624, 1.442695
    %v2842 = vpow.pop %v2841
    %v2843 = vmul.f32 %v2625, 1.442695
    %v2844 = vpow.pop %v2843
    %v2845 = vmul.f32 %v2626, 1.442695
    %v2846 = vpow.pop %v2845
    %v2847 = vmul.f32 %v2627, 1.442695
    %v2848 = vpow.pop %v2847
    %v2849 = vmul.f32 %v2628, 1.442695
    %v2850 = vpow.pop %v2849
    %v2851 = vmul.f32 %v2629, 1.442695
    %v2852 = vpow.pop %v2851
    %v2853 = vmul.f32 %v2630, 1.442695
    %v2854 = vpow.pop %v2853
    %v2855 = vmul.f32 %v2631, 1.442695
    %v2856 = vpow.pop %v2855
    %v2857 = vmul.f32 %v2632, 1.442695
    %v2858 = vpow.pop %v2857
    %v2859 = vmul.f32 %v2633, 1.442695
    %v2860 = vpow.pop %v2859
    %v2861 = vmul.f32 %v2634, 1.442695
    %v2862 = vpow.pop %v2861
    %v2863 = vmul.f32 %v2635, 1.442695
    %v2864 = vpow.pop %v2863
    %v2865 = vmul.f32 %v2636, 1.442695
    %v2866 = vpow.pop %v2865
    %v2867 = vmul.f32 %v2637, 1.442695
    %v2868 = vpow.pop %v2867
    %v2869 = vmul.f32 %v2638, 1.442695
    %v2870 = vpow.pop %v2869
    %v2871 = vmul.f32 %v2639, 1.442695
    %v2872 = vpow.pop %v2871
    %v2873 = vmul.f32 %v2640, 1.442695
    %v2874 = vpow.pop %v2873
    %v2875 = vmul.f32 %v2641, 1.442695
    %v2876 = vpow.pop %v2875
    %v2877 = vmul.f32 %v2642, 1.442695
    %v2878 = vpow.pop %v2877
    %v2879 = vmul.f32 %v2643, 1.442695
    %v2880 = vpow.pop %v2879
    %v2881 = vmul.f32 %v2644, 1.442695
    %v2882 = vpow.pop %v2881
    %v2883 = vmul.f32 %v2645, 1.442695
    %v2884 = vpow.pop %v2883
    %v2885 = vmul.f32 %v2646, 1.442695
    %v2886 = vpow.pop %v2885
    %v2887 = vmul.f32 %v2647, 1.442695
    %v2888 = vpow.pop %v2887
    %v2889 = vmul.f32 %v2648, 1.442695
    %v2890 = vpow.pop %v2889
    %v2891 = vmul.f32 %v2649, 1.442695
    %v2892 = vpow.pop %v2891
    %v2893 = vmul.f32 %v2650, 1.442695
    %v2894 = vpow.pop %v2893
    %v2895 = vmul.f32 %v2651, 1.442695
    %v2896 = vpow.pop %v2895
    %v2897 = vmul.f32 %v2652, 1.442695
    %v2898 = vpow.pop %v2897
    %v2899 = vmul.f32 %v2653, 1.442695
    %v2900 = vpow.pop %v2899
    %v2901 = vmul.f32 %v2654, 1.442695
    %v2902 = vpow.pop %v2901
    %v2903 = vmul.f32 %v2655, 1.442695
    %v2904 = vpow.pop %v2903
    %v2905 = vmul.f32 %v2656, 1.442695
    %v2906 = vpow.pop %v2905
    %v2907 = vmul.f32 %v2657, 1.442695
    %v2908 = vpow.pop %v2907
    %v2909 = vmul.f32 %v2658, 1.442695
    %v2910 = vpow.pop %v2909
    %v2911 = vmul.f32 %v2659, 1.442695
    %v2912 = vpow.pop %v2911
    %v2913 = vmul.f32 %v2660, 1.442695
    %v2914 = vpow.pop %v2913
    %v2915 = vmul.f32 %v2661, 1.442695
    %v2916 = vpow.pop %v2915
    %v2917 = vmul.f32 %v2662, 1.442695
    %v2918 = vpow.pop %v2917
    %v2919 = vmul.f32 %v2663, 1.442695
    %v2920 = vpow.pop %v2919
    %v2921 = vmul.f32 %v2664, 1.442695
    %v2922 = vpow.pop %v2921
    %v2923 = vmul.f32 %v2665, 1.442695
    %v2924 = vpow.pop %v2923
    %v2925 = vmul.f32 %v2666, 1.442695
    %v2926 = vpow.pop %v2925
    %v2927 = vmul.f32 %v2667, 1.442695
    %v2928 = vpow.pop %v2927
    %v2929 = vmul.f32 %v2668, 1.442695
    %v2930 = vpow.pop %v2929
    %v2931 = vmul.f32 %v2669, 1.442695
    %v2932 = vpow.pop %v2931
    %v2933 = vmul.f32 %v2670, 1.442695
    %v2934 = vpow.pop %v2933
    %v2935 = vmul.f32 %v2671, 1.442695
    %v2936 = vpow.pop %v2935
    %v2937 = vmul.f32 %v2672, 1.442695
    %v2938 = vpow.pop %v2937
    %v2939 = vmul.f32 %v2673, 1.442695
    %v2940 = vpow.pop %v2939
    %v2941 = vmul.f32 %v2674, 1.442695
    %v2942 = vpow.pop %v2941
    %v2943 = vmul.f32 %v2675, 1.442695
    %v2944 = vpow.pop %v2943
    %v2945 = vmul.f32 %v2676, 1.442695
    %v2946 = vpow.pop %v2945
    %v2947 = vmul.f32 %v2677, 1.442695
    %v2948 = vpow.pop %v2947
    %v2949 = vmul.f32 %v2678, 1.442695
    %v2950 = vpow.pop %v2949
    %v2951 = vmul.f32 %v2679, 1.442695
    %v2952 = vpow.pop %v2951
    %v2953 = vmul.f32 %v2680, 1.442695
    %v2954 = vpow.pop %v2953
    %v2955 = vmul.f32 %v2681, 1.442695
    %v2956 = vpow.pop %v2955
    %v2957 = vmul.f32 %v2682, 1.442695
    %v2958 = vpow.pop %v2957
    %v2959 = vmul.f32 %v2683, 1.442695
    %v2960 = vpow.pop %v2959
    %v2961 = vmul.f32 %v2684, 1.442695
    %v2962 = vpow.pop %v2961
    %v2963 = vmul.f32 %v2685, 1.442695
    %v2964 = vpow.pop %v2963
    %v2965 = vmul.f32 %v2686, 1.442695
    %v2966 = vpow.pop %v2965
    %v2967 = vmul.f32 %v2687, 1.442695
    %v2968 = vpow.pop %v2967
    %v2969 = vmul.f32 %v2688, 1.442695
    %v2970 = vpow.pop %v2969
    %v2971 = vmul.f32 %v2689, 1.442695
    %v2972 = vpow.pop %v2971
    %v2973 = vmul.f32 %v2690, 1.442695
    %v2974 = vpow.pop %v2973
    %v2975 = vmul.f32 %v2691, 1.442695
    %v2976 = vpow.pop %v2975
    %v2977 = vmul.f32 %v2692, 1.442695
    %v2978 = vpow.pop %v2977
    %v2979 = vmul.f32 %v2693, 1.442695
    %v2980 = vpow.pop %v2979
    %v2981 = vmul.f32 %v2694, 1.442695
    %v2982 = vpow.pop %v2981
    %v2983 = vmul.f32 %v2695, 1.442695
    %v2984 = vpow.pop %v2983
    %v2985 = vmul.f32 %v2696, 1.442695
    %v2986 = vpow.pop %v2985
    %v2987 = vmul.f32 %v2697, 1.442695
    %v2988 = vpow.pop %v2987
    %v2989 = vmul.f32 %v2698, 1.442695
    %v2990 = vpow.pop %v2989
    %v2991 = vmul.f32 %v2699, 1.442695
    %v2992 = vpow.pop %v2991
    %v2993 = vmul.f32 %v2700, 1.442695
    %v2994 = vpow.pop %v2993
    %v2995 = vmul.f32 %v2701, 1.442695
    %v2996 = vpow.pop %v2995
    %v2997 = vmul.f32 %v2702, 1.442695
    %v2998 = vpow.pop %v2997
    %v2999 = vmul.f32 %v2703, 1.442695
    %v3000 = vpow.pop %v2999
    %v3001 = vmul.f32 %v2704, 1.442695
    %v3002 = vpow.pop %v3001
    %v3003 = vmul.f32 %v2705, 1.442695
    %v3004 = vpow.pop %v3003
    %v3005 = vmul.f32 %v2706, 1.442695
    %v3006 = vpow.pop %v3005
    %v3007 = vmul.f32 %v2707, 1.442695
    %v3008 = vpow.pop %v3007
    %v3009 = vmul.f32 %v2708, 1.442695
    %v3010 = vpow.pop %v3009
    %v3011 = vmul.f32 %v2709, 1.442695
    %v3012 = vpow.pop %v3011
    %v3013 = vmul.f32 %v2710, 1.442695
    %v3014 = vpow.pop %v3013
    %v3015 = vmul.f32 %v2711, 1.442695
    %v3016 = vpow.pop %v3015
    %v3017 = vmul.f32 %v2712, 1.442695
    %v3018 = vpow.pop %v3017
    %v3019 = vmul.f32 %v2713, 1.442695
    %v3020 = vpow.pop %v3019
    %v3021 = vmul.f32 %v2714, 1.442695
    %v3022 = vpow.pop %v3021
    %v3023 = vmul.f32 %v2715, 1.442695
    %v3024 = vpow.pop %v3023
    %v3025 = vmul.f32 %v2716, 1.442695
    %v3026 = vpow.pop %v3025
    %v3027 = vmul.f32 %v2717, 1.442695
    %v3028 = vpow.pop %v3027
    %v3029 = vmul.f32 %v2718, 1.442695
    %v3030 = vpow.pop %v3029
    %v3031 = vmul.f32 %v2719, 1.442695
    %v3032 = vpow.pop %v3031
    %v3033 = vmul.f32 %v2720, 1.442695
    %v3034 = vpow.pop %v3033
    %v3035 = vmul.f32 %v2721, 1.442695
    %v3036 = vpow.pop %v3035
    %v3037 = vmul.f32 %v2722, 1.442695
    %v3038 = vpow.pop %v3037
    %v3039 = vmul.f32 %v2723, 1.442695
    %v3040 = vpow.pop %v3039
    %v3041 = vmul.f32 %v2724, 1.442695
    %v3042 = vpow.pop %v3041
    %v3043 = vmul.f32 %v2725, 1.442695
    %v3044 = vpow.pop %v3043
    %v3045 = vmul.f32 %v2726, 1.442695
    %v3046 = vpow.pop %v3045
    %v3047 = vmul.f32 %v2727, 1.442695
    %v3048 = vpow.pop %v3047
    %v3049 = vmul.f32 %v2728, 1.442695
    %v3050 = vpow.pop %v3049
    %v3051 = vmul.f32 %v2729, 1.442695
    %v3052 = vpow.pop %v3051
    %v3053 = vmul.f32 %v2730, 1.442695
    %v3054 = vpow.pop %v3053
    %v3055 = vmul.f32 %v2731, 1.442695
    %v3056 = vpow.pop %v3055
    %v3057 = vmul.f32 %v2732, 1.442695
    %v3058 = vpow.pop %v3057
    %v3059 = vmul.f32 %v2733, 1.442695
    %v3060 = vpow.pop %v3059
    %v3061 = vmul.f32 %v2734, 1.442695
    %v3062 = vpow.pop %v3061
    %v3063 = vmul.f32 %v2735, 1.442695
    %v3064 = vpow.pop %v3063
    %v3065 = vmul.f32 %v2736, 1.442695
    %v3066 = vpow.pop %v3065
    %v3067 = vmul.f32 %v2737, 1.442695
    %v3068 = vpow.pop %v3067
    %v3069 = vmul.f32 %v2738, 1.442695
    %v3070 = vpow.pop %v3069
    %v3071 = vmul.f32 %v2739, 1.442695
    %v3072 = vpow.pop %v3071
    %v3073 = vmul.f32 %v2740, 1.442695
    %v3074 = vpow.pop %v3073
    %v3075 = vmul.f32 %v2741, 1.442695
    %v3076 = vpow.pop %v3075
    %v3077 = vmul.f32 %v2742, 1.442695
    %v3078 = vpow.pop %v3077
    %v3079 = vmul.f32 %v2743, 1.442695
    %v3080 = vpow.pop %v3079
    %v3081 = vmul.f32 %v2744, 1.442695
    %v3082 = vpow.pop %v3081
    %v3083 = vmul.f32 %v2745, 1.442695
    %v3084 = vpow.pop %v3083
    %v3085 = vmul.f32 %v2746, 1.442695
    %v3086 = vpow.pop %v3085
    %v3087 = vmul.f32 %v2747, 1.442695
    %v3088 = vpow.pop %v3087
    %v3089 = vmul.f32 %v2748, 1.442695
    %v3090 = vpow.pop %v3089
    %v3091 = vmul.f32 %v2749, 1.442695
    %v3092 = vpow.pop %v3091
    %v3093 = vmul.f32 %v2750, 1.442695
    %v3094 = vpow.pop %v3093
    %v3095 = vmul.f32 %v2751, 1.442695
    %v3096 = vpow.pop %v3095
    %v3097 = vmul.f32 %v2752, 1.442695
    %v3098 = vpow.pop %v3097
    %v3099 = vmul.f32 %v2753, 1.442695
    %v3100 = vpow.pop %v3099
    %v3101 = vmul.f32 %v2754, 1.442695
    %v3102 = vpow.pop %v3101
    %v3103 = vmul.f32 %v2755, 1.442695
    %v3104 = vpow.pop %v3103
    %v3105 = vmul.f32 %v2756, 1.442695
    %v3106 = vpow.pop %v3105
    %v3107 = vmul.f32 %v2757, 1.442695
    %v3108 = vpow.pop %v3107
    %v3109 = vmul.f32 %v2758, 1.442695
    %v3110 = vpow.pop %v3109
    %v3111 = vmul.f32 %v2759, 1.442695
    %v3112 = vpow.pop %v3111
    %v3113 = vmul.f32 %v2760, 1.442695
    %v3114 = vpow.pop %v3113
    %v3115 = vmul.f32 %v2761, 1.442695
    %v3116 = vpow.pop %v3115
    %v3117 = vmul.f32 %v2762, 1.442695
    %v3118 = vpow.pop %v3117
    %v3119 = vmul.f32 %v2763, 1.442695
    %v3120 = vpow.pop %v3119
    %v3121 = vmul.f32 %v2764, 1.442695
    %v3122 = vpow.pop %v3121
    %v3123 = vmul.f32 %v2765, 1.442695
    %v3124 = vpow.pop %v3123
    %v3125 = vmul.f32 %v2766, 1.442695
    %v3126 = vpow.pop %v3125
    %v3127 = vmul.f32 %v2767, 1.442695
    %v3128 = vpow.pop %v3127
    %v3129 = vmul.f32 %v2768, 1.442695
    %v3130 = vpow.pop %v3129
    %v3131 = vmul.f32 %v2769, 1.442695
    %v3132 = vpow.pop %v3131
    %v3133 = vmul.f32 %v2770, 1.442695
    %v3134 = vpow.pop %v3133
    %v3135 = vmul.f32 %v2771, 1.442695
    %v3136 = vpow.pop %v3135
    %v3137 = vmul.f32 %v2772, 1.442695
    %v3138 = vpow.pop %v3137
    %v3139 = vmul.f32 %v2773, 1.442695
    %v3140 = vpow.pop %v3139
    %v3141 = vmul.f32 %v2774, 1.442695
    %v3142 = vpow.pop %v3141
    %v3143 = vmul.f32 %v2775, 1.442695
    %v3144 = vpow.pop %v3143
    %v3145 = vmul.f32 %v2776, 1.442695
    %v3146 = vpow.pop %v3145
    %v3147 = vmul.f32 %v2777, 1.442695
    %v3148 = vpow.pop %v3147
    %v3149 = vmul.f32 %v2778, 1.442695
    %v3150 = vpow.pop %v3149
    %v3151 = vmul.f32 %v2779, 1.442695
    %v3152 = vpow.pop %v3151
    %v3153 = vmul.f32 %v2780, 1.442695
    %v3154 = vpow.pop %v3153
    %v3155 = vmul.f32 %v2781, 1.442695
    %v3156 = vpow.pop %v3155
    %v3157 = vmul.f32 %v2782, 1.442695
    %v3158 = vpow.pop %v3157
    %v3159 = vmul.f32 %v2783, 1.442695
    %v3160 = vpow.pop %v3159
    %v3161 = vmul.f32 %v2784, 1.442695
    %v3162 = vpow.pop %v3161
    %v3163 = vmul.f32 %v2785, 1.442695
    %v3164 = vpow.pop %v3163
    %v3165 = vmul.f32 %v2786, 1.442695
    %v3166 = vpow.pop %v3165
    %v3167 = vmul.f32 %v2787, 1.442695
    %v3168 = vpow.pop %v3167
    %v3169 = vmul.f32 %v2788, 1.442695
    %v3170 = vpow.pop %v3169
    %v3171 = vmul.f32 %v2789, 1.442695
    %v3172 = vpow.pop %v3171
    %v3173 = vmul.f32 %v2790, 1.442695
    %v3174 = vpow.pop %v3173
    %v3175 = vadd.f32 %v2792, 1.0
    %v3176 = vadd.f32 %v2794, 1.0
    %v3177 = vadd.f32 %v2796, 1.0
    %v3178 = vadd.f32 %v2798, 1.0
    %v3179 = vadd.f32 %v2800, 1.0
    %v3180 = vadd.f32 %v2802, 1.0
    %v3181 = vadd.f32 %v2804, 1.0
    %v3182 = vadd.f32 %v2806, 1.0
    %v3183 = vadd.f32 %v2808, 1.0
    %v3184 = vadd.f32 %v2810, 1.0
    %v3185 = vadd.f32 %v2812, 1.0
    %v3186 = vadd.f32 %v2814, 1.0
    %v3187 = vadd.f32 %v2816, 1.0
    %v3188 = vadd.f32 %v2818, 1.0
    %v3189 = vadd.f32 %v2820, 1.0
    %v3190 = vadd.f32 %v2822, 1.0
    %v3191 = vadd.f32 %v2824, 1.0
    %v3192 = vadd.f32 %v2826, 1.0
    %v3193 = vadd.f32 %v2828, 1.0
    %v3194 = vadd.f32 %v2830, 1.0
    %v3195 = vadd.f32 %v2832, 1.0
    %v3196 = vadd.f32 %v2834, 1.0
    %v3197 = vadd.f32 %v2836, 1.0
    %v3198 = vadd.f32 %v2838, 1.0
    %v3199 = vadd.f32 %v2840, 1.0
    %v3200 = vadd.f32 %v2842, 1.0
    %v3201 = vadd.f32 %v2844, 1.0
    %v3202 = vadd.f32 %v2846, 1.0
    %v3203 = vadd.f32 %v2848, 1.0
    %v3204 = vadd.f32 %v2850, 1.0
    %v3205 = vadd.f32 %v2852, 1.0
    %v3206 = vadd.f32 %v2854, 1.0
    %v3207 = vadd.f32 %v2856, 1.0
    %v3208 = vadd.f32 %v2858, 1.0
    %v3209 = vadd.f32 %v2860, 1.0
    %v3210 = vadd.f32 %v2862, 1.0
    %v3211 = vadd.f32 %v2864, 1.0
    %v3212 = vadd.f32 %v2866, 1.0
    %v3213 = vadd.f32 %v2868, 1.0
    %v3214 = vadd.f32 %v2870, 1.0
    %v3215 = vadd.f32 %v2872, 1.0
    %v3216 = vadd.f32 %v2874, 1.0
    %v3217 = vadd.f32 %v2876, 1.0
    %v3218 = vadd.f32 %v2878, 1.0
    %v3219 = vadd.f32 %v2880, 1.0
    %v3220 = vadd.f32 %v2882, 1.0
    %v3221 = vadd.f32 %v2884, 1.0
    %v3222 = vadd.f32 %v2886, 1.0
    %v3223 = vadd.f32 %v2888, 1.0
    %v3224 = vadd.f32 %v2890, 1.0
    %v3225 = vadd.f32 %v2892, 1.0
    %v3226 = vadd.f32 %v2894, 1.0
    %v3227 = vadd.f32 %v2896, 1.0
    %v3228 = vadd.f32 %v2898, 1.0
    %v3229 = vadd.f32 %v2900, 1.0
    %v3230 = vadd.f32 %v2902, 1.0
    %v3231 = vadd.f32 %v2904, 1.0
    %v3232 = vadd.f32 %v2906, 1.0
    %v3233 = vadd.f32 %v2908, 1.0
    %v3234 = vadd.f32 %v2910, 1.0
    %v3235 = vadd.f32 %v2912, 1.0
    %v3236 = vadd.f32 %v2914, 1.0
    %v3237 = vadd.f32 %v2916, 1.0
    %v3238 = vadd.f32 %v2918, 1.0
    %v3239 = vadd.f32 %v2920, 1.0
    %v3240 = vadd.f32 %v2922, 1.0
    %v3241 = vadd.f32 %v2924, 1.0
    %v3242 = vadd.f32 %v2926, 1.0
    %v3243 = vadd.f32 %v2928, 1.0
    %v3244 = vadd.f32 %v2930, 1.0
    %v3245 = vadd.f32 %v2932, 1.0
    %v3246 = vadd.f32 %v2934, 1.0
    %v3247 = vadd.f32 %v2936, 1.0
    %v3248 = vadd.f32 %v2938, 1.0
    %v3249 = vadd.f32 %v2940, 1.0
    %v3250 = vadd.f32 %v2942, 1.0
    %v3251 = vadd.f32 %v2944, 1.0
    %v3252 = vadd.f32 %v2946, 1.0
    %v3253 = vadd.f32 %v2948, 1.0
    %v3254 = vadd.f32 %v2950, 1.0
    %v3255 = vadd.f32 %v2952, 1.0
    %v3256 = vadd.f32 %v2954, 1.0
    %v3257 = vadd.f32 %v2956, 1.0
    %v3258 = vadd.f32 %v2958, 1.0
    %v3259 = vadd.f32 %v2960, 1.0
    %v3260 = vadd.f32 %v2962, 1.0
    %v3261 = vadd.f32 %v2964, 1.0
    %v3262 = vadd.f32 %v2966, 1.0
    %v3263 = vadd.f32 %v2968, 1.0
    %v3264 = vadd.f32 %v2970, 1.0
    %v3265 = vadd.f32 %v2972, 1.0
    %v3266 = vadd.f32 %v2974, 1.0
    %v3267 = vadd.f32 %v2976, 1.0
    %v3268 = vadd.f32 %v2978, 1.0
    %v3269 = vadd.f32 %v2980, 1.0
    %v3270 = vadd.f32 %v2982, 1.0
    %v3271 = vadd.f32 %v2984, 1.0
    %v3272 = vadd.f32 %v2986, 1.0
    %v3273 = vadd.f32 %v2988, 1.0
    %v3274 = vadd.f32 %v2990, 1.0
    %v3275 = vadd.f32 %v2992, 1.0
    %v3276 = vadd.f32 %v2994, 1.0
    %v3277 = vadd.f32 %v2996, 1.0
    %v3278 = vadd.f32 %v2998, 1.0
    %v3279 = vadd.f32 %v3000, 1.0
    %v3280 = vadd.f32 %v3002, 1.0
    %v3281 = vadd.f32 %v3004, 1.0
    %v3282 = vadd.f32 %v3006, 1.0
    %v3283 = vadd.f32 %v3008, 1.0
    %v3284 = vadd.f32 %v3010, 1.0
    %v3285 = vadd.f32 %v3012, 1.0
    %v3286 = vadd.f32 %v3014, 1.0
    %v3287 = vadd.f32 %v3016, 1.0
    %v3288 = vadd.f32 %v3018, 1.0
    %v3289 = vadd.f32 %v3020, 1.0
    %v3290 = vadd.f32 %v3022, 1.0
    %v3291 = vadd.f32 %v3024, 1.0
    %v3292 = vadd.f32 %v3026, 1.0
    %v3293 = vadd.f32 %v3028, 1.0
    %v3294 = vadd.f32 %v3030, 1.0
    %v3295 = vadd.f32 %v3032, 1.0
    %v3296 = vadd.f32 %v3034, 1.0
    %v3297 = vadd.f32 %v3036, 1.0
    %v3298 = vadd.f32 %v3038, 1.0
    %v3299 = vadd.f32 %v3040, 1.0
    %v3300 = vadd.f32 %v3042, 1.0
    %v3301 = vadd.f32 %v3044, 1.0
    %v3302 = vadd.f32 %v3046, 1.0
    %v3303 = vadd.f32 %v3048, 1.0
    %v3304 = vadd.f32 %v3050, 1.0
    %v3305 = vadd.f32 %v3052, 1.0
    %v3306 = vadd.f32 %v3054, 1.0
    %v3307 = vadd.f32 %v3056, 1.0
    %v3308 = vadd.f32 %v3058, 1.0
    %v3309 = vadd.f32 %v3060, 1.0
    %v3310 = vadd.f32 %v3062, 1.0
    %v3311 = vadd.f32 %v3064, 1.0
    %v3312 = vadd.f32 %v3066, 1.0
    %v3313 = vadd.f32 %v3068, 1.0
    %v3314 = vadd.f32 %v3070, 1.0
    %v3315 = vadd.f32 %v3072, 1.0
    %v3316 = vadd.f32 %v3074, 1.0
    %v3317 = vadd.f32 %v3076, 1.0
    %v3318 = vadd.f32 %v3078, 1.0
    %v3319 = vadd.f32 %v3080, 1.0
    %v3320 = vadd.f32 %v3082, 1.0
    %v3321 = vadd.f32 %v3084, 1.0
    %v3322 = vadd.f32 %v3086, 1.0
    %v3323 = vadd.f32 %v3088, 1.0
    %v3324 = vadd.f32 %v3090, 1.0
    %v3325 = vadd.f32 %v3092, 1.0
    %v3326 = vadd.f32 %v3094, 1.0
    %v3327 = vadd.f32 %v3096, 1.0
    %v3328 = vadd.f32 %v3098, 1.0
    %v3329 = vadd.f32 %v3100, 1.0
    %v3330 = vadd.f32 %v3102, 1.0
    %v3331 = vadd.f32 %v3104, 1.0
    %v3332 = vadd.f32 %v3106, 1.0
    %v3333 = vadd.f32 %v3108, 1.0
    %v3334 = vadd.f32 %v3110, 1.0
    %v3335 = vadd.f32 %v3112, 1.0
    %v3336 = vadd.f32 %v3114, 1.0
    %v3337 = vadd.f32 %v3116, 1.0
    %v3338 = vadd.f32 %v3118, 1.0
    %v3339 = vadd.f32 %v3120, 1.0
    %v3340 = vadd.f32 %v3122, 1.0
    %v3341 = vadd.f32 %v3124, 1.0
    %v3342 = vadd.f32 %v3126, 1.0
    %v3343 = vadd.f32 %v3128, 1.0
    %v3344 = vadd.f32 %v3130, 1.0
    %v3345 = vadd.f32 %v3132, 1.0
    %v3346 = vadd.f32 %v3134, 1.0
    %v3347 = vadd.f32 %v3136, 1.0
    %v3348 = vadd.f32 %v3138, 1.0
    %v3349 = vadd.f32 %v3140, 1.0
    %v3350 = vadd.f32 %v3142, 1.0
    %v3351 = vadd.f32 %v3144, 1.0
    %v3352 = vadd.f32 %v3146, 1.0
    %v3353 = vadd.f32 %v3148, 1.0
    %v3354 = vadd.f32 %v3150, 1.0
    %v3355 = vadd.f32 %v3152, 1.0
    %v3356 = vadd.f32 %v3154, 1.0
    %v3357 = vadd.f32 %v3156, 1.0
    %v3358 = vadd.f32 %v3158, 1.0
    %v3359 = vadd.f32 %v3160, 1.0
    %v3360 = vadd.f32 %v3162, 1.0
    %v3361 = vadd.f32 %v3164, 1.0
    %v3362 = vadd.f32 %v3166, 1.0
    %v3363 = vadd.f32 %v3168, 1.0
    %v3364 = vadd.f32 %v3170, 1.0
    %v3365 = vadd.f32 %v3172, 1.0
    %v3366 = vadd.f32 %v3174, 1.0
    %v3367 = vrcp.pop %v3175
    %v3368 = vmul.f32 1.0, %v3367
    %v3369 = vrcp.pop %v3176
    %v3370 = vmul.f32 1.0, %v3369
    %v3371 = vrcp.pop %v3177
    %v3372 = vmul.f32 1.0, %v3371
    %v3373 = vrcp.pop %v3178
    %v3374 = vmul.f32 1.0, %v3373
    %v3375 = vrcp.pop %v3179
    %v3376 = vmul.f32 1.0, %v3375
    %v3377 = vrcp.pop %v3180
    %v3378 = vmul.f32 1.0, %v3377
    %v3379 = vrcp.pop %v3181
    %v3380 = vmul.f32 1.0, %v3379
    %v3381 = vrcp.pop %v3182
    %v3382 = vmul.f32 1.0, %v3381
    %v3383 = vrcp.pop %v3183
    %v3384 = vmul.f32 1.0, %v3383
    %v3385 = vrcp.pop %v3184
    %v3386 = vmul.f32 1.0, %v3385
    %v3387 = vrcp.pop %v3185
    %v3388 = vmul.f32 1.0, %v3387
    %v3389 = vrcp.pop %v3186
    %v3390 = vmul.f32 1.0, %v3389
    %v3391 = vrcp.pop %v3187
    %v3392 = vmul.f32 1.0, %v3391
    %v3393 = vrcp.pop %v3188
    %v3394 = vmul.f32 1.0, %v3393
    %v3395 = vrcp.pop %v3189
    %v3396 = vmul.f32 1.0, %v3395
    %v3397 = vrcp.pop %v3190
    %v3398 = vmul.f32 1.0, %v3397
    %v3399 = vrcp.pop %v3191
    %v3400 = vmul.f32 1.0, %v3399
    %v3401 = vrcp.pop %v3192
    %v3402 = vmul.f32 1.0, %v3401
    %v3403 = vrcp.pop %v3193
    %v3404 = vmul.f32 1.0, %v3403
    %v3405 = vrcp.pop %v3194
    %v3406 = vmul.f32 1.0, %v3405
    %v3407 = vrcp.pop %v3195
    %v3408 = vmul.f32 1.0, %v3407
    %v3409 = vrcp.pop %v3196
    %v3410 = vmul.f32 1.0, %v3409
    %v3411 = vrcp.pop %v3197
    %v3412 = vmul.f32 1.0, %v3411
    %v3413 = vrcp.pop %v3198
    %v3414 = vmul.f32 1.0, %v3413
    %v3415 = vrcp.pop %v3199
    %v3416 = vmul.f32 1.0, %v3415
    %v3417 = vrcp.pop %v3200
    %v3418 = vmul.f32 1.0, %v3417
    %v3419 = vrcp.pop %v3201
    %v3420 = vmul.f32 1.0, %v3419
    %v3421 = vrcp.pop %v3202
    %v3422 = vmul.f32 1.0, %v3421
    %v3423 = vrcp.pop %v3203
    %v3424 = vmul.f32 1.0, %v3423
    %v3425 = vrcp.pop %v3204
    %v3426 = vmul.f32 1.0, %v3425
    %v3427 = vrcp.pop %v3205
    %v3428 = vmul.f32 1.0, %v3427
    %v3429 = vrcp.pop %v3206
    %v3430 = vmul.f32 1.0, %v3429
    %v3431 = vrcp.pop %v3207
    %v3432 = vmul.f32 1.0, %v3431
    %v3433 = vrcp.pop %v3208
    %v3434 = vmul.f32 1.0, %v3433
    %v3435 = vrcp.pop %v3209
    %v3436 = vmul.f32 1.0, %v3435
    %v3437 = vrcp.pop %v3210
    %v3438 = vmul.f32 1.0, %v3437
    %v3439 = vrcp.pop %v3211
    %v3440 = vmul.f32 1.0, %v3439
    %v3441 = vrcp.pop %v3212
    %v3442 = vmul.f32 1.0, %v3441
    %v3443 = vrcp.pop %v3213
    %v3444 = vmul.f32 1.0, %v3443
    %v3445 = vrcp.pop %v3214
    %v3446 = vmul.f32 1.0, %v3445
    %v3447 = vrcp.pop %v3215
    %v3448 = vmul.f32 1.0, %v3447
    %v3449 = vrcp.pop %v3216
    %v3450 = vmul.f32 1.0, %v3449
    %v3451 = vrcp.pop %v3217
    %v3452 = vmul.f32 1.0, %v3451
    %v3453 = vrcp.pop %v3218
    %v3454 = vmul.f32 1.0, %v3453
    %v3455 = vrcp.pop %v3219
    %v3456 = vmul.f32 1.0, %v3455
    %v3457 = vrcp.pop %v3220
    %v3458 = vmul.f32 1.0, %v3457
    %v3459 = vrcp.pop %v3221
    %v3460 = vmul.f32 1.0, %v3459
    %v3461 = vrcp.pop %v3222
    %v3462 = vmul.f32 1.0, %v3461
    %v3463 = vrcp.pop %v3223
    %v3464 = vmul.f32 1.0, %v3463
    %v3465 = vrcp.pop %v3224
    %v3466 = vmul.f32 1.0, %v3465
    %v3467 = vrcp.pop %v3225
    %v3468 = vmul.f32 1.0, %v3467
    %v3469 = vrcp.pop %v3226
    %v3470 = vmul.f32 1.0, %v3469
    %v3471 = vrcp.pop %v3227
    %v3472 = vmul.f32 1.0, %v3471
    %v3473 = vrcp.pop %v3228
    %v3474 = vmul.f32 1.0, %v3473
    %v3475 = vrcp.pop %v3229
    %v3476 = vmul.f32 1.0, %v3475
    %v3477 = vrcp.pop %v3230
    %v3478 = vmul.f32 1.0, %v3477
    %v3479 = vrcp.pop %v3231
    %v3480 = vmul.f32 1.0, %v3479
    %v3481 = vrcp.pop %v3232
    %v3482 = vmul.f32 1.0, %v3481
    %v3483 = vrcp.pop %v3233
    %v3484 = vmul.f32 1.0, %v3483
    %v3485 = vrcp.pop %v3234
    %v3486 = vmul.f32 1.0, %v3485
    %v3487 = vrcp.pop %v3235
    %v3488 = vmul.f32 1.0, %v3487
    %v3489 = vrcp.pop %v3236
    %v3490 = vmul.f32 1.0, %v3489
    %v3491 = vrcp.pop %v3237
    %v3492 = vmul.f32 1.0, %v3491
    %v3493 = vrcp.pop %v3238
    %v3494 = vmul.f32 1.0, %v3493
    %v3495 = vrcp.pop %v3239
    %v3496 = vmul.f32 1.0, %v3495
    %v3497 = vrcp.pop %v3240
    %v3498 = vmul.f32 1.0, %v3497
    %v3499 = vrcp.pop %v3241
    %v3500 = vmul.f32 1.0, %v3499
    %v3501 = vrcp.pop %v3242
    %v3502 = vmul.f32 1.0, %v3501
    %v3503 = vrcp.pop %v3243
    %v3504 = vmul.f32 1.0, %v3503
    %v3505 = vrcp.pop %v3244
    %v3506 = vmul.f32 1.0, %v3505
    %v3507 = vrcp.pop %v3245
    %v3508 = vmul.f32 1.0, %v3507
    %v3509 = vrcp.pop %v3246
    %v3510 = vmul.f32 1.0, %v3509
    %v3511 = vrcp.pop %v3247
    %v3512 = vmul.f32 1.0, %v3511
    %v3513 = vrcp.pop %v3248
    %v3514 = vmul.f32 1.0, %v3513
    %v3515 = vrcp.pop %v3249
    %v3516 = vmul.f32 1.0, %v3515
    %v3517 = vrcp.pop %v3250
    %v3518 = vmul.f32 1.0, %v3517
    %v3519 = vrcp.pop %v3251
    %v3520 = vmul.f32 1.0, %v3519
    %v3521 = vrcp.pop %v3252
    %v3522 = vmul.f32 1.0, %v3521
    %v3523 = vrcp.pop %v3253
    %v3524 = vmul.f32 1.0, %v3523
    %v3525 = vrcp.pop %v3254
    %v3526 = vmul.f32 1.0, %v3525
    %v3527 = vrcp.pop %v3255
    %v3528 = vmul.f32 1.0, %v3527
    %v3529 = vrcp.pop %v3256
    %v3530 = vmul.f32 1.0, %v3529
    %v3531 = vrcp.pop %v3257
    %v3532 = vmul.f32 1.0, %v3531
    %v3533 = vrcp.pop %v3258
    %v3534 = vmul.f32 1.0, %v3533
    %v3535 = vrcp.pop %v3259
    %v3536 = vmul.f32 1.0, %v3535
    %v3537 = vrcp.pop %v3260
    %v3538 = vmul.f32 1.0, %v3537
    %v3539 = vrcp.pop %v3261
    %v3540 = vmul.f32 1.0, %v3539
    %v3541 = vrcp.pop %v3262
    %v3542 = vmul.f32 1.0, %v3541
    %v3543 = vrcp.pop %v3263
    %v3544 = vmul.f32 1.0, %v3543
    %v3545 = vrcp.pop %v3264
    %v3546 = vmul.f32 1.0, %v3545
    %v3547 = vrcp.pop %v3265
    %v3548 = vmul.f32 1.0, %v3547
    %v3549 = vrcp.pop %v3266
    %v3550 = vmul.f32 1.0, %v3549
    %v3551 = vrcp.pop %v3267
    %v3552 = vmul.f32 1.0, %v3551
    %v3553 = vrcp.pop %v3268
    %v3554 = vmul.f32 1.0, %v3553
    %v3555 = vrcp.pop %v3269
    %v3556 = vmul.f32 1.0, %v3555
    %v3557 = vrcp.pop %v3270
    %v3558 = vmul.f32 1.0, %v3557
    %v3559 = vrcp.pop %v3271
    %v3560 = vmul.f32 1.0, %v3559
    %v3561 = vrcp.pop %v3272
    %v3562 = vmul.f32 1.0, %v3561
    %v3563 = vrcp.pop %v3273
    %v3564 = vmul.f32 1.0, %v3563
    %v3565 = vrcp.pop %v3274
    %v3566 = vmul.f32 1.0, %v3565
    %v3567 = vrcp.pop %v3275
    %v3568 = vmul.f32 1.0, %v3567
    %v3569 = vrcp.pop %v3276
    %v3570 = vmul.f32 1.0, %v3569
    %v3571 = vrcp.pop %v3277
    %v3572 = vmul.f32 1.0, %v3571
    %v3573 = vrcp.pop %v3278
    %v3574 = vmul.f32 1.0, %v3573
    %v3575 = vrcp.pop %v3279
    %v3576 = vmul.f32 1.0, %v3575
    %v3577 = vrcp.pop %v3280
    %v3578 = vmul.f32 1.0, %v3577
    %v3579 = vrcp.pop %v3281
    %v3580 = vmul.f32 1.0, %v3579
    %v3581 = vrcp.pop %v3282
    %v3582 = vmul.f32 1.0, %v3581
    %v3583 = vrcp.pop %v3283
    %v3584 = vmul.f32 1.0, %v3583
    %v3585 = vrcp.pop %v3284
    %v3586 = vmul.f32 1.0, %v3585
    %v3587 = vrcp.pop %v3285
    %v3588 = vmul.f32 1.0, %v3587
    %v3589 = vrcp.pop %v3286
    %v3590 = vmul.f32 1.0, %v3589
    %v3591 = vrcp.pop %v3287
    %v3592 = vmul.f32 1.0, %v3591
    %v3593 = vrcp.pop %v3288
    %v3594 = vmul.f32 1.0, %v3593
    %v3595 = vrcp.pop %v3289
    %v3596 = vmul.f32 1.0, %v3595
    %v3597 = vrcp.pop %v3290
    %v3598 = vmul.f32 1.0, %v3597
    %v3599 = vrcp.pop %v3291
    %v3600 = vmul.f32 1.0, %v3599
    %v3601 = vrcp.pop %v3292
    %v3602 = vmul.f32 1.0, %v3601
    %v3603 = vrcp.pop %v3293
    %v3604 = vmul.f32 1.0, %v3603
    %v3605 = vrcp.pop %v3294
    %v3606 = vmul.f32 1.0, %v3605
    %v3607 = vrcp.pop %v3295
    %v3608 = vmul.f32 1.0, %v3607
    %v3609 = vrcp.pop %v3296
    %v3610 = vmul.f32 1.0, %v3609
    %v3611 = vrcp.pop %v3297
    %v3612 = vmul.f32 1.0, %v3611
    %v3613 = vrcp.pop %v3298
    %v3614 = vmul.f32 1.0, %v3613
    %v3615 = vrcp.pop %v3299
    %v3616 = vmul.f32 1.0, %v3615
    %v3617 = vrcp.pop %v3300
    %v3618 = vmul.f32 1.0, %v3617
    %v3619 = vrcp.pop %v3301
    %v3620 = vmul.f32 1.0, %v3619
    %v3621 = vrcp.pop %v3302
    %v3622 = vmul.f32 1.0, %v3621
    %v3623 = vrcp.pop %v3303
    %v3624 = vmul.f32 1.0, %v3623
    %v3625 = vrcp.pop %v3304
    %v3626 = vmul.f32 1.0, %v3625
    %v3627 = vrcp.pop %v3305
    %v3628 = vmul.f32 1.0, %v3627
    %v3629 = vrcp.pop %v3306
    %v3630 = vmul.f32 1.0, %v3629
    %v3631 = vrcp.pop %v3307
    %v3632 = vmul.f32 1.0, %v3631
    %v3633 = vrcp.pop %v3308
    %v3634 = vmul.f32 1.0, %v3633
    %v3635 = vrcp.pop %v3309
    %v3636 = vmul.f32 1.0, %v3635
    %v3637 = vrcp.pop %v3310
    %v3638 = vmul.f32 1.0, %v3637
    %v3639 = vrcp.pop %v3311
    %v3640 = vmul.f32 1.0, %v3639
    %v3641 = vrcp.pop %v3312
    %v3642 = vmul.f32 1.0, %v3641
    %v3643 = vrcp.pop %v3313
    %v3644 = vmul.f32 1.0, %v3643
    %v3645 = vrcp.pop %v3314
    %v3646 = vmul.f32 1.0, %v3645
    %v3647 = vrcp.pop %v3315
    %v3648 = vmul.f32 1.0, %v3647
    %v3649 = vrcp.pop %v3316
    %v3650 = vmul.f32 1.0, %v3649
    %v3651 = vrcp.pop %v3317
    %v3652 = vmul.f32 1.0, %v3651
    %v3653 = vrcp.pop %v3318
    %v3654 = vmul.f32 1.0, %v3653
    %v3655 = vrcp.pop %v3319
    %v3656 = vmul.f32 1.0, %v3655
    %v3657 = vrcp.pop %v3320
    %v3658 = vmul.f32 1.0, %v3657
    %v3659 = vrcp.pop %v3321
    %v3660 = vmul.f32 1.0, %v3659
    %v3661 = vrcp.pop %v3322
    %v3662 = vmul.f32 1.0, %v3661
    %v3663 = vrcp.pop %v3323
    %v3664 = vmul.f32 1.0, %v3663
    %v3665 = vrcp.pop %v3324
    %v3666 = vmul.f32 1.0, %v3665
    %v3667 = vrcp.pop %v3325
    %v3668 = vmul.f32 1.0, %v3667
    %v3669 = vrcp.pop %v3326
    %v3670 = vmul.f32 1.0, %v3669
    %v3671 = vrcp.pop %v3327
    %v3672 = vmul.f32 1.0, %v3671
    %v3673 = vrcp.pop %v3328
    %v3674 = vmul.f32 1.0, %v3673
    %v3675 = vrcp.pop %v3329
    %v3676 = vmul.f32 1.0, %v3675
    %v3677 = vrcp.pop %v3330
    %v3678 = vmul.f32 1.0, %v3677
    %v3679 = vrcp.pop %v3331
    %v3680 = vmul.f32 1.0, %v3679
    %v3681 = vrcp.pop %v3332
    %v3682 = vmul.f32 1.0, %v3681
    %v3683 = vrcp.pop %v3333
    %v3684 = vmul.f32 1.0, %v3683
    %v3685 = vrcp.pop %v3334
    %v3686 = vmul.f32 1.0, %v3685
    %v3687 = vrcp.pop %v3335
    %v3688 = vmul.f32 1.0, %v3687
    %v3689 = vrcp.pop %v3336
    %v3690 = vmul.f32 1.0, %v3689
    %v3691 = vrcp.pop %v3337
    %v3692 = vmul.f32 1.0, %v3691
    %v3693 = vrcp.pop %v3338
    %v3694 = vmul.f32 1.0, %v3693
    %v3695 = vrcp.pop %v3339
    %v3696 = vmul.f32 1.0, %v3695
    %v3697 = vrcp.pop %v3340
    %v3698 = vmul.f32 1.0, %v3697
    %v3699 = vrcp.pop %v3341
    %v3700 = vmul.f32 1.0, %v3699
    %v3701 = vrcp.pop %v3342
    %v3702 = vmul.f32 1.0, %v3701
    %v3703 = vrcp.pop %v3343
    %v3704 = vmul.f32 1.0, %v3703
    %v3705 = vrcp.pop %v3344
    %v3706 = vmul.f32 1.0, %v3705
    %v3707 = vrcp.pop %v3345
    %v3708 = vmul.f32 1.0, %v3707
    %v3709 = vrcp.pop %v3346
    %v3710 = vmul.f32 1.0, %v3709
    %v3711 = vrcp.pop %v3347
    %v3712 = vmul.f32 1.0, %v3711
    %v3713 = vrcp.pop %v3348
    %v3714 = vmul.f32 1.0, %v3713
    %v3715 = vrcp.pop %v3349
    %v3716 = vmul.f32 1.0, %v3715
    %v3717 = vrcp.pop %v3350
    %v3718 = vmul.f32 1.0, %v3717
    %v3719 = vrcp.pop %v3351
    %v3720 = vmul.f32 1.0, %v3719
    %v3721 = vrcp.pop %v3352
    %v3722 = vmul.f32 1.0, %v3721
    %v3723 = vrcp.pop %v3353
    %v3724 = vmul.f32 1.0, %v3723
    %v3725 = vrcp.pop %v3354
    %v3726 = vmul.f32 1.0, %v3725
    %v3727 = vrcp.pop %v3355
    %v3728 = vmul.f32 1.0, %v3727
    %v3729 = vrcp.pop %v3356
    %v3730 = vmul.f32 1.0, %v3729
    %v3731 = vrcp.pop %v3357
    %v3732 = vmul.f32 1.0, %v3731
    %v3733 = vrcp.pop %v3358
    %v3734 = vmul.f32 1.0, %v3733
    %v3735 = vrcp.pop %v3359
    %v3736 = vmul.f32 1.0, %v3735
    %v3737 = vrcp.pop %v3360
    %v3738 = vmul.f32 1.0, %v3737
    %v3739 = vrcp.pop %v3361
    %v3740 = vmul.f32 1.0, %v3739
    %v3741 = vrcp.pop %v3362
    %v3742 = vmul.f32 1.0, %v3741
    %v3743 = vrcp.pop %v3363
    %v3744 = vmul.f32 1.0, %v3743
    %v3745 = vrcp.pop %v3364
    %v3746 = vmul.f32 1.0, %v3745
    %v3747 = vrcp.pop %v3365
    %v3748 = vmul.f32 1.0, %v3747
    %v3749 = vrcp.pop %v3366
    %v3750 = vmul.f32 1.0, %v3749
    %v3751 = vmul.f32 %v1476, %v3368
    %v3752 = vmul.f32 %v1478, %v3370
    %v3753 = vmul.f32 %v1669, %v3372
    %v3754 = vmul.f32 %v1671, %v3374
    %v3755 = vmul.f32 %v1862, %v3376
    %v3756 = vmul.f32 %v1864, %v3378
    %v3757 = vmul.f32 %v1480, %v3380
    %v3758 = vmul.f32 %v1482, %v3382
    %v3759 = vmul.f32 %v1673, %v3384
    %v3760 = vmul.f32 %v1675, %v3386
    %v3761 = vmul.f32 %v1866, %v3388
    %v3762 = vmul.f32 %v1868, %v3390
    %v3763 = vmul.f32 %v1486, %v3392
    %v3764 = vmul.f32 %v1488, %v3394
    %v3765 = vmul.f32 %v1679, %v3396
    %v3766 = vmul.f32 %v1681, %v3398
    %v3767 = vmul.f32 %v1872, %v3400
    %v3768 = vmul.f32 %v1874, %v3402
    %v3769 = vmul.f32 %v1490, %v3404
    %v3770 = vmul.f32 %v1492, %v3406
    %v3771 = vmul.f32 %v1683, %v3408
    %v3772 = vmul.f32 %v1685, %v3410
    %v3773 = vmul.f32 %v1876, %v3412
    %v3774 = vmul.f32 %v1878, %v3414
    %v3775 = vmul.f32 %v1496, %v3416
    %v3776 = vmul.f32 %v1498, %v3418
    %v3777 = vmul.f32 %v1689, %v3420
    %v3778 = vmul.f32 %v1691, %v3422
    %v3779 = vmul.f32 %v1882, %v3424
    %v3780 = vmul.f32 %v1884, %v3426
    %v3781 = vmul.f32 %v1500, %v3428
    %v3782 = vmul.f32 %v1502, %v3430
    %v3783 = vmul.f32 %v1693, %v3432
    %v3784 = vmul.f32 %v1695, %v3434
    %v3785 = vmul.f32 %v1886, %v3436
    %v3786 = vmul.f32 %v1888, %v3438
    %v3787 = vmul.f32 %v1506, %v3440
    %v3788 = vmul.f32 %v1508, %v3442
    %v3789 = vmul.f32 %v1699, %v3444
    %v3790 = vmul.f32 %v1701, %v3446
    %v3791 = vmul.f32 %v1892, %v3448
    %v3792 = vmul.f32 %v1894, %v3450
    %v3793 = vmul.f32 %v1510, %v3452
    %v3794 = vmul.f32 %v1512, %v3454
    %v3795 = vmul.f32 %v1703, %v3456
    %v3796 = vmul.f32 %v1705, %v3458
    %v3797 = vmul.f32 %v1896, %v3460
    %v3798 = vmul.f32 %v1898, %v3462
    %v3799 = vmul.f32 %v1516, %v3464
    %v3800 = vmul.f32 %v1518, %v3466
    %v3801 = vmul.f32 %v1709, %v3468
    %v3802 = vmul.f32 %v1711, %v3470
    %v3803 = vmul.f32 %v1902, %v3472
    %v3804 = vmul.f32 %v1904, %v3474
    %v3805 = vmul.f32 %v1520, %v3476
    %v3806 = vmul.f32 %v1522, %v3478
    %v3807 = vmul.f32 %v1713, %v3480
    %v3808 = vmul.f32 %v1715, %v3482
    %v3809 = vmul.f32 %v1906, %v3484
    %v3810 = vmul.f32 %v1908, %v3486
    %v3811 = vmul.f32 %v1526, %v3488
    %v3812 = vmul.f32 %v1528, %v3490
    %v3813 = vmul.f32 %v1719, %v3492
    %v3814 = vmul.f32 %v1721, %v3494
    %v3815 = vmul.f32 %v1912, %v3496
    %v3816 = vmul.f32 %v1914, %v3498
    %v3817 = vmul.f32 %v1530, %v3500
    %v3818 = vmul.f32 %v1532, %v3502
    %v3819 = vmul.f32 %v1723, %v3504
    %v3820 = vmul.f32 %v1725, %v3506
    %v3821 = vmul.f32 %v1916, %v3508
    %v3822 = vmul.f32 %v1918, %v3510
    %v3823 = vmul.f32 %v1536, %v3512
    %v3824 = vmul.f32 %v1538, %v3514
    %v3825 = vmul.f32 %v1729, %v3516
    %v3826 = vmul.f32 %v1731, %v3518
    %v3827 = vmul.f32 %v1922, %v3520
    %v3828 = vmul.f32 %v1924, %v3522
    %v3829 = vmul.f32 %v1540, %v3524
    %v3830 = vmul.f32 %v1542, %v3526
    %v3831 = vmul.f32 %v1733, %v3528
    %v3832 = vmul.f32 %v1735, %v3530
    %v3833 = vmul.f32 %v1926, %v3532
    %v3834 = vmul.f32 %v1928, %v3534
    %v3835 = vmul.f32 %v1546, %v3536
    %v3836 = vmul.f32 %v1548, %v3538
    %v3837 = vmul.f32 %v1739, %v3540
    %v3838 = vmul.f32 %v1741, %v3542
    %v3839 = vmul.f32 %v1932, %v3544
    %v3840 = vmul.f32 %v1934, %v3546
    %v3841 = vmul.f32 %v1550, %v3548
    %v3842 = vmul.f32 %v1552, %v3550
    %v3843 = vmul.f32 %v1743, %v3552
    %v3844 = vmul.f32 %v1745, %v3554
    %v3845 = vmul.f32 %v1936, %v3556
    %v3846 = vmul.f32 %v1938, %v3558
    %v3847 = vmul.f32 %v1556, %v3560
    %v3848 = vmul.f32 %v1558, %v3562
    %v3849 = vmul.f32 %v1749, %v3564
    %v3850 = vmul.f32 %v1751, %v3566
    %v3851 = vmul.f32 %v1942, %v3568
    %v3852 = vmul.f32 %v1944, %v3570
    %v3853 = vmul.f32 %v1560, %v3572
    %v3854 = vmul.f32 %v1562, %v3574
    %v3855 = vmul.f32 %v1753, %v3576
    %v3856 = vmul.f32 %v1755, %v3578
    %v3857 = vmul.f32 %v1946, %v3580
    %v3858 = vmul.f32 %v1948, %v3582
    %v3859 = vmul.f32 %v1566, %v3584
    %v3860 = vmul.f32 %v1568, %v3586
    %v3861 = vmul.f32 %v1759, %v3588
    %v3862 = vmul.f32 %v1761, %v3590
    %v3863 = vmul.f32 %v1952, %v3592
    %v3864 = vmul.f32 %v1954, %v3594
    %v3865 = vmul.f32 %v1570, %v3596
    %v3866 = vmul.f32 %v1572, %v3598
    %v3867 = vmul.f32 %v1763, %v3600
    %v3868 = vmul.f32 %v1765, %v3602
    %v3869 = vmul.f32 %v1956, %v3604
    %v3870 = vmul.f32 %v1958, %v3606
    %v3871 = vmul.f32 %v1576, %v3608
    %v3872 = vmul.f32 %v1578, %v3610
    %v3873 = vmul.f32 %v1769, %v3612
    %v3874 = vmul.f32 %v1771, %v3614
    %v3875 = vmul.f32 %v1962, %v3616
    %v3876 = vmul.f32 %v1964, %v3618
    %v3877 = vmul.f32 %v1580, %v3620
    %v3878 = vmul.f32 %v1582, %v3622
    %v3879 = vmul.f32 %v1773, %v3624
    %v3880 = vmul.f32 %v1775, %v3626
    %v3881 = vmul.f32 %v1966, %v3628
    %v3882 = vmul.f32 %v1968, %v3630
    %v3883 = vmul.f32 %v1586, %v3632
    %v3884 = vmul.f32 %v1588, %v3634
    %v3885 = vmul.f32 %v1779, %v3636
    %v3886 = vmul.f32 %v1781, %v3638
    %v3887 = vmul.f32 %v1972, %v3640
    %v3888 = vmul.f32 %v1974, %v3642
    %v3889 = vmul.f32 %v1590, %v3644
    %v3890 = vmul.f32 %v1592, %v3646
    %v3891 = vmul.f32 %v1783, %v3648
    %v3892 = vmul.f32 %v1785, %v3650
    %v3893 = vmul.f32 %v1976, %v3652
    %v3894 = vmul.f32 %v1978, %v3654
    %v3895 = vmul.f32 %v1596, %v3656
    %v3896 = vmul.f32 %v1598, %v3658
    %v3897 = vmul.f32 %v1789, %v3660
    %v3898 = vmul.f32 %v1791, %v3662
    %v3899 = vmul.f32 %v1982, %v3664
    %v3900 = vmul.f32 %v1984, %v3666
    %v3901 = vmul.f32 %v1600, %v3668
    %v3902 = vmul.f32 %v1602, %v3670
    %v3903 = vmul.f32 %v1793, %v3672
    %v3904 = vmul.f32 %v1795, %v3674
    %v3905 = vmul.f32 %v1986, %v3676
    %v3906 = vmul.f32 %v1988, %v3678
    %v3907 = vmul.f32 %v1606, %v3680
    %v3908 = vmul.f32 %v1608, %v3682
    %v3909 = vmul.f32 %v1799, %v3684
    %v3910 = vmul.f32 %v1801, %v3686
    %v3911 = vmul.f32 %v1992, %v3688
    %v3912 = vmul.f32 %v1994, %v3690
    %v3913 = vmul.f32 %v1610, %v3692
    %v3914 = vmul.f32 %v1612, %v3694
    %v3915 = vmul.f32 %v1803, %v3696
    %v3916 = vmul.f32 %v1805, %v3698
    %v3917 = vmul.f32 %v1996, %v3700
    %v3918 = vmul.f32 %v1998, %v3702
    %v3919 = vmul.f32 %v1616, %v3704
    %v3920 = vmul.f32 %v1618, %v3706
    %v3921 = vmul.f32 %v1809, %v3708
    %v3922 = vmul.f32 %v1811, %v3710
    %v3923 = vmul.f32 %v2002, %v3712
    %v3924 = vmul.f32 %v2004, %v3714
    %v3925 = vmul.f32 %v1620, %v3716
    %v3926 = vmul.f32 %v1622, %v3718
    %v3927 = vmul.f32 %v1813, %v3720
    %v3928 = vmul.f32 %v1815, %v3722
    %v3929 = vmul.f32 %v2006, %v3724
    %v3930 = vmul.f32 %v2008, %v3726
    %v3931 = vmul.f32 %v1626, %v3728
    %v3932 = vmul.f32 %v1628, %v3730
    %v3933 = vmul.f32 %v1819, %v3732
    %v3934 = vmul.f32 %v1821, %v3734
    %v3935 = vmul.f32 %v2012, %v3736
    %v3936 = vmul.f32 %v2014, %v3738
    %v3937 = vmul.f32 %v1630, %v3740
    %v3938 = vmul.f32 %v1632, %v3742
    %v3939 = vmul.f32 %v1823, %v3744
    %v3940 = vmul.f32 %v1825, %v3746
    %v3941 = vmul.f32 %v2016, %v3748
    %v3942 = vmul.f32 %v2018, %v3750
    %v3943 = vmul.f32 %v3751, %v2055
    %v3944 = vmul.f32 %v3752, %v2057
    %v3945 = vmul.f32 %v3753, %v2248
    %v3946 = vmul.f32 %v3754, %v2250
    %v3947 = vmul.f32 %v3755, %v2441
    %v3948 = vmul.f32 %v3756, %v2443
    %v3949 = vmul.f32 %v3757, %v2059
    %v3950 = vmul.f32 %v3758, %v2061
    %v3951 = vmul.f32 %v3759, %v2252
    %v3952 = vmul.f32 %v3760, %v2254
    %v3953 = vmul.f32 %v3761, %v2445
    %v3954 = vmul.f32 %v3762, %v2447
    %v3955 = vmul.f32 %v3763, %v2065
    %v3956 = vmul.f32 %v3764, %v2067
    %v3957 = vmul.f32 %v3765, %v2258
    %v3958 = vmul.f32 %v3766, %v2260
    %v3959 = vmul.f32 %v3767, %v2451
    %v3960 = vmul.f32 %v3768, %v2453
    %v3961 = vmul.f32 %v3769, %v2069
    %v3962 = vmul.f32 %v3770, %v2071
    %v3963 = vmul.f32 %v3771, %v2262
    %v3964 = vmul.f32 %v3772, %v2264
    %v3965 = vmul.f32 %v3773, %v2455
    %v3966 = vmul.f32 %v3774, %v2457
    %v3967 = vmul.f32 %v3775, %v2075
    %v3968 = vmul.f32 %v3776, %v2077
    %v3969 = vmul.f32 %v3777, %v2268
    %v3970 = vmul.f32 %v3778, %v2270
    %v3971 = vmul.f32 %v3779, %v2461
    %v3972 = vmul.f32 %v3780, %v2463
    %v3973 = vmul.f32 %v3781, %v2079
    %v3974 = vmul.f32 %v3782, %v2081
    %v3975 = vmul.f32 %v3783, %v2272
    %v3976 = vmul.f32 %v3784, %v2274
    %v3977 = vmul.f32 %v3785, %v2465
    %v3978 = vmul.f32 %v3786, %v2467
    %v3979 = vmul.f32 %v3787, %v2085
    %v3980 = vmul.f32 %v3788, %v2087
    %v3981 = vmul.f32 %v3789, %v2278
    %v3982 = vmul.f32 %v3790, %v2280
    %v3983 = vmul.f32 %v3791, %v2471
    %v3984 = vmul.f32 %v3792, %v2473
    %v3985 = vmul.f32 %v3793, %v2089
    %v3986 = vmul.f32 %v3794, %v2091
    %v3987 = vmul.f32 %v3795, %v2282
    %v3988 = vmul.f32 %v3796, %v2284
    %v3989 = vmul.f32 %v3797, %v2475
    %v3990 = vmul.f32 %v3798, %v2477
    %v3991 = vmul.f32 %v3799, %v2095
    %v3992 = vmul.f32 %v3800, %v2097
    %v3993 = vmul.f32 %v3801, %v2288
    %v3994 = vmul.f32 %v3802, %v2290
    %v3995 = vmul.f32 %v3803, %v2481
    %v3996 = vmul.f32 %v3804, %v2483
    %v3997 = vmul.f32 %v3805, %v2099
    %v3998 = vmul.f32 %v3806, %v2101
    %v3999 = vmul.f32 %v3807, %v2292
    %v4000 = vmul.f32 %v3808, %v2294
    %v4001 = vmul.f32 %v3809, %v2485
    %v4002 = vmul.f32 %v3810, %v2487
    %v4003 = vmul.f32 %v3811, %v2105
    %v4004 = vmul.f32 %v3812, %v2107
    %v4005 = vmul.f32 %v3813, %v2298
    %v4006 = vmul.f32 %v3814, %v2300
    %v4007 = vmul.f32 %v3815, %v2491
    %v4008 = vmul.f32 %v3816, %v2493
    %v4009 = vmul.f32 %v3817, %v2109
    %v4010 = vmul.f32 %v3818, %v2111
    %v4011 = vmul.f32 %v3819, %v2302
    %v4012 = vmul.f32 %v3820, %v2304
    %v4013 = vmul.f32 %v3821, %v2495
    %v4014 = vmul.f32 %v3822, %v2497
    %v4015 = vmul.f32 %v3823, %v2115
    %v4016 = vmul.f32 %v3824, %v2117
    %v4017 = vmul.f32 %v3825, %v2308
    %v4018 = vmul.f32 %v3826, %v2310
    %v4019 = vmul.f32 %v3827, %v2501
    %v4020 = vmul.f32 %v3828, %v2503
    %v4021 = vmul.f32 %v3829, %v2119
    %v4022 = vmul.f32 %v3830, %v2121
    %v4023 = vmul.f32 %v3831, %v2312
    %v4024 = vmul.f32 %v3832, %v2314
    %v4025 = vmul.f32 %v3833, %v2505
    %v4026 = vmul.f32 %v3834, %v2507
    %v4027 = vmul.f32 %v3835, %v2125
    %v4028 = vmul.f32 %v3836, %v2127
    %v4029 = vmul.f32 %v3837, %v2318
    %v4030 = vmul.f32 %v3838, %v2320
    %v4031 = vmul.f32 %v3839, %v2511
    %v4032 = vmul.f32 %v3840, %v2513
    %v4033 = vmul.f32 %v3841, %v2129
    %v4034 = vmul.f32 %v3842, %v2131
    %v4035 = vmul.f32 %v3843, %v2322
    %v4036 = vmul.f32 %v3844, %v2324
    %v4037 = vmul.f32 %v3845, %v2515
    %v4038 = vmul.f32 %v3846, %v2517
    %v4039 = vmul.f32 %v3847, %v2135
    %v4040 = vmul.f32 %v3848, %v2137
    %v4041 = vmul.f32 %v3849, %v2328
    %v4042 = vmul.f32 %v3850, %v2330
    %v4043 = vmul.f32 %v3851, %v2521
    %v4044 = vmul.f32 %v3852, %v2523
    %v4045 = vmul.f32 %v3853, %v2139
    %v4046 = vmul.f32 %v3854, %v2141
    %v4047 = vmul.f32 %v3855, %v2332
    %v4048 = vmul.f32 %v3856, %v2334
    %v4049 = vmul.f32 %v3857, %v2525
    %v4050 = vmul.f32 %v3858, %v2527
    %v4051 = vmul.f32 %v3859, %v2145
    %v4052 = vmul.f32 %v3860, %v2147
    %v4053 = vmul.f32 %v3861, %v2338
    %v4054 = vmul.f32 %v3862, %v2340
    %v4055 = vmul.f32 %v3863, %v2531
    %v4056 = vmul.f32 %v3864, %v2533
    %v4057 = vmul.f32 %v3865, %v2149
    %v4058 = vmul.f32 %v3866, %v2151
    %v4059 = vmul.f32 %v3867, %v2342
    %v4060 = vmul.f32 %v3868, %v2344
    %v4061 = vmul.f32 %v3869, %v2535
    %v4062 = vmul.f32 %v3870, %v2537
    %v4063 = vmul.f32 %v3871, %v2155
    %v4064 = vmul.f32 %v3872, %v2157
    %v4065 = vmul.f32 %v3873, %v2348
    %v4066 = vmul.f32 %v3874, %v2350
    %v4067 = vmul.f32 %v3875, %v2541
    %v4068 = vmul.f32 %v3876, %v2543
    %v4069 = vmul.f32 %v3877, %v2159
    %v4070 = vmul.f32 %v3878, %v2161
    %v4071 = vmul.f32 %v3879, %v2352
    %v4072 = vmul.f32 %v3880, %v2354
    %v4073 = vmul.f32 %v3881, %v2545
    %v4074 = vmul.f32 %v3882, %v2547
    %v4075 = vmul.f32 %v3883, %v2165
    %v4076 = vmul.f32 %v3884, %v2167
    %v4077 = vmul.f32 %v3885, %v2358
    %v4078 = vmul.f32 %v3886, %v2360
    %v4079 = vmul.f32 %v3887, %v2551
    %v4080 = vmul.f32 %v3888, %v2553
    %v4081 = vmul.f32 %v3889, %v2169
    %v4082 = vmul.f32 %v3890, %v2171
    %v4083 = vmul.f32 %v3891, %v2362
    %v4084 = vmul.f32 %v3892, %v2364
    %v4085 = vmul.f32 %v3893, %v2555
    %v4086 = vmul.f32 %v3894, %v2557
    %v4087 = vmul.f32 %v3895, %v2175
    %v4088 = vmul.f32 %v3896, %v2177
    %v4089 = vmul.f32 %v3897, %v2368
    %v4090 = vmul.f32 %v3898, %v2370
    %v4091 = vmul.f32 %v3899, %v2561
    %v4092 = vmul.f32 %v3900, %v2563
    %v4093 = vmul.f32 %v3901, %v2179
    %v4094 = vmul.f32 %v3902, %v2181
    %v4095 = vmul.f32 %v3903, %v2372
    %v4096 = vmul.f32 %v3904, %v2374
    %v4097 = vmul.f32 %v3905, %v2565
    %v4098 = vmul.f32 %v3906, %v2567
    %v4099 = vmul.f32 %v3907, %v2185
    %v4100 = vmul.f32 %v3908, %v2187
    %v4101 = vmul.f32 %v3909, %v2378
    %v4102 = vmul.f32 %v3910, %v2380
    %v4103 = vmul.f32 %v3911, %v2571
    %v4104 = vmul.f32 %v3912, %v2573
    %v4105 = vmul.f32 %v3913, %v2189
    %v4106 = vmul.f32 %v3914, %v2191
    %v4107 = vmul.f32 %v3915, %v2382
    %v4108 = vmul.f32 %v3916, %v2384
    %v4109 = vmul.f32 %v3917, %v2575
    %v4110 = vmul.f32 %v3918, %v2577
    %v4111 = vmul.f32 %v3919, %v2195
    %v4112 = vmul.f32 %v3920, %v2197
    %v4113 = vmul.f32 %v3921, %v2388
    %v4114 = vmul.f32 %v3922, %v2390
    %v4115 = vmul.f32 %v3923, %v2581
    %v4116 = vmul.f32 %v3924, %v2583
    %v4117 = vmul.f32 %v3925, %v2199
    %v4118 = vmul.f32 %v3926, %v2201
    %v4119 = vmul.f32 %v3927, %v2392
    %v4120 = vmul.f32 %v3928, %v2394
    %v4121 = vmul.f32 %v3929, %v2585
    %v4122 = vmul.f32 %v3930, %v2587
    %v4123 = vmul.f32 %v3931, %v2205
    %v4124 = vmul.f32 %v3932, %v2207
    %v4125 = vmul.f32 %v3933, %v2398
    %v4126 = vmul.f32 %v3934, %v2400
    %v4127 = vmul.f32 %v3935, %v2591
    %v4128 = vmul.f32 %v3936, %v2593
    %v4129 = vmul.f32 %v3937, %v2209
    %v4130 = vmul.f32 %v3938, %v2211
    %v4131 = vmul.f32 %v3939, %v2402
    %v4132 = vmul.f32 %v3940, %v2404
    %v4133 = vmul.f32 %v3941, %v2595
    %v4134 = vmul.f32 %v3942, %v2597
    %v4135 = vld [vmem:[#allocation2] sm:$0xff]
    %v4136 = vld [vmem:[#allocation2 + $0x8] sm:$0xff]
    %v4137 = vld [vmem:[#allocation2 + $0x10] sm:$0xff]
    %v4138 = vld [vmem:[#allocation2 + $0x18] sm:$0xff]
    %v4139 = vld [vmem:[#allocation2 + $0x20] sm:$0xff]
    %v4140 = vld [vmem:[#allocation2 + $0x28] sm:$0xff]
    %v4141 = vld [vmem:[#allocation2 + $0x30] sm:$0xff]
    %v4142 = vld [vmem:[#allocation2 + $0x38] sm:$0xff]
    %v4143 = vld [vmem:[#allocation2 + $0x40] sm:$0xff]
    %v4144 = vld [vmem:[#allocation2 + $0x48] sm:$0xff]
    %v4145 = vld [vmem:[#allocation2 + $0x50] sm:$0xff]
    %v4146 = vld [vmem:[#allocation2 + $0x58] sm:$0xff]
    %v4147 = vld [vmem:[#allocation2 + $0x60] sm:$0xff]
    %v4148 = vld [vmem:[#allocation2 + $0x68] sm:$0xff]
    %v4149 = vld [vmem:[#allocation2 + $0x70] sm:$0xff]
    %v4150 = vld [vmem:[#allocation2 + $0x78] sm:$0xff]
    %v4151 = vld [vmem:[#allocation2 + $0x80] sm:$0xff]
    %v4152 = vld [vmem:[#allocation2 + $0x88] sm:$0xff]
    %v4153 = vld [vmem:[#allocation2 + $0x90] sm:$0xff]
    %v4154 = vld [vmem:[#allocation2 + $0x98] sm:$0xff]
    %v4155 = vld [vmem:[#allocation2 + $0xa0] sm:$0xff]
    %v4156 = vld [vmem:[#allocation2 + $0xa8] sm:$0xff]
    %v4157 = vld [vmem:[#allocation2 + $0xb0] sm:$0xff]
    %v4158 = vld [vmem:[#allocation2 + $0xb8] sm:$0xff]
    %v4159 = vld [vmem:[#allocation2 + $0xc0] sm:$0xff]
    %v4160 = vld [vmem:[#allocation2 + $0xc8] sm:$0xff]
    %v4161 = vld [vmem:[#allocation2 + $0xd0] sm:$0xff]
    %v4162 = vld [vmem:[#allocation2 + $0xd8] sm:$0xff]
    %v4163 = vld [vmem:[#allocation2 + $0xe0] sm:$0xff]
    %v4164 = vld [vmem:[#allocation2 + $0xe8] sm:$0xff]
    %v4165 = vld [vmem:[#allocation2 + $0xf0] sm:$0xff]
    %v4166 = vld [vmem:[#allocation2 + $0xf8] sm:$0xff]
    %v4167 = vld [vmem:[#allocation2 + $0x100] sm:$0xff]
    %v4168 = vld [vmem:[#allocation2 + $0x108] sm:$0xff]
    %v4169 = vld [vmem:[#allocation2 + $0x110] sm:$0xff]
    %v4170 = vld [vmem:[#allocation2 + $0x118] sm:$0xff]
    %v4171 = vld [vmem:[#allocation2 + $0x120] sm:$0xff]
    %v4172 = vld [vmem:[#allocation2 + $0x128] sm:$0xff]
    %v4173 = vld [vmem:[#allocation2 + $0x130] sm:$0xff]
    %v4174 = vld [vmem:[#allocation2 + $0x138] sm:$0xff]
    %v4175 = vld [vmem:[#allocation2 + $0x140] sm:$0xff]
    %v4176 = vld [vmem:[#allocation2 + $0x148] sm:$0xff]
    %v4177 = vld [vmem:[#allocation2 + $0x150] sm:$0xff]
    %v4178 = vld [vmem:[#allocation2 + $0x158] sm:$0xff]
    %v4179 = vld [vmem:[#allocation2 + $0x160] sm:$0xff]
    %v4180 = vld [vmem:[#allocation2 + $0x168] sm:$0xff]
    %v4181 = vld [vmem:[#allocation2 + $0x170] sm:$0xff]
    %v4182 = vld [vmem:[#allocation2 + $0x178] sm:$0xff]
    %v4183 = vld [vmem:[#allocation2 + $0x180] sm:$0xff]
    %v4184 = vld [vmem:[#allocation2 + $0x188] sm:$0xff]
    %v4185 = vld [vmem:[#allocation2 + $0x190] sm:$0xff]
    %v4186 = vld [vmem:[#allocation2 + $0x198] sm:$0xff]
    %v4187 = vld [vmem:[#allocation2 + $0x1a0] sm:$0xff]
    %v4188 = vld [vmem:[#allocation2 + $0x1a8] sm:$0xff]
    %v4189 = vld [vmem:[#allocation2 + $0x1b0] sm:$0xff]
    %v4190 = vld [vmem:[#allocation2 + $0x1b8] sm:$0xff]
    %v4191 = vld [vmem:[#allocation2 + $0x1c0] sm:$0xff]
    %v4192 = vld [vmem:[#allocation2 + $0x1c8] sm:$0xff]
    %v4193 = vld [vmem:[#allocation2 + $0x1d0] sm:$0xff]
    %v4194 = vld [vmem:[#allocation2 + $0x1d8] sm:$0xff]
    %v4195 = vld [vmem:[#allocation2 + $0x1e0] sm:$0xff]
    %v4196 = vld [vmem:[#allocation2 + $0x1e8] sm:$0xff]
    %v4197 = vld [vmem:[#allocation2 + $0x1f0] sm:$0xff]
    %v4198 = vld [vmem:[#allocation2 + $0x1f8] sm:$0xff]
    %v4199 = vpack.c.bf16 %v3949, %v3943
    %v4200 = vpack.c.bf16 %v3950, %v3944
    %v4201 = vpack.c.bf16 %v3951, %v3945
    %v4202 = vpack.c.bf16 %v3952, %v3946
    %v4203 = vpack.c.bf16 %v3953, %v3947
    %v4204 = vpack.c.bf16 %v3954, %v3948
    %v4205 = vpack.c.bf16 %v3961, %v3955
    %v4206 = vpack.c.bf16 %v3962, %v3956
    %v4207 = vpack.c.bf16 %v3963, %v3957
    %v4208 = vpack.c.bf16 %v3964, %v3958
    %v4209 = vpack.c.bf16 %v3965, %v3959
    %v4210 = vpack.c.bf16 %v3966, %v3960
    %v4211 = vpack.c.bf16 %v3973, %v3967
    %v4212 = vpack.c.bf16 %v3974, %v3968
    %v4213 = vpack.c.bf16 %v3975, %v3969
    %v4214 = vpack.c.bf16 %v3976, %v3970
    %v4215 = vpack.c.bf16 %v3977, %v3971
    %v4216 = vpack.c.bf16 %v3978, %v3972
    %v4217 = vpack.c.bf16 %v3985, %v3979
    %v4218 = vpack.c.bf16 %v3986, %v3980
    %v4219 = vpack.c.bf16 %v3987, %v3981
    %v4220 = vpack.c.bf16 %v3988, %v3982
    %v4221 = vpack.c.bf16 %v3989, %v3983
    %v4222 = vpack.c.bf16 %v3990, %v3984
    %v4223 = vpack.c.bf16 %v3997, %v3991
    %v4224 = vpack.c.bf16 %v3998, %v3992
    %v4225 = vpack.c.bf16 %v3999, %v3993
    %v4226 = vpack.c.bf16 %v4000, %v3994
    %v4227 = vpack.c.bf16 %v4001, %v3995
    %v4228 = vpack.c.bf16 %v4002, %v3996
    %v4229 = vpack.c.bf16 %v4009, %v4003
    %v4230 = vpack.c.bf16 %v4010, %v4004
    %v4231 = vpack.c.bf16 %v4011, %v4005
    %v4232 = vpack.c.bf16 %v4012, %v4006
    %v4233 = vpack.c.bf16 %v4013, %v4007
    %v4234 = vpack.c.bf16 %v4014, %v4008
    %v4235 = vpack.c.bf16 %v4021, %v4015
    %v4236 = vpack.c.bf16 %v4022, %v4016
    %v4237 = vpack.c.bf16 %v4023, %v4017
    %v4238 = vpack.c.bf16 %v4024, %v4018
    %v4239 = vpack.c.bf16 %v4025, %v4019
    %v4240 = vpack.c.bf16 %v4026, %v4020
    %v4241 = vpack.c.bf16 %v4033, %v4027
    %v4242 = vpack.c.bf16 %v4034, %v4028
    %v4243 = vpack.c.bf16 %v4035, %v4029
    %v4244 = vpack.c.bf16 %v4036, %v4030
    %v4245 = vpack.c.bf16 %v4037, %v4031
    %v4246 = vpack.c.bf16 %v4038, %v4032
    %v4247 = vpack.c.bf16 %v4045, %v4039
    %v4248 = vpack.c.bf16 %v4046, %v4040
    %v4249 = vpack.c.bf16 %v4047, %v4041
    %v4250 = vpack.c.bf16 %v4048, %v4042
    %v4251 = vpack.c.bf16 %v4049, %v4043
    %v4252 = vpack.c.bf16 %v4050, %v4044
    %v4253 = vpack.c.bf16 %v4057, %v4051
    %v4254 = vpack.c.bf16 %v4058, %v4052
    %v4255 = vpack.c.bf16 %v4059, %v4053
    %v4256 = vpack.c.bf16 %v4060, %v4054
    %v4257 = vpack.c.bf16 %v4061, %v4055
    %v4258 = vpack.c.bf16 %v4062, %v4056
    %v4259 = vpack.c.bf16 %v4069, %v4063
    %v4260 = vpack.c.bf16 %v4070, %v4064
    %v4261 = vpack.c.bf16 %v4071, %v4065
    %v4262 = vpack.c.bf16 %v4072, %v4066
    %v4263 = vpack.c.bf16 %v4073, %v4067
    %v4264 = vpack.c.bf16 %v4074, %v4068
    %v4265 = vpack.c.bf16 %v4081, %v4075
    %v4266 = vpack.c.bf16 %v4082, %v4076
    %v4267 = vpack.c.bf16 %v4083, %v4077
    %v4268 = vpack.c.bf16 %v4084, %v4078
    %v4269 = vpack.c.bf16 %v4085, %v4079
    %v4270 = vpack.c.bf16 %v4086, %v4080
    %v4271 = vpack.c.bf16 %v4093, %v4087
    %v4272 = vpack.c.bf16 %v4094, %v4088
    %v4273 = vpack.c.bf16 %v4095, %v4089
    %v4274 = vpack.c.bf16 %v4096, %v4090
    %v4275 = vpack.c.bf16 %v4097, %v4091
    %v4276 = vpack.c.bf16 %v4098, %v4092
    %v4277 = vpack.c.bf16 %v4105, %v4099
    %v4278 = vpack.c.bf16 %v4106, %v4100
    %v4279 = vpack.c.bf16 %v4107, %v4101
    %v4280 = vpack.c.bf16 %v4108, %v4102
    %v4281 = vpack.c.bf16 %v4109, %v4103
    %v4282 = vpack.c.bf16 %v4110, %v4104
    %v4283 = vpack.c.bf16 %v4117, %v4111
    %v4284 = vpack.c.bf16 %v4118, %v4112
    %v4285 = vpack.c.bf16 %v4119, %v4113
    %v4286 = vpack.c.bf16 %v4120, %v4114
    %v4287 = vpack.c.bf16 %v4121, %v4115
    %v4288 = vpack.c.bf16 %v4122, %v4116
    %v4289 = vpack.c.bf16 %v4129, %v4123
    %v4290 = vpack.c.bf16 %v4130, %v4124
    %v4291 = vpack.c.bf16 %v4131, %v4125
    %v4292 = vpack.c.bf16 %v4132, %v4126
    %v4293 = vpack.c.bf16 %v4133, %v4127
    %v4294 = vpack.c.bf16 %v4134, %v4128
    %v4295 = vld [vmem:[%s2] sm:$0xff]
    %v4296 = vld [vmem:[%s2 + $0x8] sm:$0xff]
    %v4297 = vld [vmem:[%s2 + $0x10] sm:$0xff]
    %v4298 = vld [vmem:[%s2 + $0x18] sm:$0xff]
    %v4299 = vld [vmem:[%s2 + $0x20] sm:$0xff]
    %v4300 = vld [vmem:[%s2 + $0x28] sm:$0xff]
    %v4301 = vld [vmem:[%s2 + $0x30] sm:$0xff]
    %v4302 = vld [vmem:[%s2 + $0x38] sm:$0xff]
    %v4303 = vld [vmem:[%s2 + $0x40] sm:$0xff]
    %v4304 = vld [vmem:[%s2 + $0x48] sm:$0xff]
    %v4305 = vld [vmem:[%s2 + $0x50] sm:$0xff]
    %v4306 = vld [vmem:[%s2 + $0x58] sm:$0xff]
    %v4307 = vld [vmem:[%s2 + $0x60] sm:$0xff]
    %v4308 = vld [vmem:[%s2 + $0x68] sm:$0xff]
    %v4309 = vld [vmem:[%s2 + $0x70] sm:$0xff]
    %v4310 = vld [vmem:[%s2 + $0x78] sm:$0xff]
    %v4311 = vld [vmem:[%s2 + $0x80] sm:$0xff]
    %v4312 = vld [vmem:[%s2 + $0x88] sm:$0xff]
    %v4313 = vld [vmem:[%s2 + $0x90] sm:$0xff]
    %v4314 = vld [vmem:[%s2 + $0x98] sm:$0xff]
    %v4315 = vld [vmem:[%s2 + $0xa0] sm:$0xff]
    %v4316 = vld [vmem:[%s2 + $0xa8] sm:$0xff]
    %v4317 = vld [vmem:[%s2 + $0xb0] sm:$0xff]
    %v4318 = vld [vmem:[%s2 + $0xb8] sm:$0xff]
    %v4319 = vld [vmem:[%s2 + $0xc0] sm:$0xff]
    %v4320 = vld [vmem:[%s2 + $0xc8] sm:$0xff]
    %v4321 = vld [vmem:[%s2 + $0xd0] sm:$0xff]
    %v4322 = vld [vmem:[%s2 + $0xd8] sm:$0xff]
    %v4323 = vld [vmem:[%s2 + $0xe0] sm:$0xff]
    %v4324 = vld [vmem:[%s2 + $0xe8] sm:$0xff]
    %v4325 = vld [vmem:[%s2 + $0xf0] sm:$0xff]
    %v4326 = vld [vmem:[%s2 + $0xf8] sm:$0xff]
    %v4327 = vld [vmem:[%s2 + $0x100] sm:$0xff]
    %v4328 = vld [vmem:[%s2 + $0x108] sm:$0xff]
    %v4329 = vld [vmem:[%s2 + $0x110] sm:$0xff]
    %v4330 = vld [vmem:[%s2 + $0x118] sm:$0xff]
    %v4331 = vld [vmem:[%s2 + $0x120] sm:$0xff]
    %v4332 = vld [vmem:[%s2 + $0x128] sm:$0xff]
    %v4333 = vld [vmem:[%s2 + $0x130] sm:$0xff]
    %v4334 = vld [vmem:[%s2 + $0x138] sm:$0xff]
    %v4335 = vld [vmem:[%s2 + $0x140] sm:$0xff]
    %v4336 = vld [vmem:[%s2 + $0x148] sm:$0xff]
    %v4337 = vld [vmem:[%s2 + $0x150] sm:$0xff]
    %v4338 = vld [vmem:[%s2 + $0x158] sm:$0xff]
    %v4339 = vld [vmem:[%s2 + $0x160] sm:$0xff]
    %v4340 = vld [vmem:[%s2 + $0x168] sm:$0xff]
    %v4341 = vld [vmem:[%s2 + $0x170] sm:$0xff]
    %v4342 = vld [vmem:[%s2 + $0x178] sm:$0xff]
    %v4343 = vld [vmem:[%s2 + $0x180] sm:$0xff]
    %v4344 = vld [vmem:[%s2 + $0x188] sm:$0xff]
    %v4345 = vld [vmem:[%s2 + $0x190] sm:$0xff]
    %v4346 = vld [vmem:[%s2 + $0x198] sm:$0xff]
    %v4347 = vld [vmem:[%s2 + $0x1a0] sm:$0xff]
    %v4348 = vld [vmem:[%s2 + $0x1a8] sm:$0xff]
    %v4349 = vld [vmem:[%s2 + $0x1b0] sm:$0xff]
    %v4350 = vld [vmem:[%s2 + $0x1b8] sm:$0xff]
    %v4351 = vld [vmem:[%s2 + $0x1c0] sm:$0xff]
    %v4352 = vld [vmem:[%s2 + $0x1c8] sm:$0xff]
    %v4353 = vld [vmem:[%s2 + $0x1d0] sm:$0xff]
    %v4354 = vld [vmem:[%s2 + $0x1d8] sm:$0xff]
    %v4355 = vld [vmem:[%s2 + $0x1e0] sm:$0xff]
    %v4356 = vld [vmem:[%s2 + $0x1e8] sm:$0xff]
    %v4357 = vld [vmem:[%s2 + $0x1f0] sm:$0xff]
    %v4358 = vld [vmem:[%s2 + $0x1f8] sm:$0xff]
    %v4359 = vld [vmem:[%s2 + $0x200] sm:$0xff]
    %v4360 = vld [vmem:[%s2 + $0x208] sm:$0xff]
    %v4361 = vld [vmem:[%s2 + $0x210] sm:$0xff]
    %v4362 = vld [vmem:[%s2 + $0x218] sm:$0xff]
    %v4363 = vld [vmem:[%s2 + $0x220] sm:$0xff]
    %v4364 = vld [vmem:[%s2 + $0x228] sm:$0xff]
    %v4365 = vld [vmem:[%s2 + $0x230] sm:$0xff]
    %v4366 = vld [vmem:[%s2 + $0x238] sm:$0xff]
    %v4367 = vld [vmem:[%s2 + $0x240] sm:$0xff]
    %v4368 = vld [vmem:[%s2 + $0x248] sm:$0xff]
    %v4369 = vld [vmem:[%s2 + $0x250] sm:$0xff]
    %v4370 = vld [vmem:[%s2 + $0x258] sm:$0xff]
    %v4371 = vld [vmem:[%s2 + $0x260] sm:$0xff]
    %v4372 = vld [vmem:[%s2 + $0x268] sm:$0xff]
    %v4373 = vld [vmem:[%s2 + $0x270] sm:$0xff]
    %v4374 = vld [vmem:[%s2 + $0x278] sm:$0xff]
    %v4375 = vld [vmem:[%s2 + $0x280] sm:$0xff]
    %v4376 = vld [vmem:[%s2 + $0x288] sm:$0xff]
    %v4377 = vld [vmem:[%s2 + $0x290] sm:$0xff]
    %v4378 = vld [vmem:[%s2 + $0x298] sm:$0xff]
    %v4379 = vld [vmem:[%s2 + $0x2a0] sm:$0xff]
    %v4380 = vld [vmem:[%s2 + $0x2a8] sm:$0xff]
    %v4381 = vld [vmem:[%s2 + $0x2b0] sm:$0xff]
    %v4382 = vld [vmem:[%s2 + $0x2b8] sm:$0xff]
    %v4383 = vld [vmem:[%s2 + $0x2c0] sm:$0xff]
    %v4384 = vld [vmem:[%s2 + $0x2c8] sm:$0xff]
    %v4385 = vld [vmem:[%s2 + $0x2d0] sm:$0xff]
    %v4386 = vld [vmem:[%s2 + $0x2d8] sm:$0xff]
    %v4387 = vld [vmem:[%s2 + $0x2e0] sm:$0xff]
    %v4388 = vld [vmem:[%s2 + $0x2e8] sm:$0xff]
    %v4389 = vld [vmem:[%s2 + $0x2f0] sm:$0xff]
    %v4390 = vld [vmem:[%s2 + $0x2f8] sm:$0xff]
    %v4487 = vunpack.c.l.b16 %v4295
    %v4488 = vunpack.c.h.b16 %v4295
    %v4489 = vunpack.c.l.b16 %v4296
    %v4490 = vunpack.c.h.b16 %v4296
    %v4491 = vunpack.c.l.b16 %v4297
    %v4492 = vunpack.c.h.b16 %v4297
    %v4493 = vunpack.c.l.b16 %v4298
    %v4494 = vunpack.c.h.b16 %v4298
    %v4495 = vunpack.c.l.b16 %v4299
    %v4496 = vunpack.c.h.b16 %v4299
    %v4497 = vunpack.c.l.b16 %v4300
    %v4498 = vunpack.c.h.b16 %v4300
    %v4499 = vunpack.c.l.b16 %v4301
    %v4500 = vunpack.c.h.b16 %v4301
    %v4501 = vunpack.c.l.b16 %v4302
    %v4502 = vunpack.c.h.b16 %v4302
    %v4503 = vunpack.c.l.b16 %v4303
    %v4504 = vunpack.c.h.b16 %v4303
    %v4505 = vunpack.c.l.b16 %v4304
    %v4506 = vunpack.c.h.b16 %v4304
    %v4507 = vunpack.c.l.b16 %v4305
    %v4508 = vunpack.c.h.b16 %v4305
    %v4509 = vunpack.c.l.b16 %v4306
    %v4510 = vunpack.c.h.b16 %v4306
    %v4511 = vunpack.c.l.b16 %v4307
    %v4512 = vunpack.c.h.b16 %v4307
    %v4513 = vunpack.c.l.b16 %v4308
    %v4514 = vunpack.c.h.b16 %v4308
    %v4515 = vunpack.c.l.b16 %v4309
    %v4516 = vunpack.c.h.b16 %v4309
    %v4517 = vunpack.c.l.b16 %v4310
    %v4518 = vunpack.c.h.b16 %v4310
    %v4519 = vunpack.c.l.b16 %v4311
    %v4520 = vunpack.c.h.b16 %v4311
    %v4521 = vunpack.c.l.b16 %v4312
    %v4522 = vunpack.c.h.b16 %v4312
    %v4523 = vunpack.c.l.b16 %v4313
    %v4524 = vunpack.c.h.b16 %v4313
    %v4525 = vunpack.c.l.b16 %v4314
    %v4526 = vunpack.c.h.b16 %v4314
    %v4527 = vunpack.c.l.b16 %v4315
    %v4528 = vunpack.c.h.b16 %v4315
    %v4529 = vunpack.c.l.b16 %v4316
    %v4530 = vunpack.c.h.b16 %v4316
    %v4531 = vunpack.c.l.b16 %v4317
    %v4532 = vunpack.c.h.b16 %v4317
    %v4533 = vunpack.c.l.b16 %v4318
    %v4534 = vunpack.c.h.b16 %v4318
    %v4535 = vunpack.c.l.b16 %v4319
    %v4536 = vunpack.c.h.b16 %v4319
    %v4537 = vunpack.c.l.b16 %v4320
    %v4538 = vunpack.c.h.b16 %v4320
    %v4539 = vunpack.c.l.b16 %v4321
    %v4540 = vunpack.c.h.b16 %v4321
    %v4541 = vunpack.c.l.b16 %v4322
    %v4542 = vunpack.c.h.b16 %v4322
    %v4543 = vunpack.c.l.b16 %v4323
    %v4544 = vunpack.c.h.b16 %v4323
    %v4545 = vunpack.c.l.b16 %v4324
    %v4546 = vunpack.c.h.b16 %v4324
    %v4547 = vunpack.c.l.b16 %v4325
    %v4548 = vunpack.c.h.b16 %v4325
    %v4549 = vunpack.c.l.b16 %v4326
    %v4550 = vunpack.c.h.b16 %v4326
    %v4551 = vunpack.c.l.b16 %v4327
    %v4552 = vunpack.c.h.b16 %v4327
    %v4553 = vunpack.c.l.b16 %v4328
    %v4554 = vunpack.c.h.b16 %v4328
    %v4555 = vunpack.c.l.b16 %v4329
    %v4556 = vunpack.c.h.b16 %v4329
    %v4557 = vunpack.c.l.b16 %v4330
    %v4558 = vunpack.c.h.b16 %v4330
    %v4559 = vunpack.c.l.b16 %v4331
    %v4560 = vunpack.c.h.b16 %v4331
    %v4561 = vunpack.c.l.b16 %v4332
    %v4562 = vunpack.c.h.b16 %v4332
    %v4563 = vunpack.c.l.b16 %v4333
    %v4564 = vunpack.c.h.b16 %v4333
    %v4565 = vunpack.c.l.b16 %v4334
    %v4566 = vunpack.c.h.b16 %v4334
    %v4567 = vunpack.c.l.b16 %v4335
    %v4568 = vunpack.c.h.b16 %v4335
    %v4569 = vunpack.c.l.b16 %v4336
    %v4570 = vunpack.c.h.b16 %v4336
    %v4571 = vunpack.c.l.b16 %v4337
    %v4572 = vunpack.c.h.b16 %v4337
    %v4573 = vunpack.c.l.b16 %v4338
    %v4574 = vunpack.c.h.b16 %v4338
    %v4575 = vunpack.c.l.b16 %v4339
    %v4576 = vunpack.c.h.b16 %v4339
    %v4577 = vunpack.c.l.b16 %v4340
    %v4578 = vunpack.c.h.b16 %v4340
    %v4579 = vunpack.c.l.b16 %v4341
    %v4580 = vunpack.c.h.b16 %v4341
    %v4581 = vunpack.c.l.b16 %v4342
    %v4582 = vunpack.c.h.b16 %v4342
    %v4583 = vunpack.c.l.b16 %v4343
    %v4584 = vunpack.c.h.b16 %v4343
    %v4585 = vunpack.c.l.b16 %v4344
    %v4586 = vunpack.c.h.b16 %v4344
    %v4587 = vunpack.c.l.b16 %v4345
    %v4588 = vunpack.c.h.b16 %v4345
    %v4589 = vunpack.c.l.b16 %v4346
    %v4590 = vunpack.c.h.b16 %v4346
    %v4591 = vunpack.c.l.b16 %v4347
    %v4592 = vunpack.c.h.b16 %v4347
    %v4593 = vunpack.c.l.b16 %v4348
    %v4594 = vunpack.c.h.b16 %v4348
    %v4595 = vunpack.c.l.b16 %v4349
    %v4596 = vunpack.c.h.b16 %v4349
    %v4597 = vunpack.c.l.b16 %v4350
    %v4598 = vunpack.c.h.b16 %v4350
    %v4599 = vunpack.c.l.b16 %v4351
    %v4600 = vunpack.c.h.b16 %v4351
    %v4601 = vunpack.c.l.b16 %v4352
    %v4602 = vunpack.c.h.b16 %v4352
    %v4603 = vunpack.c.l.b16 %v4353
    %v4604 = vunpack.c.h.b16 %v4353
    %v4605 = vunpack.c.l.b16 %v4354
    %v4606 = vunpack.c.h.b16 %v4354
    %v4607 = vunpack.c.l.b16 %v4355
    %v4608 = vunpack.c.h.b16 %v4355
    %v4609 = vunpack.c.l.b16 %v4356
    %v4610 = vunpack.c.h.b16 %v4356
    %v4611 = vunpack.c.l.b16 %v4357
    %v4612 = vunpack.c.h.b16 %v4357
    %v4613 = vunpack.c.l.b16 %v4358
    %v4614 = vunpack.c.h.b16 %v4358
    %v4615 = vunpack.c.l.b16 %v4359
    %v4616 = vunpack.c.h.b16 %v4359
    %v4617 = vunpack.c.l.b16 %v4360
    %v4618 = vunpack.c.h.b16 %v4360
    %v4619 = vunpack.c.l.b16 %v4361
    %v4620 = vunpack.c.h.b16 %v4361
    %v4621 = vunpack.c.l.b16 %v4362
    %v4622 = vunpack.c.h.b16 %v4362
    %v4623 = vunpack.c.l.b16 %v4363
    %v4624 = vunpack.c.h.b16 %v4363
    %v4625 = vunpack.c.l.b16 %v4364
    %v4626 = vunpack.c.h.b16 %v4364
    %v4627 = vunpack.c.l.b16 %v4365
    %v4628 = vunpack.c.h.b16 %v4365
    %v4629 = vunpack.c.l.b16 %v4366
    %v4630 = vunpack.c.h.b16 %v4366
    %v4631 = vunpack.c.l.b16 %v4367
    %v4632 = vunpack.c.h.b16 %v4367
    %v4633 = vunpack.c.l.b16 %v4368
    %v4634 = vunpack.c.h.b16 %v4368
    %v4635 = vunpack.c.l.b16 %v4369
    %v4636 = vunpack.c.h.b16 %v4369
    %v4637 = vunpack.c.l.b16 %v4370
    %v4638 = vunpack.c.h.b16 %v4370
    %v4639 = vunpack.c.l.b16 %v4371
    %v4640 = vunpack.c.h.b16 %v4371
    %v4641 = vunpack.c.l.b16 %v4372
    %v4642 = vunpack.c.h.b16 %v4372
    %v4643 = vunpack.c.l.b16 %v4373
    %v4644 = vunpack.c.h.b16 %v4373
    %v4645 = vunpack.c.l.b16 %v4374
    %v4646 = vunpack.c.h.b16 %v4374
    %v4647 = vunpack.c.l.b16 %v4375
    %v4648 = vunpack.c.h.b16 %v4375
    %v4649 = vunpack.c.l.b16 %v4376
    %v4650 = vunpack.c.h.b16 %v4376
    %v4651 = vunpack.c.l.b16 %v4377
    %v4652 = vunpack.c.h.b16 %v4377
    %v4653 = vunpack.c.l.b16 %v4378
    %v4654 = vunpack.c.h.b16 %v4378
    %v4655 = vunpack.c.l.b16 %v4379
    %v4656 = vunpack.c.h.b16 %v4379
    %v4657 = vunpack.c.l.b16 %v4380
    %v4658 = vunpack.c.h.b16 %v4380
    %v4659 = vunpack.c.l.b16 %v4381
    %v4660 = vunpack.c.h.b16 %v4381
    %v4661 = vunpack.c.l.b16 %v4382
    %v4662 = vunpack.c.h.b16 %v4382
    %v4663 = vunpack.c.l.b16 %v4383
    %v4664 = vunpack.c.h.b16 %v4383
    %v4665 = vunpack.c.l.b16 %v4384
    %v4666 = vunpack.c.h.b16 %v4384
    %v4667 = vunpack.c.l.b16 %v4385
    %v4668 = vunpack.c.h.b16 %v4385
    %v4669 = vunpack.c.l.b16 %v4386
    %v4670 = vunpack.c.h.b16 %v4386
    %v4671 = vunpack.c.l.b16 %v4387
    %v4672 = vunpack.c.h.b16 %v4387
    %v4673 = vunpack.c.l.b16 %v4388
    %v4674 = vunpack.c.h.b16 %v4388
    %v4675 = vunpack.c.l.b16 %v4389
    %v4676 = vunpack.c.h.b16 %v4389
    %v4677 = vunpack.c.l.b16 %v4390
    %v4678 = vunpack.c.h.b16 %v4390
    %v4679 = vpack.c.b16 %v4489, %v4487
    %v4680 = vpack.c.b16 %v4490, %v4488
    %v4681 = vpack.c.b16 %v4493, %v4491
    %v4682 = vpack.c.b16 %v4494, %v4492
    %v4683 = vpack.c.b16 %v4497, %v4495
    %v4684 = vpack.c.b16 %v4498, %v4496
    %v4685 = vpack.c.b16 %v4501, %v4499
    %v4686 = vpack.c.b16 %v4502, %v4500
    %v4687 = vpack.c.b16 %v4505, %v4503
    %v4688 = vpack.c.b16 %v4506, %v4504
    %v4689 = vpack.c.b16 %v4509, %v4507
    %v4690 = vpack.c.b16 %v4510, %v4508
    %v4691 = vpack.c.b16 %v4513, %v4511
    %v4692 = vpack.c.b16 %v4514, %v4512
    %v4693 = vpack.c.b16 %v4517, %v4515
    %v4694 = vpack.c.b16 %v4518, %v4516
    %v4695 = vpack.c.b16 %v4521, %v4519
    %v4696 = vpack.c.b16 %v4522, %v4520
    %v4697 = vpack.c.b16 %v4525, %v4523
    %v4698 = vpack.c.b16 %v4526, %v4524
    %v4699 = vpack.c.b16 %v4529, %v4527
    %v4700 = vpack.c.b16 %v4530, %v4528
    %v4701 = vpack.c.b16 %v4533, %v4531
    %v4702 = vpack.c.b16 %v4534, %v4532
    %v4703 = vpack.c.b16 %v4537, %v4535
    %v4704 = vpack.c.b16 %v4538, %v4536
    %v4705 = vpack.c.b16 %v4541, %v4539
    %v4706 = vpack.c.b16 %v4542, %v4540
    %v4707 = vpack.c.b16 %v4545, %v4543
    %v4708 = vpack.c.b16 %v4546, %v4544
    %v4709 = vpack.c.b16 %v4549, %v4547
    %v4710 = vpack.c.b16 %v4550, %v4548
    %v4711 = vpack.c.b16 %v4553, %v4551
    %v4712 = vpack.c.b16 %v4554, %v4552
    %v4713 = vpack.c.b16 %v4557, %v4555
    %v4714 = vpack.c.b16 %v4558, %v4556
    %v4715 = vpack.c.b16 %v4561, %v4559
    %v4716 = vpack.c.b16 %v4562, %v4560
    %v4717 = vpack.c.b16 %v4565, %v4563
    %v4718 = vpack.c.b16 %v4566, %v4564
    %v4719 = vpack.c.b16 %v4569, %v4567
    %v4720 = vpack.c.b16 %v4570, %v4568
    %v4721 = vpack.c.b16 %v4573, %v4571
    %v4722 = vpack.c.b16 %v4574, %v4572
    %v4723 = vpack.c.b16 %v4577, %v4575
    %v4724 = vpack.c.b16 %v4578, %v4576
    %v4725 = vpack.c.b16 %v4581, %v4579
    %v4726 = vpack.c.b16 %v4582, %v4580
    %v4727 = vpack.c.b16 %v4585, %v4583
    %v4728 = vpack.c.b16 %v4586, %v4584
    %v4729 = vpack.c.b16 %v4589, %v4587
    %v4730 = vpack.c.b16 %v4590, %v4588
    %v4731 = vpack.c.b16 %v4593, %v4591
    %v4732 = vpack.c.b16 %v4594, %v4592
    %v4733 = vpack.c.b16 %v4597, %v4595
    %v4734 = vpack.c.b16 %v4598, %v4596
    %v4735 = vpack.c.b16 %v4601, %v4599
    %v4736 = vpack.c.b16 %v4602, %v4600
    %v4737 = vpack.c.b16 %v4605, %v4603
    %v4738 = vpack.c.b16 %v4606, %v4604
    %v4739 = vpack.c.b16 %v4609, %v4607
    %v4740 = vpack.c.b16 %v4610, %v4608
    %v4741 = vpack.c.b16 %v4613, %v4611
    %v4742 = vpack.c.b16 %v4614, %v4612
    %v4743 = vpack.c.b16 %v4617, %v4615
    %v4744 = vpack.c.b16 %v4618, %v4616
    %v4745 = vpack.c.b16 %v4621, %v4619
    %v4746 = vpack.c.b16 %v4622, %v4620
    %v4747 = vpack.c.b16 %v4625, %v4623
    %v4748 = vpack.c.b16 %v4626, %v4624
    %v4749 = vpack.c.b16 %v4629, %v4627
    %v4750 = vpack.c.b16 %v4630, %v4628
    %v4751 = vpack.c.b16 %v4633, %v4631
    %v4752 = vpack.c.b16 %v4634, %v4632
    %v4753 = vpack.c.b16 %v4637, %v4635
    %v4754 = vpack.c.b16 %v4638, %v4636
    %v4755 = vpack.c.b16 %v4641, %v4639
    %v4756 = vpack.c.b16 %v4642, %v4640
    %v4757 = vpack.c.b16 %v4645, %v4643
    %v4758 = vpack.c.b16 %v4646, %v4644
    %v4759 = vpack.c.b16 %v4649, %v4647
    %v4760 = vpack.c.b16 %v4650, %v4648
    %v4761 = vpack.c.b16 %v4653, %v4651
    %v4762 = vpack.c.b16 %v4654, %v4652
    %v4763 = vpack.c.b16 %v4657, %v4655
    %v4764 = vpack.c.b16 %v4658, %v4656
    %v4765 = vpack.c.b16 %v4661, %v4659
    %v4766 = vpack.c.b16 %v4662, %v4660
    %v4767 = vpack.c.b16 %v4665, %v4663
    %v4768 = vpack.c.b16 %v4666, %v4664
    %v4769 = vpack.c.b16 %v4669, %v4667
    %v4770 = vpack.c.b16 %v4670, %v4668
    %v4771 = vpack.c.b16 %v4673, %v4671
    %v4772 = vpack.c.b16 %v4674, %v4672
    %v4773 = vpack.c.b16 %v4677, %v4675
    %v4774 = vpack.c.b16 %v4678, %v4676
    %4871 = vmatprep.subr.bf16.mxu0 %v4694
    %4872 = vmatpush1.bf16.msra.mxu0 %v4693
    %4873 = vmatprep.subr.bf16.mxu0 %v4692
    %4874 = vmatpush1.bf16.msra.mxu0 %v4691
    %4875 = vmatprep.subr.bf16.mxu0 %v4690
    %4876 = vmatpush1.bf16.msra.mxu0 %v4689
    %4877 = vmatprep.subr.bf16.mxu0 %v4688
    %4878 = vmatpush1.bf16.msra.mxu0 %v4687
    %4879 = vmatprep.subr.bf16.mxu0 %v4686
    %4880 = vmatpush1.bf16.msra.mxu0 %v4685
    %4881 = vmatprep.subr.bf16.mxu0 %v4684
    %4882 = vmatpush1.bf16.msra.mxu0 %v4683
    %4883 = vmatprep.subr.bf16.mxu0 %v4682
    %4884 = vmatpush1.bf16.msra.mxu0 %v4681
    %4885 = vmatprep.subr.bf16.mxu0 %v4680
    %4886 = vmatpush1.bf16.msra.mxu0 %v4679
    %4887 = vmatprep.subr.bf16.mxu0 %v4710
    %4888 = vmatpush2.bf16.msra.mxu0 %v4709
    %4889 = vmatprep.subr.bf16.mxu0 %v4708
    %4890 = vmatpush2.bf16.msra.mxu0 %v4707
    %4891 = vmatprep.subr.bf16.mxu0 %v4706
    %4892 = vmatpush2.bf16.msra.mxu0 %v4705
    %4893 = vmatprep.subr.bf16.mxu0 %v4704
    %4894 = vmatpush2.bf16.msra.mxu0 %v4703
    %4895 = vmatprep.subr.bf16.mxu0 %v4702
    %4896 = vmatpush2.bf16.msra.mxu0 %v4701
    %4897 = vmatprep.subr.bf16.mxu0 %v4700
    %4898 = vmatpush2.bf16.msra.mxu0 %v4699
    %4899 = vmatprep.subr.bf16.mxu0 %v4698
    %4900 = vmatpush2.bf16.msra.mxu0 %v4697
    %4901 = vmatprep.subr.bf16.mxu0 %v4696
    %4902 = vmatpush2.bf16.msra.mxu0 %v4695
    %4903 = vmatprep.mubr.bf16.mxu0 %v4200
    %4904 = vmatmul.mubr.bf16.gmra.mxu0 %v4199
    %v4905 = vpop.f32.mrf.mxu0
    %v4906 = vadd.f32 0.0, %v4905
    %v4907 = vpop.f32.mrf.mxu0
    %v4908 = vadd.f32 0.0, %v4907
    %v4909 = vpop.f32.mrf.mxu0
    %v4910 = vadd.f32 0.0, %v4909
    %v4911 = vpop.f32.mrf.mxu0
    %v4912 = vadd.f32 0.0, %v4911
    %4913 = vmatprep.mubr.bf16.mxu0 %v4206
    %4914 = vmatmul.mubr.bf16.gmra.mxu0 %v4205
    %v4915 = vpop.f32.mrf.mxu0
    %v4916 = vadd.f32 0.0, %v4915
    %v4917 = vpop.f32.mrf.mxu0
    %v4918 = vadd.f32 0.0, %v4917
    %v4919 = vpop.f32.mrf.mxu0
    %v4920 = vadd.f32 0.0, %v4919
    %v4921 = vpop.f32.mrf.mxu0
    %v4922 = vadd.f32 0.0, %v4921
    %4923 = vmatprep.mubr.bf16.mxu0 %v4212
    %4924 = vmatmul.mubr.bf16.gmra.mxu0 %v4211
    %v4925 = vpop.f32.mrf.mxu0
    %v4926 = vadd.f32 0.0, %v4925
    %v4927 = vpop.f32.mrf.mxu0
    %v4928 = vadd.f32 0.0, %v4927
    %v4929 = vpop.f32.mrf.mxu0
    %v4930 = vadd.f32 0.0, %v4929
    %v4931 = vpop.f32.mrf.mxu0
    %v4932 = vadd.f32 0.0, %v4931
    %4933 = vmatprep.mubr.bf16.mxu0 %v4218
    %4934 = vmatmul.mubr.bf16.gmra.mxu0 %v4217
    %v4935 = vpop.f32.mrf.mxu0
    %v4936 = vadd.f32 0.0, %v4935
    %v4937 = vpop.f32.mrf.mxu0
    %v4938 = vadd.f32 0.0, %v4937
    %v4939 = vpop.f32.mrf.mxu0
    %v4940 = vadd.f32 0.0, %v4939
    %v4941 = vpop.f32.mrf.mxu0
    %v4942 = vadd.f32 0.0, %v4941
    %4943 = vmatprep.mubr.bf16.mxu0 %v4224
    %4944 = vmatmul.mubr.bf16.gmra.mxu0 %v4223
    %v4945 = vpop.f32.mrf.mxu0
    %v4946 = vadd.f32 0.0, %v4945
    %v4947 = vpop.f32.mrf.mxu0
    %v4948 = vadd.f32 0.0, %v4947
    %v4949 = vpop.f32.mrf.mxu0
    %v4950 = vadd.f32 0.0, %v4949
    %v4951 = vpop.f32.mrf.mxu0
    %v4952 = vadd.f32 0.0, %v4951
    %4953 = vmatprep.mubr.bf16.mxu0 %v4230
    %4954 = vmatmul.mubr.bf16.gmra.mxu0 %v4229
    %v4955 = vpop.f32.mrf.mxu0
    %v4956 = vadd.f32 0.0, %v4955
    %v4957 = vpop.f32.mrf.mxu0
    %v4958 = vadd.f32 0.0, %v4957
    %v4959 = vpop.f32.mrf.mxu0
    %v4960 = vadd.f32 0.0, %v4959
    %v4961 = vpop.f32.mrf.mxu0
    %v4962 = vadd.f32 0.0, %v4961
    %4963 = vmatprep.mubr.bf16.mxu0 %v4236
    %4964 = vmatmul.mubr.bf16.gmra.mxu0 %v4235
    %v4965 = vpop.f32.mrf.mxu0
    %v4966 = vadd.f32 0.0, %v4965
    %v4967 = vpop.f32.mrf.mxu0
    %v4968 = vadd.f32 0.0, %v4967
    %v4969 = vpop.f32.mrf.mxu0
    %v4970 = vadd.f32 0.0, %v4969
    %v4971 = vpop.f32.mrf.mxu0
    %v4972 = vadd.f32 0.0, %v4971
    %4973 = vmatprep.mubr.bf16.mxu0 %v4242
    %4974 = vmatmul.mubr.bf16.gmra.mxu0 %v4241
    %v4975 = vpop.f32.mrf.mxu0
    %v4976 = vadd.f32 0.0, %v4975
    %v4977 = vpop.f32.mrf.mxu0
    %v4978 = vadd.f32 0.0, %v4977
    %v4979 = vpop.f32.mrf.mxu0
    %v4980 = vadd.f32 0.0, %v4979
    %v4981 = vpop.f32.mrf.mxu0
    %v4982 = vadd.f32 0.0, %v4981
    %4983 = vmatprep.mubr.bf16.mxu0 %v4248
    %4984 = vmatmul.mubr.bf16.gmra.mxu0 %v4247
    %v4985 = vpop.f32.mrf.mxu0
    %v4986 = vadd.f32 0.0, %v4985
    %v4987 = vpop.f32.mrf.mxu0
    %v4988 = vadd.f32 0.0, %v4987
    %v4989 = vpop.f32.mrf.mxu0
    %v4990 = vadd.f32 0.0, %v4989
    %v4991 = vpop.f32.mrf.mxu0
    %v4992 = vadd.f32 0.0, %v4991
    %4993 = vmatprep.mubr.bf16.mxu0 %v4254
    %4994 = vmatmul.mubr.bf16.gmra.mxu0 %v4253
    %v4995 = vpop.f32.mrf.mxu0
    %v4996 = vadd.f32 0.0, %v4995
    %v4997 = vpop.f32.mrf.mxu0
    %v4998 = vadd.f32 0.0, %v4997
    %v4999 = vpop.f32.mrf.mxu0
    %v5000 = vadd.f32 0.0, %v4999
    %v5001 = vpop.f32.mrf.mxu0
    %v5002 = vadd.f32 0.0, %v5001
    %5003 = vmatprep.mubr.bf16.mxu0 %v4260
    %5004 = vmatmul.mubr.bf16.gmra.mxu0 %v4259
    %v5005 = vpop.f32.mrf.mxu0
    %v5006 = vadd.f32 0.0, %v5005
    %v5007 = vpop.f32.mrf.mxu0
    %v5008 = vadd.f32 0.0, %v5007
    %v5009 = vpop.f32.mrf.mxu0
    %v5010 = vadd.f32 0.0, %v5009
    %v5011 = vpop.f32.mrf.mxu0
    %v5012 = vadd.f32 0.0, %v5011
    %5013 = vmatprep.mubr.bf16.mxu0 %v4266
    %5014 = vmatmul.mubr.bf16.gmra.mxu0 %v4265
    %v5015 = vpop.f32.mrf.mxu0
    %v5016 = vadd.f32 0.0, %v5015
    %v5017 = vpop.f32.mrf.mxu0
    %v5018 = vadd.f32 0.0, %v5017
    %v5019 = vpop.f32.mrf.mxu0
    %v5020 = vadd.f32 0.0, %v5019
    %v5021 = vpop.f32.mrf.mxu0
    %v5022 = vadd.f32 0.0, %v5021
    %5023 = vmatprep.mubr.bf16.mxu0 %v4272
    %5024 = vmatmul.mubr.bf16.gmra.mxu0 %v4271
    %v5025 = vpop.f32.mrf.mxu0
    %v5026 = vadd.f32 0.0, %v5025
    %v5027 = vpop.f32.mrf.mxu0
    %v5028 = vadd.f32 0.0, %v5027
    %v5029 = vpop.f32.mrf.mxu0
    %v5030 = vadd.f32 0.0, %v5029
    %v5031 = vpop.f32.mrf.mxu0
    %v5032 = vadd.f32 0.0, %v5031
    %5033 = vmatprep.mubr.bf16.mxu0 %v4278
    %5034 = vmatmul.mubr.bf16.gmra.mxu0 %v4277
    %v5035 = vpop.f32.mrf.mxu0
    %v5036 = vadd.f32 0.0, %v5035
    %v5037 = vpop.f32.mrf.mxu0
    %v5038 = vadd.f32 0.0, %v5037
    %v5039 = vpop.f32.mrf.mxu0
    %v5040 = vadd.f32 0.0, %v5039
    %v5041 = vpop.f32.mrf.mxu0
    %v5042 = vadd.f32 0.0, %v5041
    %5043 = vmatprep.mubr.bf16.mxu0 %v4284
    %5044 = vmatmul.mubr.bf16.gmra.mxu0 %v4283
    %v5045 = vpop.f32.mrf.mxu0
    %v5046 = vadd.f32 0.0, %v5045
    %v5047 = vpop.f32.mrf.mxu0
    %v5048 = vadd.f32 0.0, %v5047
    %v5049 = vpop.f32.mrf.mxu0
    %v5050 = vadd.f32 0.0, %v5049
    %v5051 = vpop.f32.mrf.mxu0
    %v5052 = vadd.f32 0.0, %v5051
    %5053 = vmatprep.mubr.bf16.mxu0 %v4290
    %5054 = vmatmul.mubr.bf16.gmra.mxu0 %v4289
    %v5055 = vpop.f32.mrf.mxu0
    %v5056 = vadd.f32 0.0, %v5055
    %v5057 = vpop.f32.mrf.mxu0
    %v5058 = vadd.f32 0.0, %v5057
    %v5059 = vpop.f32.mrf.mxu0
    %v5060 = vadd.f32 0.0, %v5059
    %v5061 = vpop.f32.mrf.mxu0
    %v5062 = vadd.f32 0.0, %v5061
    %5063 = vdwg.mxu0
    %5064 = vmatprep.subr.bf16.mxu0 %v4726
    %5065 = vmatpush1.bf16.msra.mxu0 %v4725
    %5066 = vmatprep.subr.bf16.mxu0 %v4724
    %5067 = vmatpush1.bf16.msra.mxu0 %v4723
    %5068 = vmatprep.subr.bf16.mxu0 %v4722
    %5069 = vmatpush1.bf16.msra.mxu0 %v4721
    %5070 = vmatprep.subr.bf16.mxu0 %v4720
    %5071 = vmatpush1.bf16.msra.mxu0 %v4719
    %5072 = vmatprep.subr.bf16.mxu0 %v4718
    %5073 = vmatpush1.bf16.msra.mxu0 %v4717
    %5074 = vmatprep.subr.bf16.mxu0 %v4716
    %5075 = vmatpush1.bf16.msra.mxu0 %v4715
    %5076 = vmatprep.subr.bf16.mxu0 %v4714
    %5077 = vmatpush1.bf16.msra.mxu0 %v4713
    %5078 = vmatprep.subr.bf16.mxu0 %v4712
    %5079 = vmatpush1.bf16.msra.mxu0 %v4711
    %5080 = vmatprep.subr.bf16.mxu0 %v4742
    %5081 = vmatpush2.bf16.msra.mxu0 %v4741
    %5082 = vmatprep.subr.bf16.mxu0 %v4740
    %5083 = vmatpush2.bf16.msra.mxu0 %v4739
    %5084 = vmatprep.subr.bf16.mxu0 %v4738
    %5085 = vmatpush2.bf16.msra.mxu0 %v4737
    %5086 = vmatprep.subr.bf16.mxu0 %v4736
    %5087 = vmatpush2.bf16.msra.mxu0 %v4735
    %5088 = vmatprep.subr.bf16.mxu0 %v4734
    %5089 = vmatpush2.bf16.msra.mxu0 %v4733
    %5090 = vmatprep.subr.bf16.mxu0 %v4732
    %5091 = vmatpush2.bf16.msra.mxu0 %v4731
    %5092 = vmatprep.subr.bf16.mxu0 %v4730
    %5093 = vmatpush2.bf16.msra.mxu0 %v4729
    %5094 = vmatprep.subr.bf16.mxu0 %v4728
    %5095 = vmatpush2.bf16.msra.mxu0 %v4727
    %5096 = vmatprep.mubr.bf16.mxu0 %v4202
    %5097 = vmatmul.mubr.bf16.gmra.mxu0 %v4201
    %v5098 = vpop.f32.mrf.mxu0
    %v5099 = vadd.f32 %v4906, %v5098
    %v5100 = vpop.f32.mrf.mxu0
    %v5101 = vadd.f32 %v4908, %v5100
    %v5102 = vpop.f32.mrf.mxu0
    %v5103 = vadd.f32 %v4910, %v5102
    %v5104 = vpop.f32.mrf.mxu0
    %v5105 = vadd.f32 %v4912, %v5104
    %5106 = vmatprep.mubr.bf16.mxu0 %v4208
    %5107 = vmatmul.mubr.bf16.gmra.mxu0 %v4207
    %v5108 = vpop.f32.mrf.mxu0
    %v5109 = vadd.f32 %v4916, %v5108
    %v5110 = vpop.f32.mrf.mxu0
    %v5111 = vadd.f32 %v4918, %v5110
    %v5112 = vpop.f32.mrf.mxu0
    %v5113 = vadd.f32 %v4920, %v5112
    %v5114 = vpop.f32.mrf.mxu0
    %v5115 = vadd.f32 %v4922, %v5114
    %5116 = vmatprep.mubr.bf16.mxu0 %v4214
    %5117 = vmatmul.mubr.bf16.gmra.mxu0 %v4213
    %v5118 = vpop.f32.mrf.mxu0
    %v5119 = vadd.f32 %v4926, %v5118
    %v5120 = vpop.f32.mrf.mxu0
    %v5121 = vadd.f32 %v4928, %v5120
    %v5122 = vpop.f32.mrf.mxu0
    %v5123 = vadd.f32 %v4930, %v5122
    %v5124 = vpop.f32.mrf.mxu0
    %v5125 = vadd.f32 %v4932, %v5124
    %5126 = vmatprep.mubr.bf16.mxu0 %v4220
    %5127 = vmatmul.mubr.bf16.gmra.mxu0 %v4219
    %v5128 = vpop.f32.mrf.mxu0
    %v5129 = vadd.f32 %v4936, %v5128
    %v5130 = vpop.f32.mrf.mxu0
    %v5131 = vadd.f32 %v4938, %v5130
    %v5132 = vpop.f32.mrf.mxu0
    %v5133 = vadd.f32 %v4940, %v5132
    %v5134 = vpop.f32.mrf.mxu0
    %v5135 = vadd.f32 %v4942, %v5134
    %5136 = vmatprep.mubr.bf16.mxu0 %v4226
    %5137 = vmatmul.mubr.bf16.gmra.mxu0 %v4225
    %v5138 = vpop.f32.mrf.mxu0
    %v5139 = vadd.f32 %v4946, %v5138
    %v5140 = vpop.f32.mrf.mxu0
    %v5141 = vadd.f32 %v4948, %v5140
    %v5142 = vpop.f32.mrf.mxu0
    %v5143 = vadd.f32 %v4950, %v5142
    %v5144 = vpop.f32.mrf.mxu0
    %v5145 = vadd.f32 %v4952, %v5144
    %5146 = vmatprep.mubr.bf16.mxu0 %v4232
    %5147 = vmatmul.mubr.bf16.gmra.mxu0 %v4231
    %v5148 = vpop.f32.mrf.mxu0
    %v5149 = vadd.f32 %v4956, %v5148
    %v5150 = vpop.f32.mrf.mxu0
    %v5151 = vadd.f32 %v4958, %v5150
    %v5152 = vpop.f32.mrf.mxu0
    %v5153 = vadd.f32 %v4960, %v5152
    %v5154 = vpop.f32.mrf.mxu0
    %v5155 = vadd.f32 %v4962, %v5154
    %5156 = vmatprep.mubr.bf16.mxu0 %v4238
    %5157 = vmatmul.mubr.bf16.gmra.mxu0 %v4237
    %v5158 = vpop.f32.mrf.mxu0
    %v5159 = vadd.f32 %v4966, %v5158
    %v5160 = vpop.f32.mrf.mxu0
    %v5161 = vadd.f32 %v4968, %v5160
    %v5162 = vpop.f32.mrf.mxu0
    %v5163 = vadd.f32 %v4970, %v5162
    %v5164 = vpop.f32.mrf.mxu0
    %v5165 = vadd.f32 %v4972, %v5164
    %5166 = vmatprep.mubr.bf16.mxu0 %v4244
    %5167 = vmatmul.mubr.bf16.gmra.mxu0 %v4243
    %v5168 = vpop.f32.mrf.mxu0
    %v5169 = vadd.f32 %v4976, %v5168
    %v5170 = vpop.f32.mrf.mxu0
    %v5171 = vadd.f32 %v4978, %v5170
    %v5172 = vpop.f32.mrf.mxu0
    %v5173 = vadd.f32 %v4980, %v5172
    %v5174 = vpop.f32.mrf.mxu0
    %v5175 = vadd.f32 %v4982, %v5174
    %5176 = vmatprep.mubr.bf16.mxu0 %v4250
    %5177 = vmatmul.mubr.bf16.gmra.mxu0 %v4249
    %v5178 = vpop.f32.mrf.mxu0
    %v5179 = vadd.f32 %v4986, %v5178
    %v5180 = vpop.f32.mrf.mxu0
    %v5181 = vadd.f32 %v4988, %v5180
    %v5182 = vpop.f32.mrf.mxu0
    %v5183 = vadd.f32 %v4990, %v5182
    %v5184 = vpop.f32.mrf.mxu0
    %v5185 = vadd.f32 %v4992, %v5184
    %5186 = vmatprep.mubr.bf16.mxu0 %v4256
    %5187 = vmatmul.mubr.bf16.gmra.mxu0 %v4255
    %v5188 = vpop.f32.mrf.mxu0
    %v5189 = vadd.f32 %v4996, %v5188
    %v5190 = vpop.f32.mrf.mxu0
    %v5191 = vadd.f32 %v4998, %v5190
    %v5192 = vpop.f32.mrf.mxu0
    %v5193 = vadd.f32 %v5000, %v5192
    %v5194 = vpop.f32.mrf.mxu0
    %v5195 = vadd.f32 %v5002, %v5194
    %5196 = vmatprep.mubr.bf16.mxu0 %v4262
    %5197 = vmatmul.mubr.bf16.gmra.mxu0 %v4261
    %v5198 = vpop.f32.mrf.mxu0
    %v5199 = vadd.f32 %v5006, %v5198
    %v5200 = vpop.f32.mrf.mxu0
    %v5201 = vadd.f32 %v5008, %v5200
    %v5202 = vpop.f32.mrf.mxu0
    %v5203 = vadd.f32 %v5010, %v5202
    %v5204 = vpop.f32.mrf.mxu0
    %v5205 = vadd.f32 %v5012, %v5204
    %5206 = vmatprep.mubr.bf16.mxu0 %v4268
    %5207 = vmatmul.mubr.bf16.gmra.mxu0 %v4267
    %v5208 = vpop.f32.mrf.mxu0
    %v5209 = vadd.f32 %v5016, %v5208
    %v5210 = vpop.f32.mrf.mxu0
    %v5211 = vadd.f32 %v5018, %v5210
    %v5212 = vpop.f32.mrf.mxu0
    %v5213 = vadd.f32 %v5020, %v5212
    %v5214 = vpop.f32.mrf.mxu0
    %v5215 = vadd.f32 %v5022, %v5214
    %5216 = vmatprep.mubr.bf16.mxu0 %v4274
    %5217 = vmatmul.mubr.bf16.gmra.mxu0 %v4273
    %v5218 = vpop.f32.mrf.mxu0
    %v5219 = vadd.f32 %v5026, %v5218
    %v5220 = vpop.f32.mrf.mxu0
    %v5221 = vadd.f32 %v5028, %v5220
    %v5222 = vpop.f32.mrf.mxu0
    %v5223 = vadd.f32 %v5030, %v5222
    %v5224 = vpop.f32.mrf.mxu0
    %v5225 = vadd.f32 %v5032, %v5224
    %5226 = vmatprep.mubr.bf16.mxu0 %v4280
    %5227 = vmatmul.mubr.bf16.gmra.mxu0 %v4279
    %v5228 = vpop.f32.mrf.mxu0
    %v5229 = vadd.f32 %v5036, %v5228
    %v5230 = vpop.f32.mrf.mxu0
    %v5231 = vadd.f32 %v5038, %v5230
    %v5232 = vpop.f32.mrf.mxu0
    %v5233 = vadd.f32 %v5040, %v5232
    %v5234 = vpop.f32.mrf.mxu0
    %v5235 = vadd.f32 %v5042, %v5234
    %5236 = vmatprep.mubr.bf16.mxu0 %v4286
    %5237 = vmatmul.mubr.bf16.gmra.mxu0 %v4285
    %v5238 = vpop.f32.mrf.mxu0
    %v5239 = vadd.f32 %v5046, %v5238
    %v5240 = vpop.f32.mrf.mxu0
    %v5241 = vadd.f32 %v5048, %v5240
    %v5242 = vpop.f32.mrf.mxu0
    %v5243 = vadd.f32 %v5050, %v5242
    %v5244 = vpop.f32.mrf.mxu0
    %v5245 = vadd.f32 %v5052, %v5244
    %5246 = vmatprep.mubr.bf16.mxu0 %v4292
    %5247 = vmatmul.mubr.bf16.gmra.mxu0 %v4291
    %v5248 = vpop.f32.mrf.mxu0
    %v5249 = vadd.f32 %v5056, %v5248
    %v5250 = vpop.f32.mrf.mxu0
    %v5251 = vadd.f32 %v5058, %v5250
    %v5252 = vpop.f32.mrf.mxu0
    %v5253 = vadd.f32 %v5060, %v5252
    %v5254 = vpop.f32.mrf.mxu0
    %v5255 = vadd.f32 %v5062, %v5254
    %5256 = vdwg.mxu0
    %5257 = vmatprep.subr.bf16.mxu0 %v4758
    %5258 = vmatpush1.bf16.msra.mxu0 %v4757
    %5259 = vmatprep.subr.bf16.mxu0 %v4756
    %5260 = vmatpush1.bf16.msra.mxu0 %v4755
    %5261 = vmatprep.subr.bf16.mxu0 %v4754
    %5262 = vmatpush1.bf16.msra.mxu0 %v4753
    %5263 = vmatprep.subr.bf16.mxu0 %v4752
    %5264 = vmatpush1.bf16.msra.mxu0 %v4751
    %5265 = vmatprep.subr.bf16.mxu0 %v4750
    %5266 = vmatpush1.bf16.msra.mxu0 %v4749
    %5267 = vmatprep.subr.bf16.mxu0 %v4748
    %5268 = vmatpush1.bf16.msra.mxu0 %v4747
    %5269 = vmatprep.subr.bf16.mxu0 %v4746
    %5270 = vmatpush1.bf16.msra.mxu0 %v4745
    %5271 = vmatprep.subr.bf16.mxu0 %v4744
    %5272 = vmatpush1.bf16.msra.mxu0 %v4743
    %5273 = vmatprep.subr.bf16.mxu0 %v4774
    %5274 = vmatpush2.bf16.msra.mxu0 %v4773
    %5275 = vmatprep.subr.bf16.mxu0 %v4772
    %5276 = vmatpush2.bf16.msra.mxu0 %v4771
    %5277 = vmatprep.subr.bf16.mxu0 %v4770
    %5278 = vmatpush2.bf16.msra.mxu0 %v4769
    %5279 = vmatprep.subr.bf16.mxu0 %v4768
    %5280 = vmatpush2.bf16.msra.mxu0 %v4767
    %5281 = vmatprep.subr.bf16.mxu0 %v4766
    %5282 = vmatpush2.bf16.msra.mxu0 %v4765
    %5283 = vmatprep.subr.bf16.mxu0 %v4764
    %5284 = vmatpush2.bf16.msra.mxu0 %v4763
    %5285 = vmatprep.subr.bf16.mxu0 %v4762
    %5286 = vmatpush2.bf16.msra.mxu0 %v4761
    %5287 = vmatprep.subr.bf16.mxu0 %v4760
    %5288 = vmatpush2.bf16.msra.mxu0 %v4759
    %5289 = vmatprep.mubr.bf16.mxu0 %v4204
    %5290 = vmatmul.mubr.bf16.gmra.mxu0 %v4203
    %v5291 = vpop.f32.mrf.mxu0
    %v5292 = vadd.f32 %v5099, %v5291
    %v5293 = vpop.f32.mrf.mxu0
    %v5294 = vadd.f32 %v5101, %v5293
    %v5295 = vpop.f32.mrf.mxu0
    %v5296 = vadd.f32 %v5103, %v5295
    %v5297 = vpop.f32.mrf.mxu0
    %v5298 = vadd.f32 %v5105, %v5297
    %5299 = vmatprep.mubr.bf16.mxu0 %v4210
    %5300 = vmatmul.mubr.bf16.gmra.mxu0 %v4209
    %v5301 = vpop.f32.mrf.mxu0
    %v5302 = vadd.f32 %v5109, %v5301
    %v5303 = vpop.f32.mrf.mxu0
    %v5304 = vadd.f32 %v5111, %v5303
    %v5305 = vpop.f32.mrf.mxu0
    %v5306 = vadd.f32 %v5113, %v5305
    %v5307 = vpop.f32.mrf.mxu0
    %v5308 = vadd.f32 %v5115, %v5307
    %5309 = vmatprep.mubr.bf16.mxu0 %v4216
    %5310 = vmatmul.mubr.bf16.gmra.mxu0 %v4215
    %v5311 = vpop.f32.mrf.mxu0
    %v5312 = vadd.f32 %v5119, %v5311
    %v5313 = vpop.f32.mrf.mxu0
    %v5314 = vadd.f32 %v5121, %v5313
    %v5315 = vpop.f32.mrf.mxu0
    %v5316 = vadd.f32 %v5123, %v5315
    %v5317 = vpop.f32.mrf.mxu0
    %v5318 = vadd.f32 %v5125, %v5317
    %5319 = vmatprep.mubr.bf16.mxu0 %v4222
    %5320 = vmatmul.mubr.bf16.gmra.mxu0 %v4221
    %v5321 = vpop.f32.mrf.mxu0
    %v5322 = vadd.f32 %v5129, %v5321
    %v5323 = vpop.f32.mrf.mxu0
    %v5324 = vadd.f32 %v5131, %v5323
    %v5325 = vpop.f32.mrf.mxu0
    %v5326 = vadd.f32 %v5133, %v5325
    %v5327 = vpop.f32.mrf.mxu0
    %v5328 = vadd.f32 %v5135, %v5327
    %5329 = vmatprep.mubr.bf16.mxu0 %v4228
    %5330 = vmatmul.mubr.bf16.gmra.mxu0 %v4227
    %v5331 = vpop.f32.mrf.mxu0
    %v5332 = vadd.f32 %v5139, %v5331
    %v5333 = vpop.f32.mrf.mxu0
    %v5334 = vadd.f32 %v5141, %v5333
    %v5335 = vpop.f32.mrf.mxu0
    %v5336 = vadd.f32 %v5143, %v5335
    %v5337 = vpop.f32.mrf.mxu0
    %v5338 = vadd.f32 %v5145, %v5337
    %5339 = vmatprep.mubr.bf16.mxu0 %v4234
    %5340 = vmatmul.mubr.bf16.gmra.mxu0 %v4233
    %v5341 = vpop.f32.mrf.mxu0
    %v5342 = vadd.f32 %v5149, %v5341
    %v5343 = vpop.f32.mrf.mxu0
    %v5344 = vadd.f32 %v5151, %v5343
    %v5345 = vpop.f32.mrf.mxu0
    %v5346 = vadd.f32 %v5153, %v5345
    %v5347 = vpop.f32.mrf.mxu0
    %v5348 = vadd.f32 %v5155, %v5347
    %5349 = vmatprep.mubr.bf16.mxu0 %v4240
    %5350 = vmatmul.mubr.bf16.gmra.mxu0 %v4239
    %v5351 = vpop.f32.mrf.mxu0
    %v5352 = vadd.f32 %v5159, %v5351
    %v5353 = vpop.f32.mrf.mxu0
    %v5354 = vadd.f32 %v5161, %v5353
    %v5355 = vpop.f32.mrf.mxu0
    %v5356 = vadd.f32 %v5163, %v5355
    %v5357 = vpop.f32.mrf.mxu0
    %v5358 = vadd.f32 %v5165, %v5357
    %5359 = vmatprep.mubr.bf16.mxu0 %v4246
    %5360 = vmatmul.mubr.bf16.gmra.mxu0 %v4245
    %v5361 = vpop.f32.mrf.mxu0
    %v5362 = vadd.f32 %v5169, %v5361
    %v5363 = vpop.f32.mrf.mxu0
    %v5364 = vadd.f32 %v5171, %v5363
    %v5365 = vpop.f32.mrf.mxu0
    %v5366 = vadd.f32 %v5173, %v5365
    %v5367 = vpop.f32.mrf.mxu0
    %v5368 = vadd.f32 %v5175, %v5367
    %5369 = vmatprep.mubr.bf16.mxu0 %v4252
    %5370 = vmatmul.mubr.bf16.gmra.mxu0 %v4251
    %v5371 = vpop.f32.mrf.mxu0
    %v5372 = vadd.f32 %v5179, %v5371
    %v5373 = vpop.f32.mrf.mxu0
    %v5374 = vadd.f32 %v5181, %v5373
    %v5375 = vpop.f32.mrf.mxu0
    %v5376 = vadd.f32 %v5183, %v5375
    %v5377 = vpop.f32.mrf.mxu0
    %v5378 = vadd.f32 %v5185, %v5377
    %5379 = vmatprep.mubr.bf16.mxu0 %v4258
    %5380 = vmatmul.mubr.bf16.gmra.mxu0 %v4257
    %v5381 = vpop.f32.mrf.mxu0
    %v5382 = vadd.f32 %v5189, %v5381
    %v5383 = vpop.f32.mrf.mxu0
    %v5384 = vadd.f32 %v5191, %v5383
    %v5385 = vpop.f32.mrf.mxu0
    %v5386 = vadd.f32 %v5193, %v5385
    %v5387 = vpop.f32.mrf.mxu0
    %v5388 = vadd.f32 %v5195, %v5387
    %5389 = vmatprep.mubr.bf16.mxu0 %v4264
    %5390 = vmatmul.mubr.bf16.gmra.mxu0 %v4263
    %v5391 = vpop.f32.mrf.mxu0
    %v5392 = vadd.f32 %v5199, %v5391
    %v5393 = vpop.f32.mrf.mxu0
    %v5394 = vadd.f32 %v5201, %v5393
    %v5395 = vpop.f32.mrf.mxu0
    %v5396 = vadd.f32 %v5203, %v5395
    %v5397 = vpop.f32.mrf.mxu0
    %v5398 = vadd.f32 %v5205, %v5397
    %5399 = vmatprep.mubr.bf16.mxu0 %v4270
    %5400 = vmatmul.mubr.bf16.gmra.mxu0 %v4269
    %v5401 = vpop.f32.mrf.mxu0
    %v5402 = vadd.f32 %v5209, %v5401
    %v5403 = vpop.f32.mrf.mxu0
    %v5404 = vadd.f32 %v5211, %v5403
    %v5405 = vpop.f32.mrf.mxu0
    %v5406 = vadd.f32 %v5213, %v5405
    %v5407 = vpop.f32.mrf.mxu0
    %v5408 = vadd.f32 %v5215, %v5407
    %5409 = vmatprep.mubr.bf16.mxu0 %v4276
    %5410 = vmatmul.mubr.bf16.gmra.mxu0 %v4275
    %v5411 = vpop.f32.mrf.mxu0
    %v5412 = vadd.f32 %v5219, %v5411
    %v5413 = vpop.f32.mrf.mxu0
    %v5414 = vadd.f32 %v5221, %v5413
    %v5415 = vpop.f32.mrf.mxu0
    %v5416 = vadd.f32 %v5223, %v5415
    %v5417 = vpop.f32.mrf.mxu0
    %v5418 = vadd.f32 %v5225, %v5417
    %5419 = vmatprep.mubr.bf16.mxu0 %v4282
    %5420 = vmatmul.mubr.bf16.gmra.mxu0 %v4281
    %v5421 = vpop.f32.mrf.mxu0
    %v5422 = vadd.f32 %v5229, %v5421
    %v5423 = vpop.f32.mrf.mxu0
    %v5424 = vadd.f32 %v5231, %v5423
    %v5425 = vpop.f32.mrf.mxu0
    %v5426 = vadd.f32 %v5233, %v5425
    %v5427 = vpop.f32.mrf.mxu0
    %v5428 = vadd.f32 %v5235, %v5427
    %5429 = vmatprep.mubr.bf16.mxu0 %v4288
    %5430 = vmatmul.mubr.bf16.gmra.mxu0 %v4287
    %v5431 = vpop.f32.mrf.mxu0
    %v5432 = vadd.f32 %v5239, %v5431
    %v5433 = vpop.f32.mrf.mxu0
    %v5434 = vadd.f32 %v5241, %v5433
    %v5435 = vpop.f32.mrf.mxu0
    %v5436 = vadd.f32 %v5243, %v5435
    %v5437 = vpop.f32.mrf.mxu0
    %v5438 = vadd.f32 %v5245, %v5437
    %5439 = vmatprep.mubr.bf16.mxu0 %v4294
    %5440 = vmatmul.mubr.bf16.gmra.mxu0 %v4293
    %v5441 = vpop.f32.mrf.mxu0
    %v5442 = vadd.f32 %v5249, %v5441
    %v5443 = vpop.f32.mrf.mxu0
    %v5444 = vadd.f32 %v5251, %v5443
    %v5445 = vpop.f32.mrf.mxu0
    %v5446 = vadd.f32 %v5253, %v5445
    %v5447 = vpop.f32.mrf.mxu0
    %v5448 = vadd.f32 %v5255, %v5447
    %5449 = vdwg.mxu0
    %v5450 = vadd.f32 %v4135, %v5292
    %v5451 = vadd.f32 %v4136, %v5294
    %v5452 = vadd.f32 %v4137, %v5296
    %v5453 = vadd.f32 %v4138, %v5298
    %v5454 = vadd.f32 %v4139, %v5302
    %v5455 = vadd.f32 %v4140, %v5304
    %v5456 = vadd.f32 %v4141, %v5306
    %v5457 = vadd.f32 %v4142, %v5308
    %v5458 = vadd.f32 %v4143, %v5312
    %v5459 = vadd.f32 %v4144, %v5314
    %v5460 = vadd.f32 %v4145, %v5316
    %v5461 = vadd.f32 %v4146, %v5318
    %v5462 = vadd.f32 %v4147, %v5322
    %v5463 = vadd.f32 %v4148, %v5324
    %v5464 = vadd.f32 %v4149, %v5326
    %v5465 = vadd.f32 %v4150, %v5328
    %v5466 = vadd.f32 %v4151, %v5332
    %v5467 = vadd.f32 %v4152, %v5334
    %v5468 = vadd.f32 %v4153, %v5336
    %v5469 = vadd.f32 %v4154, %v5338
    %v5470 = vadd.f32 %v4155, %v5342
    %v5471 = vadd.f32 %v4156, %v5344
    %v5472 = vadd.f32 %v4157, %v5346
    %v5473 = vadd.f32 %v4158, %v5348
    %v5474 = vadd.f32 %v4159, %v5352
    %v5475 = vadd.f32 %v4160, %v5354
    %v5476 = vadd.f32 %v4161, %v5356
    %v5477 = vadd.f32 %v4162, %v5358
    %v5478 = vadd.f32 %v4163, %v5362
    %v5479 = vadd.f32 %v4164, %v5364
    %v5480 = vadd.f32 %v4165, %v5366
    %v5481 = vadd.f32 %v4166, %v5368
    %v5482 = vadd.f32 %v4167, %v5372
    %v5483 = vadd.f32 %v4168, %v5374
    %v5484 = vadd.f32 %v4169, %v5376
    %v5485 = vadd.f32 %v4170, %v5378
    %v5486 = vadd.f32 %v4171, %v5382
    %v5487 = vadd.f32 %v4172, %v5384
    %v5488 = vadd.f32 %v4173, %v5386
    %v5489 = vadd.f32 %v4174, %v5388
    %v5490 = vadd.f32 %v4175, %v5392
    %v5491 = vadd.f32 %v4176, %v5394
    %v5492 = vadd.f32 %v4177, %v5396
    %v5493 = vadd.f32 %v4178, %v5398
    %v5494 = vadd.f32 %v4179, %v5402
    %v5495 = vadd.f32 %v4180, %v5404
    %v5496 = vadd.f32 %v4181, %v5406
    %v5497 = vadd.f32 %v4182, %v5408
    %v5498 = vadd.f32 %v4183, %v5412
    %v5499 = vadd.f32 %v4184, %v5414
    %v5500 = vadd.f32 %v4185, %v5416
    %v5501 = vadd.f32 %v4186, %v5418
    %v5502 = vadd.f32 %v4187, %v5422
    %v5503 = vadd.f32 %v4188, %v5424
    %v5504 = vadd.f32 %v4189, %v5426
    %v5505 = vadd.f32 %v4190, %v5428
    %v5506 = vadd.f32 %v4191, %v5432
    %v5507 = vadd.f32 %v4192, %v5434
    %v5508 = vadd.f32 %v4193, %v5436
    %v5509 = vadd.f32 %v4194, %v5438
    %v5510 = vadd.f32 %v4195, %v5442
    %v5511 = vadd.f32 %v4196, %v5444
    %v5512 = vadd.f32 %v4197, %v5446
    %v5513 = vadd.f32 %v4198, %v5448
    %5514 = vst [vmem:[#allocation2] sm:$0xff] %v5450
    %5515 = vst [vmem:[#allocation2 + $0x8] sm:$0xff] %v5451
    %5516 = vst [vmem:[#allocation2 + $0x10] sm:$0xff] %v5452
    %5517 = vst [vmem:[#allocation2 + $0x18] sm:$0xff] %v5453
    %5518 = vst [vmem:[#allocation2 + $0x20] sm:$0xff] %v5454
    %5519 = vst [vmem:[#allocation2 + $0x28] sm:$0xff] %v5455
    %5520 = vst [vmem:[#allocation2 + $0x30] sm:$0xff] %v5456
    %5521 = vst [vmem:[#allocation2 + $0x38] sm:$0xff] %v5457
    %5522 = vst [vmem:[#allocation2 + $0x40] sm:$0xff] %v5458
    %5523 = vst [vmem:[#allocation2 + $0x48] sm:$0xff] %v5459
    %5524 = vst [vmem:[#allocation2 + $0x50] sm:$0xff] %v5460
    %5525 = vst [vmem:[#allocation2 + $0x58] sm:$0xff] %v5461
    %5526 = vst [vmem:[#allocation2 + $0x60] sm:$0xff] %v5462
    %5527 = vst [vmem:[#allocation2 + $0x68] sm:$0xff] %v5463
    %5528 = vst [vmem:[#allocation2 + $0x70] sm:$0xff] %v5464
    %5529 = vst [vmem:[#allocation2 + $0x78] sm:$0xff] %v5465
    %5530 = vst [vmem:[#allocation2 + $0x80] sm:$0xff] %v5466
    %5531 = vst [vmem:[#allocation2 + $0x88] sm:$0xff] %v5467
    %5532 = vst [vmem:[#allocation2 + $0x90] sm:$0xff] %v5468
    %5533 = vst [vmem:[#allocation2 + $0x98] sm:$0xff] %v5469
    %5534 = vst [vmem:[#allocation2 + $0xa0] sm:$0xff] %v5470
    %5535 = vst [vmem:[#allocation2 + $0xa8] sm:$0xff] %v5471
    %5536 = vst [vmem:[#allocation2 + $0xb0] sm:$0xff] %v5472
    %5537 = vst [vmem:[#allocation2 + $0xb8] sm:$0xff] %v5473
    %5538 = vst [vmem:[#allocation2 + $0xc0] sm:$0xff] %v5474
    %5539 = vst [vmem:[#allocation2 + $0xc8] sm:$0xff] %v5475
    %5540 = vst [vmem:[#allocation2 + $0xd0] sm:$0xff] %v5476
    %5541 = vst [vmem:[#allocation2 + $0xd8] sm:$0xff] %v5477
    %5542 = vst [vmem:[#allocation2 + $0xe0] sm:$0xff] %v5478
    %5543 = vst [vmem:[#allocation2 + $0xe8] sm:$0xff] %v5479
    %5544 = vst [vmem:[#allocation2 + $0xf0] sm:$0xff] %v5480
    %5545 = vst [vmem:[#allocation2 + $0xf8] sm:$0xff] %v5481
    %5546 = vst [vmem:[#allocation2 + $0x100] sm:$0xff] %v5482
    %5547 = vst [vmem:[#allocation2 + $0x108] sm:$0xff] %v5483
    %5548 = vst [vmem:[#allocation2 + $0x110] sm:$0xff] %v5484
    %5549 = vst [vmem:[#allocation2 + $0x118] sm:$0xff] %v5485
    %5550 = vst [vmem:[#allocation2 + $0x120] sm:$0xff] %v5486
    %5551 = vst [vmem:[#allocation2 + $0x128] sm:$0xff] %v5487
    %5552 = vst [vmem:[#allocation2 + $0x130] sm:$0xff] %v5488
    %5553 = vst [vmem:[#allocation2 + $0x138] sm:$0xff] %v5489
    %5554 = vst [vmem:[#allocation2 + $0x140] sm:$0xff] %v5490
    %5555 = vst [vmem:[#allocation2 + $0x148] sm:$0xff] %v5491
    %5556 = vst [vmem:[#allocation2 + $0x150] sm:$0xff] %v5492
    %5557 = vst [vmem:[#allocation2 + $0x158] sm:$0xff] %v5493
    %5558 = vst [vmem:[#allocation2 + $0x160] sm:$0xff] %v5494
    %5559 = vst [vmem:[#allocation2 + $0x168] sm:$0xff] %v5495
    %5560 = vst [vmem:[#allocation2 + $0x170] sm:$0xff] %v5496
    %5561 = vst [vmem:[#allocation2 + $0x178] sm:$0xff] %v5497
    %5562 = vst [vmem:[#allocation2 + $0x180] sm:$0xff] %v5498
    %5563 = vst [vmem:[#allocation2 + $0x188] sm:$0xff] %v5499
    %5564 = vst [vmem:[#allocation2 + $0x190] sm:$0xff] %v5500
    %5565 = vst [vmem:[#allocation2 + $0x198] sm:$0xff] %v5501
    %5566 = vst [vmem:[#allocation2 + $0x1a0] sm:$0xff] %v5502
    %5567 = vst [vmem:[#allocation2 + $0x1a8] sm:$0xff] %v5503
    %5568 = vst [vmem:[#allocation2 + $0x1b0] sm:$0xff] %v5504
    %5569 = vst [vmem:[#allocation2 + $0x1b8] sm:$0xff] %v5505
    %5570 = vst [vmem:[#allocation2 + $0x1c0] sm:$0xff] %v5506
    %5571 = vst [vmem:[#allocation2 + $0x1c8] sm:$0xff] %v5507
    %5572 = vst [vmem:[#allocation2 + $0x1d0] sm:$0xff] %v5508
    %5573 = vst [vmem:[#allocation2 + $0x1d8] sm:$0xff] %v5509
    %5574 = vst [vmem:[#allocation2 + $0x1e0] sm:$0xff] %v5510
    %5575 = vst [vmem:[#allocation2 + $0x1e8] sm:$0xff] %v5511
    %5576 = vst [vmem:[#allocation2 + $0x1f0] sm:$0xff] %v5512
    %5577 = vst [vmem:[#allocation2 + $0x1f8] sm:$0xff] %v5513
    // Predicated region
    $region22: #{feed_forward.1} parent=1 // pred_check
      %p5578 = pneg %p29
    $region23: #{feed_forward.1} parent=1 // pred_check_branch
      %5580 = sbr.rel (%p5578) target = $region25
    $region24: #{feed_forward.1} parent=1 // pred_region
      %v5581 = vld [vmem:[#allocation2] sm:$0xff]
      %v5582 = vld [vmem:[#allocation2 + $0x8] sm:$0xff]
      %v5583 = vld [vmem:[#allocation2 + $0x10] sm:$0xff]
      %v5584 = vld [vmem:[#allocation2 + $0x18] sm:$0xff]
      %v5585 = vld [vmem:[#allocation2 + $0x20] sm:$0xff]
      %v5586 = vld [vmem:[#allocation2 + $0x28] sm:$0xff]
      %v5587 = vld [vmem:[#allocation2 + $0x30] sm:$0xff]
      %v5588 = vld [vmem:[#allocation2 + $0x38] sm:$0xff]
      %v5589 = vld [vmem:[#allocation2 + $0x40] sm:$0xff]
      %v5590 = vld [vmem:[#allocation2 + $0x48] sm:$0xff]
      %v5591 = vld [vmem:[#allocation2 + $0x50] sm:$0xff]
      %v5592 = vld [vmem:[#allocation2 + $0x58] sm:$0xff]
      %v5593 = vld [vmem:[#allocation2 + $0x60] sm:$0xff]
      %v5594 = vld [vmem:[#allocation2 + $0x68] sm:$0xff]
      %v5595 = vld [vmem:[#allocation2 + $0x70] sm:$0xff]
      %v5596 = vld [vmem:[#allocation2 + $0x78] sm:$0xff]
      %v5597 = vld [vmem:[#allocation2 + $0x80] sm:$0xff]
      %v5598 = vld [vmem:[#allocation2 + $0x88] sm:$0xff]
      %v5599 = vld [vmem:[#allocation2 + $0x90] sm:$0xff]
      %v5600 = vld [vmem:[#allocation2 + $0x98] sm:$0xff]
      %v5601 = vld [vmem:[#allocation2 + $0xa0] sm:$0xff]
      %v5602 = vld [vmem:[#allocation2 + $0xa8] sm:$0xff]
      %v5603 = vld [vmem:[#allocation2 + $0xb0] sm:$0xff]
      %v5604 = vld [vmem:[#allocation2 + $0xb8] sm:$0xff]
      %v5605 = vld [vmem:[#allocation2 + $0xc0] sm:$0xff]
      %v5606 = vld [vmem:[#allocation2 + $0xc8] sm:$0xff]
      %v5607 = vld [vmem:[#allocation2 + $0xd0] sm:$0xff]
      %v5608 = vld [vmem:[#allocation2 + $0xd8] sm:$0xff]
      %v5609 = vld [vmem:[#allocation2 + $0xe0] sm:$0xff]
      %v5610 = vld [vmem:[#allocation2 + $0xe8] sm:$0xff]
      %v5611 = vld [vmem:[#allocation2 + $0xf0] sm:$0xff]
      %v5612 = vld [vmem:[#allocation2 + $0xf8] sm:$0xff]
      %v5613 = vld [vmem:[#allocation2 + $0x100] sm:$0xff]
      %v5614 = vld [vmem:[#allocation2 + $0x108] sm:$0xff]
      %v5615 = vld [vmem:[#allocation2 + $0x110] sm:$0xff]
      %v5616 = vld [vmem:[#allocation2 + $0x118] sm:$0xff]
      %v5617 = vld [vmem:[#allocation2 + $0x120] sm:$0xff]
      %v5618 = vld [vmem:[#allocation2 + $0x128] sm:$0xff]
      %v5619 = vld [vmem:[#allocation2 + $0x130] sm:$0xff]
      %v5620 = vld [vmem:[#allocation2 + $0x138] sm:$0xff]
      %v5621 = vld [vmem:[#allocation2 + $0x140] sm:$0xff]
      %v5622 = vld [vmem:[#allocation2 + $0x148] sm:$0xff]
      %v5623 = vld [vmem:[#allocation2 + $0x150] sm:$0xff]
      %v5624 = vld [vmem:[#allocation2 + $0x158] sm:$0xff]
      %v5625 = vld [vmem:[#allocation2 + $0x160] sm:$0xff]
      %v5626 = vld [vmem:[#allocation2 + $0x168] sm:$0xff]
      %v5627 = vld [vmem:[#allocation2 + $0x170] sm:$0xff]
      %v5628 = vld [vmem:[#allocation2 + $0x178] sm:$0xff]
      %v5629 = vld [vmem:[#allocation2 + $0x180] sm:$0xff]
      %v5630 = vld [vmem:[#allocation2 + $0x188] sm:$0xff]
      %v5631 = vld [vmem:[#allocation2 + $0x190] sm:$0xff]
      %v5632 = vld [vmem:[#allocation2 + $0x198] sm:$0xff]
      %v5633 = vld [vmem:[#allocation2 + $0x1a0] sm:$0xff]
      %v5634 = vld [vmem:[#allocation2 + $0x1a8] sm:$0xff]
      %v5635 = vld [vmem:[#allocation2 + $0x1b0] sm:$0xff]
      %v5636 = vld [vmem:[#allocation2 + $0x1b8] sm:$0xff]
      %v5637 = vld [vmem:[#allocation2 + $0x1c0] sm:$0xff]
      %v5638 = vld [vmem:[#allocation2 + $0x1c8] sm:$0xff]
      %v5639 = vld [vmem:[#allocation2 + $0x1d0] sm:$0xff]
      %v5640 = vld [vmem:[#allocation2 + $0x1d8] sm:$0xff]
      %v5641 = vld [vmem:[#allocation2 + $0x1e0] sm:$0xff]
      %v5642 = vld [vmem:[#allocation2 + $0x1e8] sm:$0xff]
      %v5643 = vld [vmem:[#allocation2 + $0x1f0] sm:$0xff]
      %v5644 = vld [vmem:[#allocation2 + $0x1f8] sm:$0xff]
      %5645 = vst [vmem:[#allocation6] sm:$0xff] %v5581
      %5646 = vst [vmem:[#allocation6 + $0x8] sm:$0xff] %v5582
      %5647 = vst [vmem:[#allocation6 + $0x10] sm:$0xff] %v5583
      %5648 = vst [vmem:[#allocation6 + $0x18] sm:$0xff] %v5584
      %5649 = vst [vmem:[#allocation6 + $0x20] sm:$0xff] %v5585
      %5650 = vst [vmem:[#allocation6 + $0x28] sm:$0xff] %v5586
      %5651 = vst [vmem:[#allocation6 + $0x30] sm:$0xff] %v5587
      %5652 = vst [vmem:[#allocation6 + $0x38] sm:$0xff] %v5588
      %5653 = vst [vmem:[#allocation6 + $0x40] sm:$0xff] %v5589
      %5654 = vst [vmem:[#allocation6 + $0x48] sm:$0xff] %v5590
      %5655 = vst [vmem:[#allocation6 + $0x50] sm:$0xff] %v5591
      %5656 = vst [vmem:[#allocation6 + $0x58] sm:$0xff] %v5592
      %5657 = vst [vmem:[#allocation6 + $0x60] sm:$0xff] %v5593
      %5658 = vst [vmem:[#allocation6 + $0x68] sm:$0xff] %v5594
      %5659 = vst [vmem:[#allocation6 + $0x70] sm:$0xff] %v5595
      %5660 = vst [vmem:[#allocation6 + $0x78] sm:$0xff] %v5596
      %5661 = vst [vmem:[#allocation6 + $0x80] sm:$0xff] %v5597
      %5662 = vst [vmem:[#allocation6 + $0x88] sm:$0xff] %v5598
      %5663 = vst [vmem:[#allocation6 + $0x90] sm:$0xff] %v5599
      %5664 = vst [vmem:[#allocation6 + $0x98] sm:$0xff] %v5600
      %5665 = vst [vmem:[#allocation6 + $0xa0] sm:$0xff] %v5601
      %5666 = vst [vmem:[#allocation6 + $0xa8] sm:$0xff] %v5602
      %5667 = vst [vmem:[#allocation6 + $0xb0] sm:$0xff] %v5603
      %5668 = vst [vmem:[#allocation6 + $0xb8] sm:$0xff] %v5604
      %5669 = vst [vmem:[#allocation6 + $0xc0] sm:$0xff] %v5605
      %5670 = vst [vmem:[#allocation6 + $0xc8] sm:$0xff] %v5606
      %5671 = vst [vmem:[#allocation6 + $0xd0] sm:$0xff] %v5607
      %5672 = vst [vmem:[#allocation6 + $0xd8] sm:$0xff] %v5608
      %5673 = vst [vmem:[#allocation6 + $0xe0] sm:$0xff] %v5609
      %5674 = vst [vmem:[#allocation6 + $0xe8] sm:$0xff] %v5610
      %5675 = vst [vmem:[#allocation6 + $0xf0] sm:$0xff] %v5611
      %5676 = vst [vmem:[#allocation6 + $0xf8] sm:$0xff] %v5612
      %5677 = vst [vmem:[#allocation6 + $0x100] sm:$0xff] %v5613
      %5678 = vst [vmem:[#allocation6 + $0x108] sm:$0xff] %v5614
      %5679 = vst [vmem:[#allocation6 + $0x110] sm:$0xff] %v5615
      %5680 = vst [vmem:[#allocation6 + $0x118] sm:$0xff] %v5616
      %5681 = vst [vmem:[#allocation6 + $0x120] sm:$0xff] %v5617
      %5682 = vst [vmem:[#allocation6 + $0x128] sm:$0xff] %v5618
      %5683 = vst [vmem:[#allocation6 + $0x130] sm:$0xff] %v5619
      %5684 = vst [vmem:[#allocation6 + $0x138] sm:$0xff] %v5620
      %5685 = vst [vmem:[#allocation6 + $0x140] sm:$0xff] %v5621
      %5686 = vst [vmem:[#allocation6 + $0x148] sm:$0xff] %v5622
      %5687 = vst [vmem:[#allocation6 + $0x150] sm:$0xff] %v5623
      %5688 = vst [vmem:[#allocation6 + $0x158] sm:$0xff] %v5624
      %5689 = vst [vmem:[#allocation6 + $0x160] sm:$0xff] %v5625
      %5690 = vst [vmem:[#allocation6 + $0x168] sm:$0xff] %v5626
      %5691 = vst [vmem:[#allocation6 + $0x170] sm:$0xff] %v5627
      %5692 = vst [vmem:[#allocation6 + $0x178] sm:$0xff] %v5628
      %5693 = vst [vmem:[#allocation6 + $0x180] sm:$0xff] %v5629
      %5694 = vst [vmem:[#allocation6 + $0x188] sm:$0xff] %v5630
      %5695 = vst [vmem:[#allocation6 + $0x190] sm:$0xff] %v5631
      %5696 = vst [vmem:[#allocation6 + $0x198] sm:$0xff] %v5632
      %5697 = vst [vmem:[#allocation6 + $0x1a0] sm:$0xff] %v5633
      %5698 = vst [vmem:[#allocation6 + $0x1a8] sm:$0xff] %v5634
      %5699 = vst [vmem:[#allocation6 + $0x1b0] sm:$0xff] %v5635
      %5700 = vst [vmem:[#allocation6 + $0x1b8] sm:$0xff] %v5636
      %5701 = vst [vmem:[#allocation6 + $0x1c0] sm:$0xff] %v5637
      %5702 = vst [vmem:[#allocation6 + $0x1c8] sm:$0xff] %v5638
      %5703 = vst [vmem:[#allocation6 + $0x1d0] sm:$0xff] %v5639
      %5704 = vst [vmem:[#allocation6 + $0x1d8] sm:$0xff] %v5640
      %5705 = vst [vmem:[#allocation6 + $0x1e0] sm:$0xff] %v5641
      %5706 = vst [vmem:[#allocation6 + $0x1e8] sm:$0xff] %v5642
      %5707 = vst [vmem:[#allocation6 + $0x1f0] sm:$0xff] %v5643
      %5708 = vst [vmem:[#allocation6 + $0x1f8] sm:$0xff] %v5644
    $region25: #{feed_forward.1} parent=1 // pred_fallthru
      _
    // Predicated region
    $region26: #{feed_forward.1} parent=1 // pred_check
      _
    $region27: #{feed_forward.1} parent=1 // pred_check_branch
      %5710 = sbr.rel (0) target = $region29
    $region28: #{feed_forward.1} parent=1 // pred_region
      %s5712 = ssub.s32 8192, 8192
      %5713 = vsyncadd [#allocation5], %s5712
      %s5714 = sshll.u32 [#allocation6], 4
      %s5715 = int_to_ptr.vmem [resolvable:$true] %s5714
      %5720 = dma.vmem_to_hbm [thread:$0]  %s5715, 8192, %s3, [#allocation5], 256, 256, 16
    $region29: #{feed_forward.1} parent=1 // pred_fallthru
      _
    // Predicated region
    $region30: #{feed_forward.1} parent=1 // pred_check
      _
    $region31: #{feed_forward.1} parent=1 // pred_check_branch
      %5722 = sbr.rel (0) target = $region33
    $region32: #{feed_forward.1} parent=1 // pred_region
      %5723 = dma.done [#allocation5], 8192
    $region33: #{feed_forward.1} parent=1 // pred_fallthru
      _
    %5724 = vsyncpa [#allocation4], 1
    %5725 = vsyncpa [#allocation5], 1

</llo_original>
